<compile_context>
chip_gen: v5e
topology: v5e:2x2
jax: 0.10.0
libtpu: 0.0.40
codegen_flags: <defaults>
</compile_context>

<pallas_src>
import jax
import jax.numpy as jnp
import numpy as np
from jax import lax
from jax.experimental import pallas as pl
from jax.experimental.pallas import tpu as pltpu

NB = 8  # images processed per grid step (batch block)


# --------------------------------------------------------------------------
# Fused Pallas kernel: whole LeNet forward for a block of NB images.
#
# Data layouts inside the kernel (everything f32, VMEM-resident values):
#   x        : (NB*32, 32)    rows = (image, input row),   lanes = input col
#   conv1 acc: (NB, 28, 168)  lanes = ox*6  + c1
#   pool1 out: (NB*16, 84)    rows = (image, pooled row),  lanes = px*6  + c1
#   conv2 acc: (NB, 12, 192)  lanes = ox*16 + c2
#   pool2 out: (NB*8, 96)     rows = (image, pooled row),  lanes = px*16 + c2
#   output   : (NB, 128)      lanes 0..9 = logits, 10..127 = 0 (lane dense)
# --------------------------------------------------------------------------
def _lenet_kernel(x_ref,
                  w1k_ref, p1e_ref, p1o_ref, s1e_ref, s1o_ref, b1_ref,
                  w2k_ref, p2e_ref, p2o_ref, s2e_ref, s2o_ref, b2_ref,
                  rsel_ref, wf1_ref, bf1_ref, wf2_ref, bf2_ref, wf3_ref,
                  bf3_ref, out_ref):
    f32 = jnp.float32

    def dot(a, b):
        return jnp.dot(a, b, preferred_element_type=f32)

    x = x_ref[...]                                        # (NB*32, 32)

    # ---- conv1: 5x5, Cin=1, Cout=6 ------------------------------------
    # For each ky: one matmul handles all kx taps & channels; the ky row
    # shift is an aligned slice of the (NB, 32, 168) view.
    acc1 = None
    for ky in range(5):
        t = dot(x, w1k_ref[ky]).reshape(NB, 32, 168)
        t = t[:, ky:ky + 28, :]                           # (NB, 28, 168)
        acc1 = t if acc1 is None else acc1 + t

    # ---- pool1 (2x2 max).  max commutes with +bias / relu, so pool the
    # pre-activation and apply bias+relu afterwards. -----------------------
    p1e = p1e_ref[...]                                    # (16, 28) one-hot rows
    p1o = p1o_ref[...]
    pooled = []
    for n in range(NB):                                   # static unroll
        img = acc1[n]                                     # (28, 168)
        pooled.append(jnp.maximum(dot(p1e, img), dot(p1o, img)))   # (16, 168)
    y = jnp.stack(pooled, axis=0).reshape(NB * 16, 168)
    y = jnp.maximum(dot(y, s1e_ref[...]), dot(y, s1o_ref[...]))    # (NB*16, 84)
    y = jnp.maximum(y + b1_ref[...], 0.0)                 # relu(conv1+b) pooled

    # ---- conv2: 3x3, Cin=6, Cout=16 ------------------------------------
    acc2 = None
    for ky in range(3):
        t = dot(y, w2k_ref[ky]).reshape(NB, 16, 192)
        t = t[:, ky:ky + 12, :]                           # (NB, 12, 192)
        acc2 = t if acc2 is None else acc2 + t

    # ---- pool2 (2x2 max) + bias + relu ----------------------------------
    p2e = p2e_ref[...]                                    # (8, 12)
    p2o = p2o_ref[...]
    pooled = []
    for n in range(NB):
        img = acc2[n]                                     # (12, 192)
        pooled.append(jnp.maximum(dot(p2e, img), dot(p2o, img)))   # (8, 192)
    z = jnp.stack(pooled, axis=0).reshape(NB * 8, 192)
    z = jnp.maximum(dot(z, s2e_ref[...]), dot(z, s2o_ref[...]))    # (NB*8, 96)
    z = jnp.maximum(z + b2_ref[...], 0.0)

    # ---- flatten + fc1 ---------------------------------------------------
    # Row py2 of every image is gathered with a one-hot matrix and hits its
    # own pre-permuted slice of the fc1 weights; partial products are summed.
    h = None
    for py2 in range(6):
        part = dot(dot(rsel_ref[py2], z), wf1_ref[py2])   # (NB, 96) -> (NB, 120)
        h = part if h is None else h + part
    h = jnp.maximum(h + bf1_ref[...], 0.0)                # (NB, 120)

    # ---- fc2, fc3 --------------------------------------------------------
    h = jnp.maximum(dot(h, wf2_ref[...]) + bf2_ref[...], 0.0)      # (NB, 84)
    out_ref[...] = dot(h, wf3_ref[...]) + bf3_ref[...]             # (NB, 128)


# --------------------------------------------------------------------------
# One-time weight preparation (pre-transpose / permute / pad / tile).
# --------------------------------------------------------------------------
def prepare_params(params):
    (w1, b1, w2, b2, fw1, fb1, fw2, fb2, fw3, fb3) = params
    f32 = jnp.float32

    # conv1 per-ky row-matmul weights: (5, 32, 168), out lane = ox*6 + co.
    iw = np.arange(32)[:, None]
    lane1 = np.arange(28 * 6)[None, :]
    ox1, co1 = lane1 // 6, lane1 % 6
    kx1 = iw - ox1
    valid1 = (kx1 >= 0) & (kx1 < 5)
    w1k = jnp.stack(
        [jnp.where(valid1, w1[co1, 0, ky, np.clip(kx1, 0, 4)], 0.0)
         for ky in range(5)], axis=0).astype(f32)

    # conv2 per-ky weights: (3, 84, 192); in lane = px*6+c1, out lane = ox*16+c2.
    lin = np.arange(84)[:, None]
    px_in, c1 = lin // 6, lin % 6
    lout = np.arange(192)[None, :]
    ox2, c2 = lout // 16, lout % 16
    kx2 = px_in - ox2
    valid2 = (kx2 >= 0) & (kx2 < 3)
    w2k = jnp.stack(
        [jnp.where(valid2, w2[c2, c1, ky, np.clip(kx2, 0, 2)], 0.0)
         for ky in range(3)], axis=0).astype(f32)

    # One-hot pooling selection matrices (static, data-independent).
    def row_sel(rows_out_pad, rows_valid, offset):
        m = np.zeros((rows_out_pad, 2 * rows_valid), np.float32)
        m[np.arange(rows_valid), 2 * np.arange(rows_valid) + offset] = 1.0
        return m

    def lane_sel(n_px_out, c, offset):
        m = np.zeros((2 * n_px_out * c, n_px_out * c), np.float32)
        out_idx = np.arange(n_px_out * c)
        px, ch = out_idx // c, out_idx % c
        m[(2 * px + offset) * c + ch, out_idx] = 1.0
        return m

    p1e, p1o = jnp.asarray(row_sel(16, 14, 0)), jnp.asarray(row_sel(16, 14, 1))
    p2e, p2o = jnp.asarray(row_sel(8, 6, 0)), jnp.asarray(row_sel(8, 6, 1))
    s1e, s1o = jnp.asarray(lane_sel(14, 6, 0)), jnp.asarray(lane_sel(14, 6, 1))
    s2e, s2o = jnp.asarray(lane_sel(6, 16, 0)), jnp.asarray(lane_sel(6, 16, 1))

    # Biases tiled to the pooled lane layouts.
    b1p = jnp.tile(b1, 14).reshape(1, 84).astype(f32)     # lane = px*6  + c1
    b2p = jnp.tile(b2, 6).reshape(1, 96).astype(f32)      # lane = px*16 + c2

    # fc1: per-row one-hot gather matrices + permuted weight slabs.
    rsel = np.zeros((6, NB, NB * 8), np.float32)
    for py2 in range(6):
        rsel[py2, np.arange(NB), np.arange(NB) * 8 + py2] = 1.0
    rsel = jnp.asarray(rsel)

    lane96 = np.arange(96)
    px2v, c2v = lane96 // 16, lane96 % 16                 # lane = px2*16 + c2
    wf1 = jnp.stack(
        [fw1[:, c2v * 36 + py2 * 6 + px2v].T for py2 in range(6)],
        axis=0).astype(f32)                               # (6, 96, 120)
    bf1p = fb1.reshape(1, 120).astype(f32)

    wf2 = fw2.T.astype(f32)                               # (120, 84)
    bf2p = fb2.reshape(1, 84).astype(f32)

    # fc3 padded to a lane-dense 128-wide output slab.
    wf3 = jnp.concatenate([fw3.T.astype(f32), jnp.zeros((84, 118), f32)], axis=1)
    bf3p = jnp.concatenate([fb3.astype(f32), jnp.zeros((118,), f32)]).reshape(1, 128)

    return (w1k, p1e, p1o, s1e, s1o, b1p,
            w2k, p2e, p2o, s2e, s2o, b2p,
            rsel, wf1, bf1p, wf2, bf2p, wf3, bf3p)


# --------------------------------------------------------------------------
# Forward wrapper: one pallas_call, gridded over batch blocks.
# --------------------------------------------------------------------------
def lenet_forward(x_nchw, prep):
    n = x_nchw.shape[0]
    assert x_nchw.shape[1:] == (1, 32, 32), x_nchw.shape
    n_pad = ((n + NB - 1) // NB) * NB

    x = x_nchw.reshape(n, 32, 32).astype(jnp.float32)
    if n_pad != n:
        x = jnp.concatenate(
            [x, jnp.zeros((n_pad - n, 32, 32), jnp.float32)], axis=0)
    x2 = x.reshape(n_pad * 32, 32)                        # rows = (image, row)

    in_specs = [pl.BlockSpec((NB * 32, 32), lambda i: (i, 0))]
    for a in prep:                                        # constants: fetched once
        nd = a.ndim
        in_specs.append(pl.BlockSpec(a.shape, lambda i, _nd=nd: (0,) * _nd))

    out = pl.pallas_call(
        _lenet_kernel,
        out_shape=jax.ShapeDtypeStruct((n_pad, 128), jnp.float32),
        grid=(n_pad // NB,),
        in_specs=in_specs,
        out_specs=pl.BlockSpec((NB, 128), lambda i: (i, 0)),
        compiler_params=pltpu.CompilerParams(
            dimension_semantics=("parallel",)),
    )(x2, *prep)
    return out[:n, :10]


# --------------------------------------------------------------------------
# Deterministic parameter init (shapes from the PyTorch __init__)
# --------------------------------------------------------------------------
def init_params(key):
    def uniform(k, shape, fan_in):
        bound = 1.0 / float(fan_in) ** 0.5
        return jax.random.uniform(k, shape, jnp.float32, -bound, bound)

    ks = jax.random.split(key, 10)
    w1 = uniform(ks[0], (6, 1, 5, 5), 1 * 5 * 5)
    b1 = uniform(ks[1], (6,), 1 * 5 * 5)
    w2 = uniform(ks[2], (16, 6, 3, 3), 6 * 3 * 3)
    b2 = uniform(ks[3], (16,), 6 * 3 * 3)
    fw1 = uniform(ks[4], (120, 16 * 6 * 6), 16 * 6 * 6)
    fb1 = uniform(ks[5], (120,), 16 * 6 * 6)
    fw2 = uniform(ks[6], (84, 120), 120)
    fb2 = uniform(ks[7], (84,), 120)
    fw3 = uniform(ks[8], (10, 84), 84)
    fb3 = uniform(ks[9], (10,), 84)
    return (w1, b1, w2, b2, fw1, fb1, fw2, fb2, fw3, fb3)


# --------------------------------------------------------------------------
# Pure-JAX reference (correctness check only)
# --------------------------------------------------------------------------
def reference_forward(x, params):
    (w1, b1, w2, b2, fw1, fb1, fw2, fb2, fw3, fb3) = params

    def conv_block(y, w, b):
        y = lax.conv_general_dilated(
            y, w, window_strides=(1, 1), padding="VALID",
            dimension_numbers=("NCHW", "OIHW", "NCHW"))
        y = jnp.maximum(y + b[None, :, None, None], 0.0)
        n, c, h, ww = y.shape
        return y.reshape(n, c, h // 2, 2, ww // 2, 2).max(axis=(3, 5))

    y = conv_block(x, w1, b1)
    y = conv_block(y, w2, b2)
    y = y.reshape(y.shape[0], -1)
    y = jnp.maximum(y @ fw1.T + fb1, 0.0)
    y = jnp.maximum(y @ fw2.T + fb2, 0.0)
    return y @ fw3.T + fb3


if __name__ == "__main__":
    key = jax.random.PRNGKey(0)
    pkey, xkey = jax.random.split(key)
    params = init_params(pkey)
    # PyTorch LeNet expects NCHW (N, 1, 32, 32) so that fc1 sees 16*6*6 feats.
    x = jax.random.uniform(xkey, (2, 1, 32, 32), jnp.float32)

    prep = prepare_params(params)        # weight re-layout done once at init
    fwd = jax.jit(lenet_forward)
    out = jax.block_until_ready(fwd(x, prep))

    ref = reference_forward(x, params)
    assert out.shape == (2, 10), out.shape
    assert jnp.allclose(out, ref, atol=5e-3, rtol=5e-3), (
        "Pallas LeNet output mismatch vs. reference")
    print("KERNEL_OK")
</pallas_src>

<mosaic_0001>
module attributes {stable_mosaic.version = 11 : i64} {
  func.func @_lenet_kernel(%arg0: i32, %arg1: memref<256x32xf32, #tpu.memory_space<vmem>>, %arg2: memref<5x32x168xf32, #tpu.memory_space<vmem>>, %arg3: memref<16x28xf32, #tpu.memory_space<vmem>>, %arg4: memref<16x28xf32, #tpu.memory_space<vmem>>, %arg5: memref<168x84xf32, #tpu.memory_space<vmem>>, %arg6: memref<168x84xf32, #tpu.memory_space<vmem>>, %arg7: memref<1x84xf32, #tpu.memory_space<vmem>>, %arg8: memref<3x84x192xf32, #tpu.memory_space<vmem>>, %arg9: memref<8x12xf32, #tpu.memory_space<vmem>>, %arg10: memref<8x12xf32, #tpu.memory_space<vmem>>, %arg11: memref<192x96xf32, #tpu.memory_space<vmem>>, %arg12: memref<192x96xf32, #tpu.memory_space<vmem>>, %arg13: memref<1x96xf32, #tpu.memory_space<vmem>>, %arg14: memref<6x8x64xf32, #tpu.memory_space<vmem>>, %arg15: memref<6x96x120xf32, #tpu.memory_space<vmem>>, %arg16: memref<1x120xf32, #tpu.memory_space<vmem>>, %arg17: memref<120x84xf32, #tpu.memory_space<vmem>>, %arg18: memref<1x84xf32, #tpu.memory_space<vmem>>, %arg19: memref<84x128xf32, #tpu.memory_space<vmem>>, %arg20: memref<1x128xf32, #tpu.memory_space<vmem>>, %arg21: memref<8x128xf32, #tpu.memory_space<vmem>>) attributes {dimension_semantics = [#tpu.dimension_semantics<parallel>], iteration_bounds = array<i64: 1>, scalar_prefetch = 0 : i64, scratch_operands = 0 : i64, tpu.core_type = #tpu.core_type<tc>, window_params = [{transform_indices = @transform_0, window_bounds = array<i64: 256, 32>}, {pipeline_mode = #tpu.pipeline_mode<synchronous>, transform_indices = @transform_1, window_bounds = array<i64: 5, 32, 168>}, {pipeline_mode = #tpu.pipeline_mode<synchronous>, transform_indices = @transform_2, window_bounds = array<i64: 16, 28>}, {pipeline_mode = #tpu.pipeline_mode<synchronous>, transform_indices = @transform_3, window_bounds = array<i64: 16, 28>}, {pipeline_mode = #tpu.pipeline_mode<synchronous>, transform_indices = @transform_4, window_bounds = array<i64: 168, 84>}, {pipeline_mode = #tpu.pipeline_mode<synchronous>, transform_indices = @transform_5, window_bounds = array<i64: 168, 84>}, {pipeline_mode = #tpu.pipeline_mode<synchronous>, transform_indices = @transform_6, window_bounds = array<i64: 1, 84>}, {pipeline_mode = #tpu.pipeline_mode<synchronous>, transform_indices = @transform_7, window_bounds = array<i64: 3, 84, 192>}, {pipeline_mode = #tpu.pipeline_mode<synchronous>, transform_indices = @transform_8, window_bounds = array<i64: 8, 12>}, {pipeline_mode = #tpu.pipeline_mode<synchronous>, transform_indices = @transform_9, window_bounds = array<i64: 8, 12>}, {pipeline_mode = #tpu.pipeline_mode<synchronous>, transform_indices = @transform_10, window_bounds = array<i64: 192, 96>}, {pipeline_mode = #tpu.pipeline_mode<synchronous>, transform_indices = @transform_11, window_bounds = array<i64: 192, 96>}, {pipeline_mode = #tpu.pipeline_mode<synchronous>, transform_indices = @transform_12, window_bounds = array<i64: 1, 96>}, {pipeline_mode = #tpu.pipeline_mode<synchronous>, transform_indices = @transform_13, window_bounds = array<i64: 6, 8, 64>}, {pipeline_mode = #tpu.pipeline_mode<synchronous>, transform_indices = @transform_14, window_bounds = array<i64: 6, 96, 120>}, {pipeline_mode = #tpu.pipeline_mode<synchronous>, transform_indices = @transform_15, window_bounds = array<i64: 1, 120>}, {pipeline_mode = #tpu.pipeline_mode<synchronous>, transform_indices = @transform_16, window_bounds = array<i64: 120, 84>}, {pipeline_mode = #tpu.pipeline_mode<synchronous>, transform_indices = @transform_17, window_bounds = array<i64: 1, 84>}, {pipeline_mode = #tpu.pipeline_mode<synchronous>, transform_indices = @transform_18, window_bounds = array<i64: 84, 128>}, {pipeline_mode = #tpu.pipeline_mode<synchronous>, transform_indices = @transform_19, window_bounds = array<i64: 1, 128>}, {transform_indices = @transform_20, window_bounds = array<i64: 8, 128>}]} {
    %c0 = arith.constant 0 : index
    %c0_0 = arith.constant 0 : index
    %0 = vector.load %arg1[%c0, %c0_0] : memref<256x32xf32, #tpu.memory_space<vmem>>, vector<256x32xf32>
    %c0_1 = arith.constant 0 : index
    %c0_2 = arith.constant 0 : index
    %c0_3 = arith.constant 0 : index
    %1 = vector.load %arg2[%c0_1, %c0_2, %c0_3] : memref<5x32x168xf32, #tpu.memory_space<vmem>>, vector<1x32x168xf32>
    %2 = vector.shape_cast %1 : vector<1x32x168xf32> to vector<32x168xf32>
    %cst = arith.constant dense<0.000000e+00> : vector<256x168xf32>
    %3 = tpu.matmul %0, %2, %cst {dimension_numbers = #tpu.dot_dimension_numbers<[1], [0], [0], [1], [0, 0, 1, 1], [], []>} : vector<256x32xf32>, vector<32x168xf32>, vector<256x168xf32> -> vector<256x168xf32>
    %4 = vector.shape_cast %3 : vector<256x168xf32> to vector<8x32x168xf32>
    %5 = vector.extract_strided_slice %4 {offsets = [0, 0, 0], sizes = [8, 28, 168], strides = [1, 1, 1]} : vector<8x32x168xf32> to vector<8x28x168xf32>
    %c1 = arith.constant 1 : index
    %c0_4 = arith.constant 0 : index
    %c0_5 = arith.constant 0 : index
    %6 = vector.load %arg2[%c1, %c0_4, %c0_5] : memref<5x32x168xf32, #tpu.memory_space<vmem>>, vector<1x32x168xf32>
    %7 = vector.shape_cast %6 : vector<1x32x168xf32> to vector<32x168xf32>
    %cst_6 = arith.constant dense<0.000000e+00> : vector<256x168xf32>
    %8 = tpu.matmul %0, %7, %cst_6 {dimension_numbers = #tpu.dot_dimension_numbers<[1], [0], [0], [1], [0, 0, 1, 1], [], []>} : vector<256x32xf32>, vector<32x168xf32>, vector<256x168xf32> -> vector<256x168xf32>
    %9 = vector.shape_cast %8 : vector<256x168xf32> to vector<8x32x168xf32>
    %10 = vector.extract_strided_slice %9 {offsets = [0, 1, 0], sizes = [8, 28, 168], strides = [1, 1, 1]} : vector<8x32x168xf32> to vector<8x28x168xf32>
    %11 = arith.addf %5, %10 : vector<8x28x168xf32>
    %c2 = arith.constant 2 : index
    %c0_7 = arith.constant 0 : index
    %c0_8 = arith.constant 0 : index
    %12 = vector.load %arg2[%c2, %c0_7, %c0_8] : memref<5x32x168xf32, #tpu.memory_space<vmem>>, vector<1x32x168xf32>
    %13 = vector.shape_cast %12 : vector<1x32x168xf32> to vector<32x168xf32>
    %cst_9 = arith.constant dense<0.000000e+00> : vector<256x168xf32>
    %14 = tpu.matmul %0, %13, %cst_9 {dimension_numbers = #tpu.dot_dimension_numbers<[1], [0], [0], [1], [0, 0, 1, 1], [], []>} : vector<256x32xf32>, vector<32x168xf32>, vector<256x168xf32> -> vector<256x168xf32>
    %15 = vector.shape_cast %14 : vector<256x168xf32> to vector<8x32x168xf32>
    %16 = vector.extract_strided_slice %15 {offsets = [0, 2, 0], sizes = [8, 28, 168], strides = [1, 1, 1]} : vector<8x32x168xf32> to vector<8x28x168xf32>
    %17 = arith.addf %11, %16 : vector<8x28x168xf32>
    %c3 = arith.constant 3 : index
    %c0_10 = arith.constant 0 : index
    %c0_11 = arith.constant 0 : index
    %18 = vector.load %arg2[%c3, %c0_10, %c0_11] : memref<5x32x168xf32, #tpu.memory_space<vmem>>, vector<1x32x168xf32>
    %19 = vector.shape_cast %18 : vector<1x32x168xf32> to vector<32x168xf32>
    %cst_12 = arith.constant dense<0.000000e+00> : vector<256x168xf32>
    %20 = tpu.matmul %0, %19, %cst_12 {dimension_numbers = #tpu.dot_dimension_numbers<[1], [0], [0], [1], [0, 0, 1, 1], [], []>} : vector<256x32xf32>, vector<32x168xf32>, vector<256x168xf32> -> vector<256x168xf32>
    %21 = vector.shape_cast %20 : vector<256x168xf32> to vector<8x32x168xf32>
    %22 = vector.extract_strided_slice %21 {offsets = [0, 3, 0], sizes = [8, 28, 168], strides = [1, 1, 1]} : vector<8x32x168xf32> to vector<8x28x168xf32>
    %23 = arith.addf %17, %22 : vector<8x28x168xf32>
    %c4 = arith.constant 4 : index
    %c0_13 = arith.constant 0 : index
    %c0_14 = arith.constant 0 : index
    %24 = vector.load %arg2[%c4, %c0_13, %c0_14] : memref<5x32x168xf32, #tpu.memory_space<vmem>>, vector<1x32x168xf32>
    %25 = vector.shape_cast %24 : vector<1x32x168xf32> to vector<32x168xf32>
    %cst_15 = arith.constant dense<0.000000e+00> : vector<256x168xf32>
    %26 = tpu.matmul %0, %25, %cst_15 {dimension_numbers = #tpu.dot_dimension_numbers<[1], [0], [0], [1], [0, 0, 1, 1], [], []>} : vector<256x32xf32>, vector<32x168xf32>, vector<256x168xf32> -> vector<256x168xf32>
    %27 = vector.shape_cast %26 : vector<256x168xf32> to vector<8x32x168xf32>
    %28 = vector.extract_strided_slice %27 {offsets = [0, 4, 0], sizes = [8, 28, 168], strides = [1, 1, 1]} : vector<8x32x168xf32> to vector<8x28x168xf32>
    %29 = arith.addf %23, %28 : vector<8x28x168xf32>
    %c0_16 = arith.constant 0 : index
    %c0_17 = arith.constant 0 : index
    %30 = vector.load %arg3[%c0_16, %c0_17] : memref<16x28xf32, #tpu.memory_space<vmem>>, vector<16x28xf32>
    %c0_18 = arith.constant 0 : index
    %c0_19 = arith.constant 0 : index
    %31 = vector.load %arg4[%c0_18, %c0_19] : memref<16x28xf32, #tpu.memory_space<vmem>>, vector<16x28xf32>
    %32 = vector.extract_strided_slice %29 {offsets = [0, 0, 0], sizes = [1, 28, 168], strides = [1, 1, 1]} : vector<8x28x168xf32> to vector<1x28x168xf32>
    %33 = vector.shape_cast %32 : vector<1x28x168xf32> to vector<28x168xf32>
    %cst_20 = arith.constant dense<0.000000e+00> : vector<16x168xf32>
    %34 = tpu.matmul %30, %33, %cst_20 {dimension_numbers = #tpu.dot_dimension_numbers<[1], [0], [0], [1], [0, 0, 1, 1], [], []>} : vector<16x28xf32>, vector<28x168xf32>, vector<16x168xf32> -> vector<16x168xf32>
    %cst_21 = arith.constant dense<0.000000e+00> : vector<16x168xf32>
    %35 = tpu.matmul %31, %33, %cst_21 {dimension_numbers = #tpu.dot_dimension_numbers<[1], [0], [0], [1], [0, 0, 1, 1], [], []>} : vector<16x28xf32>, vector<28x168xf32>, vector<16x168xf32> -> vector<16x168xf32>
    %36 = arith.maximumf %34, %35 : vector<16x168xf32>
    %37 = vector.extract_strided_slice %29 {offsets = [1, 0, 0], sizes = [1, 28, 168], strides = [1, 1, 1]} : vector<8x28x168xf32> to vector<1x28x168xf32>
    %38 = vector.shape_cast %37 : vector<1x28x168xf32> to vector<28x168xf32>
    %cst_22 = arith.constant dense<0.000000e+00> : vector<16x168xf32>
    %39 = tpu.matmul %30, %38, %cst_22 {dimension_numbers = #tpu.dot_dimension_numbers<[1], [0], [0], [1], [0, 0, 1, 1], [], []>} : vector<16x28xf32>, vector<28x168xf32>, vector<16x168xf32> -> vector<16x168xf32>
    %cst_23 = arith.constant dense<0.000000e+00> : vector<16x168xf32>
    %40 = tpu.matmul %31, %38, %cst_23 {dimension_numbers = #tpu.dot_dimension_numbers<[1], [0], [0], [1], [0, 0, 1, 1], [], []>} : vector<16x28xf32>, vector<28x168xf32>, vector<16x168xf32> -> vector<16x168xf32>
    %41 = arith.maximumf %39, %40 : vector<16x168xf32>
    %42 = vector.extract_strided_slice %29 {offsets = [2, 0, 0], sizes = [1, 28, 168], strides = [1, 1, 1]} : vector<8x28x168xf32> to vector<1x28x168xf32>
    %43 = vector.shape_cast %42 : vector<1x28x168xf32> to vector<28x168xf32>
    %cst_24 = arith.constant dense<0.000000e+00> : vector<16x168xf32>
    %44 = tpu.matmul %30, %43, %cst_24 {dimension_numbers = #tpu.dot_dimension_numbers<[1], [0], [0], [1], [0, 0, 1, 1], [], []>} : vector<16x28xf32>, vector<28x168xf32>, vector<16x168xf32> -> vector<16x168xf32>
    %cst_25 = arith.constant dense<0.000000e+00> : vector<16x168xf32>
    %45 = tpu.matmul %31, %43, %cst_25 {dimension_numbers = #tpu.dot_dimension_numbers<[1], [0], [0], [1], [0, 0, 1, 1], [], []>} : vector<16x28xf32>, vector<28x168xf32>, vector<16x168xf32> -> vector<16x168xf32>
    %46 = arith.maximumf %44, %45 : vector<16x168xf32>
    %47 = vector.extract_strided_slice %29 {offsets = [3, 0, 0], sizes = [1, 28, 168], strides = [1, 1, 1]} : vector<8x28x168xf32> to vector<1x28x168xf32>
    %48 = vector.shape_cast %47 : vector<1x28x168xf32> to vector<28x168xf32>
    %cst_26 = arith.constant dense<0.000000e+00> : vector<16x168xf32>
    %49 = tpu.matmul %30, %48, %cst_26 {dimension_numbers = #tpu.dot_dimension_numbers<[1], [0], [0], [1], [0, 0, 1, 1], [], []>} : vector<16x28xf32>, vector<28x168xf32>, vector<16x168xf32> -> vector<16x168xf32>
    %cst_27 = arith.constant dense<0.000000e+00> : vector<16x168xf32>
    %50 = tpu.matmul %31, %48, %cst_27 {dimension_numbers = #tpu.dot_dimension_numbers<[1], [0], [0], [1], [0, 0, 1, 1], [], []>} : vector<16x28xf32>, vector<28x168xf32>, vector<16x168xf32> -> vector<16x168xf32>
    %51 = arith.maximumf %49, %50 : vector<16x168xf32>
    %52 = vector.extract_strided_slice %29 {offsets = [4, 0, 0], sizes = [1, 28, 168], strides = [1, 1, 1]} : vector<8x28x168xf32> to vector<1x28x168xf32>
    %53 = vector.shape_cast %52 : vector<1x28x168xf32> to vector<28x168xf32>
    %cst_28 = arith.constant dense<0.000000e+00> : vector<16x168xf32>
    %54 = tpu.matmul %30, %53, %cst_28 {dimension_numbers = #tpu.dot_dimension_numbers<[1], [0], [0], [1], [0, 0, 1, 1], [], []>} : vector<16x28xf32>, vector<28x168xf32>, vector<16x168xf32> -> vector<16x168xf32>
    %cst_29 = arith.constant dense<0.000000e+00> : vector<16x168xf32>
    %55 = tpu.matmul %31, %53, %cst_29 {dimension_numbers = #tpu.dot_dimension_numbers<[1], [0], [0], [1], [0, 0, 1, 1], [], []>} : vector<16x28xf32>, vector<28x168xf32>, vector<16x168xf32> -> vector<16x168xf32>
    %56 = arith.maximumf %54, %55 : vector<16x168xf32>
    %57 = vector.extract_strided_slice %29 {offsets = [5, 0, 0], sizes = [1, 28, 168], strides = [1, 1, 1]} : vector<8x28x168xf32> to vector<1x28x168xf32>
    %58 = vector.shape_cast %57 : vector<1x28x168xf32> to vector<28x168xf32>
    %cst_30 = arith.constant dense<0.000000e+00> : vector<16x168xf32>
    %59 = tpu.matmul %30, %58, %cst_30 {dimension_numbers = #tpu.dot_dimension_numbers<[1], [0], [0], [1], [0, 0, 1, 1], [], []>} : vector<16x28xf32>, vector<28x168xf32>, vector<16x168xf32> -> vector<16x168xf32>
    %cst_31 = arith.constant dense<0.000000e+00> : vector<16x168xf32>
    %60 = tpu.matmul %31, %58, %cst_31 {dimension_numbers = #tpu.dot_dimension_numbers<[1], [0], [0], [1], [0, 0, 1, 1], [], []>} : vector<16x28xf32>, vector<28x168xf32>, vector<16x168xf32> -> vector<16x168xf32>
    %61 = arith.maximumf %59, %60 : vector<16x168xf32>
    %62 = vector.extract_strided_slice %29 {offsets = [6, 0, 0], sizes = [1, 28, 168], strides = [1, 1, 1]} : vector<8x28x168xf32> to vector<1x28x168xf32>
    %63 = vector.shape_cast %62 : vector<1x28x168xf32> to vector<28x168xf32>
    %cst_32 = arith.constant dense<0.000000e+00> : vector<16x168xf32>
    %64 = tpu.matmul %30, %63, %cst_32 {dimension_numbers = #tpu.dot_dimension_numbers<[1], [0], [0], [1], [0, 0, 1, 1], [], []>} : vector<16x28xf32>, vector<28x168xf32>, vector<16x168xf32> -> vector<16x168xf32>
    %cst_33 = arith.constant dense<0.000000e+00> : vector<16x168xf32>
    %65 = tpu.matmul %31, %63, %cst_33 {dimension_numbers = #tpu.dot_dimension_numbers<[1], [0], [0], [1], [0, 0, 1, 1], [], []>} : vector<16x28xf32>, vector<28x168xf32>, vector<16x168xf32> -> vector<16x168xf32>
    %66 = arith.maximumf %64, %65 : vector<16x168xf32>
    %67 = vector.extract_strided_slice %29 {offsets = [7, 0, 0], sizes = [1, 28, 168], strides = [1, 1, 1]} : vector<8x28x168xf32> to vector<1x28x168xf32>
    %68 = vector.shape_cast %67 : vector<1x28x168xf32> to vector<28x168xf32>
    %cst_34 = arith.constant dense<0.000000e+00> : vector<16x168xf32>
    %69 = tpu.matmul %30, %68, %cst_34 {dimension_numbers = #tpu.dot_dimension_numbers<[1], [0], [0], [1], [0, 0, 1, 1], [], []>} : vector<16x28xf32>, vector<28x168xf32>, vector<16x168xf32> -> vector<16x168xf32>
    %cst_35 = arith.constant dense<0.000000e+00> : vector<16x168xf32>
    %70 = tpu.matmul %31, %68, %cst_35 {dimension_numbers = #tpu.dot_dimension_numbers<[1], [0], [0], [1], [0, 0, 1, 1], [], []>} : vector<16x28xf32>, vector<28x168xf32>, vector<16x168xf32> -> vector<16x168xf32>
    %71 = arith.maximumf %69, %70 : vector<16x168xf32>
    %72 = vector.shape_cast %36 : vector<16x168xf32> to vector<1x16x168xf32>
    %73 = vector.shape_cast %41 : vector<16x168xf32> to vector<1x16x168xf32>
    %74 = vector.shape_cast %46 : vector<16x168xf32> to vector<1x16x168xf32>
    %75 = vector.shape_cast %51 : vector<16x168xf32> to vector<1x16x168xf32>
    %76 = vector.shape_cast %56 : vector<16x168xf32> to vector<1x16x168xf32>
    %77 = vector.shape_cast %61 : vector<16x168xf32> to vector<1x16x168xf32>
    %78 = vector.shape_cast %66 : vector<16x168xf32> to vector<1x16x168xf32>
    %79 = vector.shape_cast %71 : vector<16x168xf32> to vector<1x16x168xf32>
    %80 = tpu.concatenate %72, %73, %74, %75, %76, %77, %78, %79 in 0 : vector<1x16x168xf32>, vector<1x16x168xf32>, vector<1x16x168xf32>, vector<1x16x168xf32>, vector<1x16x168xf32>, vector<1x16x168xf32>, vector<1x16x168xf32>, vector<1x16x168xf32> -> vector<8x16x168xf32>
    %81 = vector.shape_cast %80 : vector<8x16x168xf32> to vector<128x168xf32>
    %c0_36 = arith.constant 0 : index
    %c0_37 = arith.constant 0 : index
    %82 = vector.load %arg5[%c0_36, %c0_37] : memref<168x84xf32, #tpu.memory_space<vmem>>, vector<168x84xf32>
    %cst_38 = arith.constant dense<0.000000e+00> : vector<128x84xf32>
    %83 = tpu.matmul %81, %82, %cst_38 {dimension_numbers = #tpu.dot_dimension_numbers<[1], [0], [0], [1], [0, 0, 1, 1], [], []>} : vector<128x168xf32>, vector<168x84xf32>, vector<128x84xf32> -> vector<128x84xf32>
    %c0_39 = arith.constant 0 : index
    %c0_40 = arith.constant 0 : index
    %84 = vector.load %arg6[%c0_39, %c0_40] : memref<168x84xf32, #tpu.memory_space<vmem>>, vector<168x84xf32>
    %cst_41 = arith.constant dense<0.000000e+00> : vector<128x84xf32>
    %85 = tpu.matmul %81, %84, %cst_41 {dimension_numbers = #tpu.dot_dimension_numbers<[1], [0], [0], [1], [0, 0, 1, 1], [], []>} : vector<128x168xf32>, vector<168x84xf32>, vector<128x84xf32> -> vector<128x84xf32>
    %86 = arith.maximumf %83, %85 : vector<128x84xf32>
    %c0_42 = arith.constant 0 : index
    %c0_43 = arith.constant 0 : index
    %87 = vector.load %arg7[%c0_42, %c0_43] : memref<1x84xf32, #tpu.memory_space<vmem>>, vector<1x84xf32>
    %88 = vector.broadcast %87 : vector<1x84xf32> to vector<128x84xf32>
    %89 = arith.addf %86, %88 : vector<128x84xf32>
    %cst_44 = arith.constant 0.000000e+00 : f32
    %90 = vector.broadcast %cst_44 : f32 to vector<128x84xf32>
    %91 = arith.maximumf %89, %90 : vector<128x84xf32>
    %c0_45 = arith.constant 0 : index
    %c0_46 = arith.constant 0 : index
    %c0_47 = arith.constant 0 : index
    %92 = vector.load %arg8[%c0_45, %c0_46, %c0_47] : memref<3x84x192xf32, #tpu.memory_space<vmem>>, vector<1x84x192xf32>
    %93 = vector.shape_cast %92 : vector<1x84x192xf32> to vector<84x192xf32>
    %cst_48 = arith.constant dense<0.000000e+00> : vector<128x192xf32>
    %94 = tpu.matmul %91, %93, %cst_48 {dimension_numbers = #tpu.dot_dimension_numbers<[1], [0], [0], [1], [0, 0, 1, 1], [], []>} : vector<128x84xf32>, vector<84x192xf32>, vector<128x192xf32> -> vector<128x192xf32>
    %95 = vector.shape_cast %94 : vector<128x192xf32> to vector<8x16x192xf32>
    %96 = vector.extract_strided_slice %95 {offsets = [0, 0, 0], sizes = [8, 12, 192], strides = [1, 1, 1]} : vector<8x16x192xf32> to vector<8x12x192xf32>
    %c1_49 = arith.constant 1 : index
    %c0_50 = arith.constant 0 : index
    %c0_51 = arith.constant 0 : index
    %97 = vector.load %arg8[%c1_49, %c0_50, %c0_51] : memref<3x84x192xf32, #tpu.memory_space<vmem>>, vector<1x84x192xf32>
    %98 = vector.shape_cast %97 : vector<1x84x192xf32> to vector<84x192xf32>
    %cst_52 = arith.constant dense<0.000000e+00> : vector<128x192xf32>
    %99 = tpu.matmul %91, %98, %cst_52 {dimension_numbers = #tpu.dot_dimension_numbers<[1], [0], [0], [1], [0, 0, 1, 1], [], []>} : vector<128x84xf32>, vector<84x192xf32>, vector<128x192xf32> -> vector<128x192xf32>
    %100 = vector.shape_cast %99 : vector<128x192xf32> to vector<8x16x192xf32>
    %101 = vector.extract_strided_slice %100 {offsets = [0, 1, 0], sizes = [8, 12, 192], strides = [1, 1, 1]} : vector<8x16x192xf32> to vector<8x12x192xf32>
    %102 = arith.addf %96, %101 : vector<8x12x192xf32>
    %c2_53 = arith.constant 2 : index
    %c0_54 = arith.constant 0 : index
    %c0_55 = arith.constant 0 : index
    %103 = vector.load %arg8[%c2_53, %c0_54, %c0_55] : memref<3x84x192xf32, #tpu.memory_space<vmem>>, vector<1x84x192xf32>
    %104 = vector.shape_cast %103 : vector<1x84x192xf32> to vector<84x192xf32>
    %cst_56 = arith.constant dense<0.000000e+00> : vector<128x192xf32>
    %105 = tpu.matmul %91, %104, %cst_56 {dimension_numbers = #tpu.dot_dimension_numbers<[1], [0], [0], [1], [0, 0, 1, 1], [], []>} : vector<128x84xf32>, vector<84x192xf32>, vector<128x192xf32> -> vector<128x192xf32>
    %106 = vector.shape_cast %105 : vector<128x192xf32> to vector<8x16x192xf32>
    %107 = vector.extract_strided_slice %106 {offsets = [0, 2, 0], sizes = [8, 12, 192], strides = [1, 1, 1]} : vector<8x16x192xf32> to vector<8x12x192xf32>
    %108 = arith.addf %102, %107 : vector<8x12x192xf32>
    %c0_57 = arith.constant 0 : index
    %c0_58 = arith.constant 0 : index
    %109 = vector.load %arg9[%c0_57, %c0_58] : memref<8x12xf32, #tpu.memory_space<vmem>>, vector<8x12xf32>
    %c0_59 = arith.constant 0 : index
    %c0_60 = arith.constant 0 : index
    %110 = vector.load %arg10[%c0_59, %c0_60] : memref<8x12xf32, #tpu.memory_space<vmem>>, vector<8x12xf32>
    %111 = vector.extract_strided_slice %108 {offsets = [0, 0, 0], sizes = [1, 12, 192], strides = [1, 1, 1]} : vector<8x12x192xf32> to vector<1x12x192xf32>
    %112 = vector.shape_cast %111 : vector<1x12x192xf32> to vector<12x192xf32>
    %cst_61 = arith.constant dense<0.000000e+00> : vector<8x192xf32>
    %113 = tpu.matmul %109, %112, %cst_61 {dimension_numbers = #tpu.dot_dimension_numbers<[1], [0], [0], [1], [0, 0, 1, 1], [], []>} : vector<8x12xf32>, vector<12x192xf32>, vector<8x192xf32> -> vector<8x192xf32>
    %cst_62 = arith.constant dense<0.000000e+00> : vector<8x192xf32>
    %114 = tpu.matmul %110, %112, %cst_62 {dimension_numbers = #tpu.dot_dimension_numbers<[1], [0], [0], [1], [0, 0, 1, 1], [], []>} : vector<8x12xf32>, vector<12x192xf32>, vector<8x192xf32> -> vector<8x192xf32>
    %115 = arith.maximumf %113, %114 : vector<8x192xf32>
    %116 = vector.extract_strided_slice %108 {offsets = [1, 0, 0], sizes = [1, 12, 192], strides = [1, 1, 1]} : vector<8x12x192xf32> to vector<1x12x192xf32>
    %117 = vector.shape_cast %116 : vector<1x12x192xf32> to vector<12x192xf32>
    %cst_63 = arith.constant dense<0.000000e+00> : vector<8x192xf32>
    %118 = tpu.matmul %109, %117, %cst_63 {dimension_numbers = #tpu.dot_dimension_numbers<[1], [0], [0], [1], [0, 0, 1, 1], [], []>} : vector<8x12xf32>, vector<12x192xf32>, vector<8x192xf32> -> vector<8x192xf32>
    %cst_64 = arith.constant dense<0.000000e+00> : vector<8x192xf32>
    %119 = tpu.matmul %110, %117, %cst_64 {dimension_numbers = #tpu.dot_dimension_numbers<[1], [0], [0], [1], [0, 0, 1, 1], [], []>} : vector<8x12xf32>, vector<12x192xf32>, vector<8x192xf32> -> vector<8x192xf32>
    %120 = arith.maximumf %118, %119 : vector<8x192xf32>
    %121 = vector.extract_strided_slice %108 {offsets = [2, 0, 0], sizes = [1, 12, 192], strides = [1, 1, 1]} : vector<8x12x192xf32> to vector<1x12x192xf32>
    %122 = vector.shape_cast %121 : vector<1x12x192xf32> to vector<12x192xf32>
    %cst_65 = arith.constant dense<0.000000e+00> : vector<8x192xf32>
    %123 = tpu.matmul %109, %122, %cst_65 {dimension_numbers = #tpu.dot_dimension_numbers<[1], [0], [0], [1], [0, 0, 1, 1], [], []>} : vector<8x12xf32>, vector<12x192xf32>, vector<8x192xf32> -> vector<8x192xf32>
    %cst_66 = arith.constant dense<0.000000e+00> : vector<8x192xf32>
    %124 = tpu.matmul %110, %122, %cst_66 {dimension_numbers = #tpu.dot_dimension_numbers<[1], [0], [0], [1], [0, 0, 1, 1], [], []>} : vector<8x12xf32>, vector<12x192xf32>, vector<8x192xf32> -> vector<8x192xf32>
    %125 = arith.maximumf %123, %124 : vector<8x192xf32>
    %126 = vector.extract_strided_slice %108 {offsets = [3, 0, 0], sizes = [1, 12, 192], strides = [1, 1, 1]} : vector<8x12x192xf32> to vector<1x12x192xf32>
    %127 = vector.shape_cast %126 : vector<1x12x192xf32> to vector<12x192xf32>
    %cst_67 = arith.constant dense<0.000000e+00> : vector<8x192xf32>
    %128 = tpu.matmul %109, %127, %cst_67 {dimension_numbers = #tpu.dot_dimension_numbers<[1], [0], [0], [1], [0, 0, 1, 1], [], []>} : vector<8x12xf32>, vector<12x192xf32>, vector<8x192xf32> -> vector<8x192xf32>
    %cst_68 = arith.constant dense<0.000000e+00> : vector<8x192xf32>
    %129 = tpu.matmul %110, %127, %cst_68 {dimension_numbers = #tpu.dot_dimension_numbers<[1], [0], [0], [1], [0, 0, 1, 1], [], []>} : vector<8x12xf32>, vector<12x192xf32>, vector<8x192xf32> -> vector<8x192xf32>
    %130 = arith.maximumf %128, %129 : vector<8x192xf32>
    %131 = vector.extract_strided_slice %108 {offsets = [4, 0, 0], sizes = [1, 12, 192], strides = [1, 1, 1]} : vector<8x12x192xf32> to vector<1x12x192xf32>
    %132 = vector.shape_cast %131 : vector<1x12x192xf32> to vector<12x192xf32>
    %cst_69 = arith.constant dense<0.000000e+00> : vector<8x192xf32>
    %133 = tpu.matmul %109, %132, %cst_69 {dimension_numbers = #tpu.dot_dimension_numbers<[1], [0], [0], [1], [0, 0, 1, 1], [], []>} : vector<8x12xf32>, vector<12x192xf32>, vector<8x192xf32> -> vector<8x192xf32>
    %cst_70 = arith.constant dense<0.000000e+00> : vector<8x192xf32>
    %134 = tpu.matmul %110, %132, %cst_70 {dimension_numbers = #tpu.dot_dimension_numbers<[1], [0], [0], [1], [0, 0, 1, 1], [], []>} : vector<8x12xf32>, vector<12x192xf32>, vector<8x192xf32> -> vector<8x192xf32>
    %135 = arith.maximumf %133, %134 : vector<8x192xf32>
    %136 = vector.extract_strided_slice %108 {offsets = [5, 0, 0], sizes = [1, 12, 192], strides = [1, 1, 1]} : vector<8x12x192xf32> to vector<1x12x192xf32>
    %137 = vector.shape_cast %136 : vector<1x12x192xf32> to vector<12x192xf32>
    %cst_71 = arith.constant dense<0.000000e+00> : vector<8x192xf32>
    %138 = tpu.matmul %109, %137, %cst_71 {dimension_numbers = #tpu.dot_dimension_numbers<[1], [0], [0], [1], [0, 0, 1, 1], [], []>} : vector<8x12xf32>, vector<12x192xf32>, vector<8x192xf32> -> vector<8x192xf32>
    %cst_72 = arith.constant dense<0.000000e+00> : vector<8x192xf32>
    %139 = tpu.matmul %110, %137, %cst_72 {dimension_numbers = #tpu.dot_dimension_numbers<[1], [0], [0], [1], [0, 0, 1, 1], [], []>} : vector<8x12xf32>, vector<12x192xf32>, vector<8x192xf32> -> vector<8x192xf32>
    %140 = arith.maximumf %138, %139 : vector<8x192xf32>
    %141 = vector.extract_strided_slice %108 {offsets = [6, 0, 0], sizes = [1, 12, 192], strides = [1, 1, 1]} : vector<8x12x192xf32> to vector<1x12x192xf32>
    %142 = vector.shape_cast %141 : vector<1x12x192xf32> to vector<12x192xf32>
    %cst_73 = arith.constant dense<0.000000e+00> : vector<8x192xf32>
    %143 = tpu.matmul %109, %142, %cst_73 {dimension_numbers = #tpu.dot_dimension_numbers<[1], [0], [0], [1], [0, 0, 1, 1], [], []>} : vector<8x12xf32>, vector<12x192xf32>, vector<8x192xf32> -> vector<8x192xf32>
    %cst_74 = arith.constant dense<0.000000e+00> : vector<8x192xf32>
    %144 = tpu.matmul %110, %142, %cst_74 {dimension_numbers = #tpu.dot_dimension_numbers<[1], [0], [0], [1], [0, 0, 1, 1], [], []>} : vector<8x12xf32>, vector<12x192xf32>, vector<8x192xf32> -> vector<8x192xf32>
    %145 = arith.maximumf %143, %144 : vector<8x192xf32>
    %146 = vector.extract_strided_slice %108 {offsets = [7, 0, 0], sizes = [1, 12, 192], strides = [1, 1, 1]} : vector<8x12x192xf32> to vector<1x12x192xf32>
    %147 = vector.shape_cast %146 : vector<1x12x192xf32> to vector<12x192xf32>
    %cst_75 = arith.constant dense<0.000000e+00> : vector<8x192xf32>
    %148 = tpu.matmul %109, %147, %cst_75 {dimension_numbers = #tpu.dot_dimension_numbers<[1], [0], [0], [1], [0, 0, 1, 1], [], []>} : vector<8x12xf32>, vector<12x192xf32>, vector<8x192xf32> -> vector<8x192xf32>
    %cst_76 = arith.constant dense<0.000000e+00> : vector<8x192xf32>
    %149 = tpu.matmul %110, %147, %cst_76 {dimension_numbers = #tpu.dot_dimension_numbers<[1], [0], [0], [1], [0, 0, 1, 1], [], []>} : vector<8x12xf32>, vector<12x192xf32>, vector<8x192xf32> -> vector<8x192xf32>
    %150 = arith.maximumf %148, %149 : vector<8x192xf32>
    %151 = vector.shape_cast %115 : vector<8x192xf32> to vector<1x8x192xf32>
    %152 = vector.shape_cast %120 : vector<8x192xf32> to vector<1x8x192xf32>
    %153 = vector.shape_cast %125 : vector<8x192xf32> to vector<1x8x192xf32>
    %154 = vector.shape_cast %130 : vector<8x192xf32> to vector<1x8x192xf32>
    %155 = vector.shape_cast %135 : vector<8x192xf32> to vector<1x8x192xf32>
    %156 = vector.shape_cast %140 : vector<8x192xf32> to vector<1x8x192xf32>
    %157 = vector.shape_cast %145 : vector<8x192xf32> to vector<1x8x192xf32>
    %158 = vector.shape_cast %150 : vector<8x192xf32> to vector<1x8x192xf32>
    %159 = tpu.concatenate %151, %152, %153, %154, %155, %156, %157, %158 in 0 : vector<1x8x192xf32>, vector<1x8x192xf32>, vector<1x8x192xf32>, vector<1x8x192xf32>, vector<1x8x192xf32>, vector<1x8x192xf32>, vector<1x8x192xf32>, vector<1x8x192xf32> -> vector<8x8x192xf32>
    %160 = vector.shape_cast %159 : vector<8x8x192xf32> to vector<64x192xf32>
    %c0_77 = arith.constant 0 : index
    %c0_78 = arith.constant 0 : index
    %161 = vector.load %arg11[%c0_77, %c0_78] : memref<192x96xf32, #tpu.memory_space<vmem>>, vector<192x96xf32>
    %cst_79 = arith.constant dense<0.000000e+00> : vector<64x96xf32>
    %162 = tpu.matmul %160, %161, %cst_79 {dimension_numbers = #tpu.dot_dimension_numbers<[1], [0], [0], [1], [0, 0, 1, 1], [], []>} : vector<64x192xf32>, vector<192x96xf32>, vector<64x96xf32> -> vector<64x96xf32>
    %c0_80 = arith.constant 0 : index
    %c0_81 = arith.constant 0 : index
    %163 = vector.load %arg12[%c0_80, %c0_81] : memref<192x96xf32, #tpu.memory_space<vmem>>, vector<192x96xf32>
    %cst_82 = arith.constant dense<0.000000e+00> : vector<64x96xf32>
    %164 = tpu.matmul %160, %163, %cst_82 {dimension_numbers = #tpu.dot_dimension_numbers<[1], [0], [0], [1], [0, 0, 1, 1], [], []>} : vector<64x192xf32>, vector<192x96xf32>, vector<64x96xf32> -> vector<64x96xf32>
    %165 = arith.maximumf %162, %164 : vector<64x96xf32>
    %c0_83 = arith.constant 0 : index
    %c0_84 = arith.constant 0 : index
    %166 = vector.load %arg13[%c0_83, %c0_84] : memref<1x96xf32, #tpu.memory_space<vmem>>, vector<1x96xf32>
    %167 = vector.broadcast %166 : vector<1x96xf32> to vector<64x96xf32>
    %168 = arith.addf %165, %167 : vector<64x96xf32>
    %cst_85 = arith.constant 0.000000e+00 : f32
    %169 = vector.broadcast %cst_85 : f32 to vector<64x96xf32>
    %170 = arith.maximumf %168, %169 : vector<64x96xf32>
    %c0_86 = arith.constant 0 : index
    %c0_87 = arith.constant 0 : index
    %c0_88 = arith.constant 0 : index
    %171 = vector.load %arg14[%c0_86, %c0_87, %c0_88] : memref<6x8x64xf32, #tpu.memory_space<vmem>>, vector<1x8x64xf32>
    %172 = vector.shape_cast %171 : vector<1x8x64xf32> to vector<8x64xf32>
    %cst_89 = arith.constant dense<0.000000e+00> : vector<8x96xf32>
    %173 = tpu.matmul %172, %170, %cst_89 {dimension_numbers = #tpu.dot_dimension_numbers<[1], [0], [0], [1], [0, 0, 1, 1], [], []>} : vector<8x64xf32>, vector<64x96xf32>, vector<8x96xf32> -> vector<8x96xf32>
    %c0_90 = arith.constant 0 : index
    %c0_91 = arith.constant 0 : index
    %c0_92 = arith.constant 0 : index
    %174 = vector.load %arg15[%c0_90, %c0_91, %c0_92] : memref<6x96x120xf32, #tpu.memory_space<vmem>>, vector<1x96x120xf32>
    %175 = vector.shape_cast %174 : vector<1x96x120xf32> to vector<96x120xf32>
    %cst_93 = arith.constant dense<0.000000e+00> : vector<8x120xf32>
    %176 = tpu.matmul %173, %175, %cst_93 {dimension_numbers = #tpu.dot_dimension_numbers<[1], [0], [0], [1], [0, 0, 1, 1], [], []>} : vector<8x96xf32>, vector<96x120xf32>, vector<8x120xf32> -> vector<8x120xf32>
    %c1_94 = arith.constant 1 : index
    %c0_95 = arith.constant 0 : index
    %c0_96 = arith.constant 0 : index
    %177 = vector.load %arg14[%c1_94, %c0_95, %c0_96] : memref<6x8x64xf32, #tpu.memory_space<vmem>>, vector<1x8x64xf32>
    %178 = vector.shape_cast %177 : vector<1x8x64xf32> to vector<8x64xf32>
    %cst_97 = arith.constant dense<0.000000e+00> : vector<8x96xf32>
    %179 = tpu.matmul %178, %170, %cst_97 {dimension_numbers = #tpu.dot_dimension_numbers<[1], [0], [0], [1], [0, 0, 1, 1], [], []>} : vector<8x64xf32>, vector<64x96xf32>, vector<8x96xf32> -> vector<8x96xf32>
    %c1_98 = arith.constant 1 : index
    %c0_99 = arith.constant 0 : index
    %c0_100 = arith.constant 0 : index
    %180 = vector.load %arg15[%c1_98, %c0_99, %c0_100] : memref<6x96x120xf32, #tpu.memory_space<vmem>>, vector<1x96x120xf32>
    %181 = vector.shape_cast %180 : vector<1x96x120xf32> to vector<96x120xf32>
    %cst_101 = arith.constant dense<0.000000e+00> : vector<8x120xf32>
    %182 = tpu.matmul %179, %181, %cst_101 {dimension_numbers = #tpu.dot_dimension_numbers<[1], [0], [0], [1], [0, 0, 1, 1], [], []>} : vector<8x96xf32>, vector<96x120xf32>, vector<8x120xf32> -> vector<8x120xf32>
    %183 = arith.addf %176, %182 : vector<8x120xf32>
    %c2_102 = arith.constant 2 : index
    %c0_103 = arith.constant 0 : index
    %c0_104 = arith.constant 0 : index
    %184 = vector.load %arg14[%c2_102, %c0_103, %c0_104] : memref<6x8x64xf32, #tpu.memory_space<vmem>>, vector<1x8x64xf32>
    %185 = vector.shape_cast %184 : vector<1x8x64xf32> to vector<8x64xf32>
    %cst_105 = arith.constant dense<0.000000e+00> : vector<8x96xf32>
    %186 = tpu.matmul %185, %170, %cst_105 {dimension_numbers = #tpu.dot_dimension_numbers<[1], [0], [0], [1], [0, 0, 1, 1], [], []>} : vector<8x64xf32>, vector<64x96xf32>, vector<8x96xf32> -> vector<8x96xf32>
    %c2_106 = arith.constant 2 : index
    %c0_107 = arith.constant 0 : index
    %c0_108 = arith.constant 0 : index
    %187 = vector.load %arg15[%c2_106, %c0_107, %c0_108] : memref<6x96x120xf32, #tpu.memory_space<vmem>>, vector<1x96x120xf32>
    %188 = vector.shape_cast %187 : vector<1x96x120xf32> to vector<96x120xf32>
    %cst_109 = arith.constant dense<0.000000e+00> : vector<8x120xf32>
    %189 = tpu.matmul %186, %188, %cst_109 {dimension_numbers = #tpu.dot_dimension_numbers<[1], [0], [0], [1], [0, 0, 1, 1], [], []>} : vector<8x96xf32>, vector<96x120xf32>, vector<8x120xf32> -> vector<8x120xf32>
    %190 = arith.addf %183, %189 : vector<8x120xf32>
    %c3_110 = arith.constant 3 : index
    %c0_111 = arith.constant 0 : index
    %c0_112 = arith.constant 0 : index
    %191 = vector.load %arg14[%c3_110, %c0_111, %c0_112] : memref<6x8x64xf32, #tpu.memory_space<vmem>>, vector<1x8x64xf32>
    %192 = vector.shape_cast %191 : vector<1x8x64xf32> to vector<8x64xf32>
    %cst_113 = arith.constant dense<0.000000e+00> : vector<8x96xf32>
    %193 = tpu.matmul %192, %170, %cst_113 {dimension_numbers = #tpu.dot_dimension_numbers<[1], [0], [0], [1], [0, 0, 1, 1], [], []>} : vector<8x64xf32>, vector<64x96xf32>, vector<8x96xf32> -> vector<8x96xf32>
    %c3_114 = arith.constant 3 : index
    %c0_115 = arith.constant 0 : index
    %c0_116 = arith.constant 0 : index
    %194 = vector.load %arg15[%c3_114, %c0_115, %c0_116] : memref<6x96x120xf32, #tpu.memory_space<vmem>>, vector<1x96x120xf32>
    %195 = vector.shape_cast %194 : vector<1x96x120xf32> to vector<96x120xf32>
    %cst_117 = arith.constant dense<0.000000e+00> : vector<8x120xf32>
    %196 = tpu.matmul %193, %195, %cst_117 {dimension_numbers = #tpu.dot_dimension_numbers<[1], [0], [0], [1], [0, 0, 1, 1], [], []>} : vector<8x96xf32>, vector<96x120xf32>, vector<8x120xf32> -> vector<8x120xf32>
    %197 = arith.addf %190, %196 : vector<8x120xf32>
    %c4_118 = arith.constant 4 : index
    %c0_119 = arith.constant 0 : index
    %c0_120 = arith.constant 0 : index
    %198 = vector.load %arg14[%c4_118, %c0_119, %c0_120] : memref<6x8x64xf32, #tpu.memory_space<vmem>>, vector<1x8x64xf32>
    %199 = vector.shape_cast %198 : vector<1x8x64xf32> to vector<8x64xf32>
    %cst_121 = arith.constant dense<0.000000e+00> : vector<8x96xf32>
    %200 = tpu.matmul %199, %170, %cst_121 {dimension_numbers = #tpu.dot_dimension_numbers<[1], [0], [0], [1], [0, 0, 1, 1], [], []>} : vector<8x64xf32>, vector<64x96xf32>, vector<8x96xf32> -> vector<8x96xf32>
    %c4_122 = arith.constant 4 : index
    %c0_123 = arith.constant 0 : index
    %c0_124 = arith.constant 0 : index
    %201 = vector.load %arg15[%c4_122, %c0_123, %c0_124] : memref<6x96x120xf32, #tpu.memory_space<vmem>>, vector<1x96x120xf32>
    %202 = vector.shape_cast %201 : vector<1x96x120xf32> to vector<96x120xf32>
    %cst_125 = arith.constant dense<0.000000e+00> : vector<8x120xf32>
    %203 = tpu.matmul %200, %202, %cst_125 {dimension_numbers = #tpu.dot_dimension_numbers<[1], [0], [0], [1], [0, 0, 1, 1], [], []>} : vector<8x96xf32>, vector<96x120xf32>, vector<8x120xf32> -> vector<8x120xf32>
    %204 = arith.addf %197, %203 : vector<8x120xf32>
    %c5 = arith.constant 5 : index
    %c0_126 = arith.constant 0 : index
    %c0_127 = arith.constant 0 : index
    %205 = vector.load %arg14[%c5, %c0_126, %c0_127] : memref<6x8x64xf32, #tpu.memory_space<vmem>>, vector<1x8x64xf32>
    %206 = vector.shape_cast %205 : vector<1x8x64xf32> to vector<8x64xf32>
    %cst_128 = arith.constant dense<0.000000e+00> : vector<8x96xf32>
    %207 = tpu.matmul %206, %170, %cst_128 {dimension_numbers = #tpu.dot_dimension_numbers<[1], [0], [0], [1], [0, 0, 1, 1], [], []>} : vector<8x64xf32>, vector<64x96xf32>, vector<8x96xf32> -> vector<8x96xf32>
    %c5_129 = arith.constant 5 : index
    %c0_130 = arith.constant 0 : index
    %c0_131 = arith.constant 0 : index
    %208 = vector.load %arg15[%c5_129, %c0_130, %c0_131] : memref<6x96x120xf32, #tpu.memory_space<vmem>>, vector<1x96x120xf32>
    %209 = vector.shape_cast %208 : vector<1x96x120xf32> to vector<96x120xf32>
    %cst_132 = arith.constant dense<0.000000e+00> : vector<8x120xf32>
    %210 = tpu.matmul %207, %209, %cst_132 {dimension_numbers = #tpu.dot_dimension_numbers<[1], [0], [0], [1], [0, 0, 1, 1], [], []>} : vector<8x96xf32>, vector<96x120xf32>, vector<8x120xf32> -> vector<8x120xf32>
    %211 = arith.addf %204, %210 : vector<8x120xf32>
    %c0_133 = arith.constant 0 : index
    %c0_134 = arith.constant 0 : index
    %212 = vector.load %arg16[%c0_133, %c0_134] : memref<1x120xf32, #tpu.memory_space<vmem>>, vector<1x120xf32>
    %213 = vector.broadcast %212 : vector<1x120xf32> to vector<8x120xf32>
    %214 = arith.addf %211, %213 : vector<8x120xf32>
    %cst_135 = arith.constant 0.000000e+00 : f32
    %215 = vector.broadcast %cst_135 : f32 to vector<8x120xf32>
    %216 = arith.maximumf %214, %215 : vector<8x120xf32>
    %c0_136 = arith.constant 0 : index
    %c0_137 = arith.constant 0 : index
    %217 = vector.load %arg17[%c0_136, %c0_137] : memref<120x84xf32, #tpu.memory_space<vmem>>, vector<120x84xf32>
    %cst_138 = arith.constant dense<0.000000e+00> : vector<8x84xf32>
    %218 = tpu.matmul %216, %217, %cst_138 {dimension_numbers = #tpu.dot_dimension_numbers<[1], [0], [0], [1], [0, 0, 1, 1], [], []>} : vector<8x120xf32>, vector<120x84xf32>, vector<8x84xf32> -> vector<8x84xf32>
    %c0_139 = arith.constant 0 : index
    %c0_140 = arith.constant 0 : index
    %219 = vector.load %arg18[%c0_139, %c0_140] : memref<1x84xf32, #tpu.memory_space<vmem>>, vector<1x84xf32>
    %220 = vector.broadcast %219 : vector<1x84xf32> to vector<8x84xf32>
    %221 = arith.addf %218, %220 : vector<8x84xf32>
    %cst_141 = arith.constant 0.000000e+00 : f32
    %222 = vector.broadcast %cst_141 : f32 to vector<8x84xf32>
    %223 = arith.maximumf %221, %222 : vector<8x84xf32>
    %c0_142 = arith.constant 0 : index
    %c0_143 = arith.constant 0 : index
    %224 = vector.load %arg19[%c0_142, %c0_143] : memref<84x128xf32, #tpu.memory_space<vmem>>, vector<84x128xf32>
    %cst_144 = arith.constant dense<0.000000e+00> : vector<8x128xf32>
    %225 = tpu.matmul %223, %224, %cst_144 {dimension_numbers = #tpu.dot_dimension_numbers<[1], [0], [0], [1], [0, 0, 1, 1], [], []>} : vector<8x84xf32>, vector<84x128xf32>, vector<8x128xf32> -> vector<8x128xf32>
    %c0_145 = arith.constant 0 : index
    %c0_146 = arith.constant 0 : index
    %226 = vector.load %arg20[%c0_145, %c0_146] : memref<1x128xf32, #tpu.memory_space<vmem>>, vector<1x128xf32>
    %227 = vector.broadcast %226 : vector<1x128xf32> to vector<8x128xf32>
    %228 = arith.addf %225, %227 : vector<8x128xf32>
    %c0_147 = arith.constant 0 : index
    %c0_148 = arith.constant 0 : index
    %229 = vector.load %arg21[%c0_147, %c0_148] : memref<8x128xf32, #tpu.memory_space<vmem>>, vector<8x128xf32>
    tpu.vector_store %arg21[%c0_147, %c0_148], %228 {strides = array<i32>} : memref<8x128xf32, #tpu.memory_space<vmem>>, vector<8x128xf32>,
    return
  }
  func.func @transform_0(%arg0: i32) -> (i32, i32) {
    %c0_i32 = arith.constant 0 : i32
    %c0_i32_0 = arith.constant 0 : i32
    return %arg0, %c0_i32 : i32, i32
  }
  func.func @transform_1(%arg0: i32) -> (i32, i32, i32) {
    %c0_i32 = arith.constant 0 : i32
    %c0_i32_0 = arith.constant 0 : i32
    %c0_i32_1 = arith.constant 0 : i32
    %c0_i32_2 = arith.constant 0 : i32
    return %c0_i32, %c0_i32_0, %c0_i32_1 : i32, i32, i32
  }
  func.func @transform_2(%arg0: i32) -> (i32, i32) {
    %c0_i32 = arith.constant 0 : i32
    %c0_i32_0 = arith.constant 0 : i32
    %c0_i32_1 = arith.constant 0 : i32
    return %c0_i32, %c0_i32_0 : i32, i32
  }
  func.func @transform_3(%arg0: i32) -> (i32, i32) {
    %c0_i32 = arith.constant 0 : i32
    %c0_i32_0 = arith.constant 0 : i32
    %c0_i32_1 = arith.constant 0 : i32
    return %c0_i32, %c0_i32_0 : i32, i32
  }
  func.func @transform_4(%arg0: i32) -> (i32, i32) {
    %c0_i32 = arith.constant 0 : i32
    %c0_i32_0 = arith.constant 0 : i32
    %c0_i32_1 = arith.constant 0 : i32
    return %c0_i32, %c0_i32_0 : i32, i32
  }
  func.func @transform_5(%arg0: i32) -> (i32, i32) {
    %c0_i32 = arith.constant 0 : i32
    %c0_i32_0 = arith.constant 0 : i32
    %c0_i32_1 = arith.constant 0 : i32
    return %c0_i32, %c0_i32_0 : i32, i32
  }
  func.func @transform_6(%arg0: i32) -> (i32, i32) {
    %c0_i32 = arith.constant 0 : i32
    %c0_i32_0 = arith.constant 0 : i32
    %c0_i32_1 = arith.constant 0 : i32
    return %c0_i32, %c0_i32_0 : i32, i32
  }
  func.func @transform_7(%arg0: i32) -> (i32, i32, i32) {
    %c0_i32 = arith.constant 0 : i32
    %c0_i32_0 = arith.constant 0 : i32
    %c0_i32_1 = arith.constant 0 : i32
    %c0_i32_2 = arith.constant 0 : i32
    return %c0_i32, %c0_i32_0, %c0_i32_1 : i32, i32, i32
  }
  func.func @transform_8(%arg0: i32) -> (i32, i32) {
    %c0_i32 = arith.constant 0 : i32
    %c0_i32_0 = arith.constant 0 : i32
    %c0_i32_1 = arith.constant 0 : i32
    return %c0_i32, %c0_i32_0 : i32, i32
  }
  func.func @transform_9(%arg0: i32) -> (i32, i32) {
    %c0_i32 = arith.constant 0 : i32
    %c0_i32_0 = arith.constant 0 : i32
    %c0_i32_1 = arith.constant 0 : i32
    return %c0_i32, %c0_i32_0 : i32, i32
  }
  func.func @transform_10(%arg0: i32) -> (i32, i32) {
    %c0_i32 = arith.constant 0 : i32
    %c0_i32_0 = arith.constant 0 : i32
    %c0_i32_1 = arith.constant 0 : i32
    return %c0_i32, %c0_i32_0 : i32, i32
  }
  func.func @transform_11(%arg0: i32) -> (i32, i32) {
    %c0_i32 = arith.constant 0 : i32
    %c0_i32_0 = arith.constant 0 : i32
    %c0_i32_1 = arith.constant 0 : i32
    return %c0_i32, %c0_i32_0 : i32, i32
  }
  func.func @transform_12(%arg0: i32) -> (i32, i32) {
    %c0_i32 = arith.constant 0 : i32
    %c0_i32_0 = arith.constant 0 : i32
    %c0_i32_1 = arith.constant 0 : i32
    return %c0_i32, %c0_i32_0 : i32, i32
  }
  func.func @transform_13(%arg0: i32) -> (i32, i32, i32) {
    %c0_i32 = arith.constant 0 : i32
    %c0_i32_0 = arith.constant 0 : i32
    %c0_i32_1 = arith.constant 0 : i32
    %c0_i32_2 = arith.constant 0 : i32
    return %c0_i32, %c0_i32_0, %c0_i32_1 : i32, i32, i32
  }
  func.func @transform_14(%arg0: i32) -> (i32, i32, i32) {
    %c0_i32 = arith.constant 0 : i32
    %c0_i32_0 = arith.constant 0 : i32
    %c0_i32_1 = arith.constant 0 : i32
    %c0_i32_2 = arith.constant 0 : i32
    return %c0_i32, %c0_i32_0, %c0_i32_1 : i32, i32, i32
  }
  func.func @transform_15(%arg0: i32) -> (i32, i32) {
    %c0_i32 = arith.constant 0 : i32
    %c0_i32_0 = arith.constant 0 : i32
    %c0_i32_1 = arith.constant 0 : i32
    return %c0_i32, %c0_i32_0 : i32, i32
  }
  func.func @transform_16(%arg0: i32) -> (i32, i32) {
    %c0_i32 = arith.constant 0 : i32
    %c0_i32_0 = arith.constant 0 : i32
    %c0_i32_1 = arith.constant 0 : i32
    return %c0_i32, %c0_i32_0 : i32, i32
  }
  func.func @transform_17(%arg0: i32) -> (i32, i32) {
    %c0_i32 = arith.constant 0 : i32
    %c0_i32_0 = arith.constant 0 : i32
    %c0_i32_1 = arith.constant 0 : i32
    return %c0_i32, %c0_i32_0 : i32, i32
  }
  func.func @transform_18(%arg0: i32) -> (i32, i32) {
    %c0_i32 = arith.constant 0 : i32
    %c0_i32_0 = arith.constant 0 : i32
    %c0_i32_1 = arith.constant 0 : i32
    return %c0_i32, %c0_i32_0 : i32, i32
  }
  func.func @transform_19(%arg0: i32) -> (i32, i32) {
    %c0_i32 = arith.constant 0 : i32
    %c0_i32_0 = arith.constant 0 : i32
    %c0_i32_1 = arith.constant 0 : i32
    return %c0_i32, %c0_i32_0 : i32, i32
  }
  func.func @transform_20(%arg0: i32) -> (i32, i32) {
    %c0_i32 = arith.constant 0 : i32
    %c0_i32_0 = arith.constant 0 : i32
    return %arg0, %c0_i32 : i32, i32
  }
}

</mosaic_0001>

<llo_original>
// kernel: lenet_forward.1
$region0: #{lenet_forward.1}
  #allocation0 [shape = 'u32[]', space=smem, size = 0x4, offset = 0x4, fixed_abs, tag = 'smem constant byte address 0x4 - core index']
  #allocation1 [shape = 'u32[72,128]{1,0:T(1,128)}', space=vmem, size = 0x9000, scoped, tag = 'internal scratch']
  %s0 = inlined_call_operand.vmem [shape: f32[256,32], index: 0, kind: input, shape index: {}]
  %s1 = inlined_call_operand.vmem [shape: f32[5,32,168], index: 1, kind: input, shape index: {}]
  %s2 = inlined_call_operand.hbm [shape: f32[16,28], index: 2, kind: input, shape index: {}]
  %s3 = inlined_call_operand.hbm [shape: f32[16,28], index: 3, kind: input, shape index: {}]
  %s4 = inlined_call_operand.hbm [shape: f32[168,84], index: 4, kind: input, shape index: {}]
  %s5 = inlined_call_operand.hbm [shape: f32[168,84], index: 5, kind: input, shape index: {}]
  %s6 = inlined_call_operand.vmem [shape: f32[1,84], index: 6, kind: input, shape index: {}]
  %s7 = inlined_call_operand.hbm [shape: f32[3,84,192], index: 7, kind: input, shape index: {}]
  %s8 = inlined_call_operand.vmem [shape: f32[8,12], index: 8, kind: input, shape index: {}]
  %s9 = inlined_call_operand.hbm [shape: f32[8,12], index: 9, kind: input, shape index: {}]
  %s10 = inlined_call_operand.hbm [shape: f32[192,96], index: 10, kind: input, shape index: {}]
  %s11 = inlined_call_operand.hbm [shape: f32[192,96], index: 11, kind: input, shape index: {}]
  %s12 = inlined_call_operand.vmem [shape: f32[1,96], index: 12, kind: input, shape index: {}]
  %s13 = inlined_call_operand.vmem [shape: f32[6,8,64], index: 13, kind: input, shape index: {}]
  %s14 = inlined_call_operand.hbm [shape: f32[6,96,120], index: 14, kind: input, shape index: {}]
  %s15 = inlined_call_operand.vmem [shape: f32[1,120], index: 15, kind: input, shape index: {}]
  %s16 = inlined_call_operand.vmem [shape: f32[120,84], index: 16, kind: input, shape index: {}]
  %s17 = inlined_call_operand.vmem [shape: f32[1,84], index: 17, kind: input, shape index: {}]
  %s18 = inlined_call_operand.vmem [shape: f32[84,128], index: 18, kind: input, shape index: {}]
  %s19 = inlined_call_operand.vmem [shape: f32[1,128], index: 19, kind: input, shape index: {}]
  %s20 = inlined_call_operand.vmem [shape: f32[8,128], index: 20, kind: output, shape index: {}]
  %s21 = sld [smem:[#allocation0]]
  $region126: #{lenet_forward.1} parent=0
    _
  %s23 = ssub.s32 1, %s21
  %s24 = scalar_select 0, %s23, %s21
  $region1: #{lenet_forward.1} parent=0
    #allocation2 [shape = 'u8[8192]{0}', space=vmem, size = 0x2000, scoped, tag = 'input window, operand 2, single buffered']
    #allocation3 [shape = 's32[1]{0}', space=sflag, size = 0x4, scoped, tag = 'scoped memory for lenet_forward.1']
    #allocation4 [shape = 'u8[8192]{0}', space=vmem, size = 0x2000, scoped, tag = 'input window, operand 3, single buffered']
    #allocation5 [shape = 's32[1]{0}', space=sflag, size = 0x4, scoped, tag = 'scoped memory for lenet_forward.1']
    #allocation6 [shape = 'u8[86016]{0}', space=vmem, size = 0x15000, scoped, tag = 'input window, operand 4, single buffered']
    #allocation7 [shape = 'u8[86016]{0}', space=vmem, size = 0x15000, scoped, tag = 'input window, operand 5, single buffered']
    #allocation8 [shape = 's32[1]{0}', space=sflag, size = 0x4, scoped, tag = 'scoped memory for lenet_forward.1']
    #allocation9 [shape = 'u8[270336]{0}', space=vmem, size = 0x42000, scoped, tag = 'input window, operand 7, single buffered']
    #allocation10 [shape = 'u8[4096]{0}', space=vmem, size = 0x1000, scoped, tag = 'input window, operand 9, single buffered']
    #allocation11 [shape = 's32[1]{0}', space=sflag, size = 0x4, scoped, tag = 'scoped memory for lenet_forward.1']
    #allocation12 [shape = 'u8[98304]{0}', space=vmem, size = 0x18000, scoped, tag = 'input window, operand 10, single buffered']
    #allocation13 [shape = 'u8[98304]{0}', space=vmem, size = 0x18000, scoped, tag = 'input window, operand 11, single buffered']
    #allocation14 [shape = 's32[1]{0}', space=sflag, size = 0x4, scoped, tag = 'scoped memory for lenet_forward.1']
    #allocation15 [shape = 'u8[294912]{0}', space=vmem, size = 0x48000, scoped, tag = 'input window, operand 14, single buffered']
    %25 = vsyncpa [#allocation3], 0
    %26 = vsyncpa [#allocation5], 0
    %27 = vsyncpa [#allocation8], 0
    %28 = vsyncpa [#allocation11], 0
    %29 = vsyncpa [#allocation14], 0
    // Predicated region
    $region2: #{lenet_forward.1} parent=1 // pred_check
      _
    $region3: #{lenet_forward.1} parent=1 // pred_check_branch
      %31 = sbr.rel (0) target = $region5
    $region4: #{lenet_forward.1} parent=1 // pred_region
      _
    $region5: #{lenet_forward.1} parent=1 // pred_fallthru
      _
    // Predicated region
    $region6: #{lenet_forward.1} parent=1 // pred_check
      _
    $region7: #{lenet_forward.1} parent=1 // pred_check_branch
      %33 = sbr.rel (0) target = $region9
    $region8: #{lenet_forward.1} parent=1 // pred_region
      _
    $region9: #{lenet_forward.1} parent=1 // pred_fallthru
      _
    // Predicated region
    $region10: #{lenet_forward.1} parent=1 // pred_check
      _
    $region11: #{lenet_forward.1} parent=1 // pred_check_branch
      %35 = sbr.rel (0) target = $region13
    $region12: #{lenet_forward.1} parent=1 // pred_region
      %37 = vsyncadd [#allocation3], 0
      %s38 = sshll.u32 %s2, 4
      %s39 = int_to_ptr.hbm [resolvable:$true] %s38
      %s40 = sshll.u32 [#allocation2], 4
      %s41 = int_to_ptr.vmem [resolvable:$true] %s40
      %46 = dma.hbm_to_vmem [thread:$0]  %s39, 256, %s41, [#allocation3], 128, 128, 8
    $region13: #{lenet_forward.1} parent=1 // pred_fallthru
      _
    // Predicated region
    $region14: #{lenet_forward.1} parent=1 // pred_check
      _
    $region15: #{lenet_forward.1} parent=1 // pred_check_branch
      %48 = sbr.rel (0) target = $region17
    $region16: #{lenet_forward.1} parent=1 // pred_region
      %50 = vsyncadd [#allocation5], 0
      %s51 = sshll.u32 %s3, 4
      %s52 = int_to_ptr.hbm [resolvable:$true] %s51
      %s53 = sshll.u32 [#allocation4], 4
      %s54 = int_to_ptr.vmem [resolvable:$true] %s53
      %59 = dma.hbm_to_vmem [thread:$0]  %s52, 256, %s54, [#allocation5], 128, 128, 8
    $region17: #{lenet_forward.1} parent=1 // pred_fallthru
      _
    // Predicated region
    $region18: #{lenet_forward.1} parent=1 // pred_check
      _
    $region19: #{lenet_forward.1} parent=1 // pred_check_branch
      %61 = sbr.rel (0) target = $region21
    $region20: #{lenet_forward.1} parent=1 // pred_region
      %63 = vsyncadd [#allocation5], 0
      %s64 = sshll.u32 %s4, 4
      %s65 = int_to_ptr.hbm [resolvable:$true] %s64
      %s66 = sshll.u32 [#allocation6], 4
      %s67 = int_to_ptr.vmem [resolvable:$true] %s66
      %72 = dma.hbm_to_vmem [thread:$0]  %s65, 2688, %s67, [#allocation5], 128, 128, 8
    $region21: #{lenet_forward.1} parent=1 // pred_fallthru
      _
    // Predicated region
    $region22: #{lenet_forward.1} parent=1 // pred_check
      _
    $region23: #{lenet_forward.1} parent=1 // pred_check_branch
      %74 = sbr.rel (0) target = $region25
    $region24: #{lenet_forward.1} parent=1 // pred_region
      %76 = vsyncadd [#allocation8], 0
      %s77 = sshll.u32 %s5, 4
      %s78 = int_to_ptr.hbm [resolvable:$true] %s77
      %s79 = sshll.u32 [#allocation7], 4
      %s80 = int_to_ptr.vmem [resolvable:$true] %s79
      %85 = dma.hbm_to_vmem [thread:$0]  %s78, 2688, %s80, [#allocation8], 128, 128, 8
    $region25: #{lenet_forward.1} parent=1 // pred_fallthru
      _
    // Predicated region
    $region26: #{lenet_forward.1} parent=1 // pred_check
      _
    $region27: #{lenet_forward.1} parent=1 // pred_check_branch
      %87 = sbr.rel (0) target = $region29
    $region28: #{lenet_forward.1} parent=1 // pred_region
      _
    $region29: #{lenet_forward.1} parent=1 // pred_fallthru
      _
    // Predicated region
    $region30: #{lenet_forward.1} parent=1 // pred_check
      _
    $region31: #{lenet_forward.1} parent=1 // pred_check_branch
      %89 = sbr.rel (0) target = $region33
    $region32: #{lenet_forward.1} parent=1 // pred_region
      %91 = vsyncadd [#allocation8], 0
      %s92 = sshll.u32 %s7, 4
      %s93 = int_to_ptr.hbm [resolvable:$true] %s92
      %s94 = sshll.u32 [#allocation9], 4
      %s95 = int_to_ptr.vmem [resolvable:$true] %s94
      %100 = dma.hbm_to_vmem [thread:$0]  %s93, 8448, %s95, [#allocation8], 256, 256, 16
    $region33: #{lenet_forward.1} parent=1 // pred_fallthru
      _
    // Predicated region
    $region34: #{lenet_forward.1} parent=1 // pred_check
      _
    $region35: #{lenet_forward.1} parent=1 // pred_check_branch
      %102 = sbr.rel (0) target = $region37
    $region36: #{lenet_forward.1} parent=1 // pred_region
      _
    $region37: #{lenet_forward.1} parent=1 // pred_fallthru
      _
    // Predicated region
    $region38: #{lenet_forward.1} parent=1 // pred_check
      _
    $region39: #{lenet_forward.1} parent=1 // pred_check_branch
      %104 = sbr.rel (0) target = $region41
    $region40: #{lenet_forward.1} parent=1 // pred_region
      %106 = vsyncadd [#allocation11], 0
      %s108 = sshll.u32 %s9, 4
      %s109 = int_to_ptr.hbm [resolvable:$true] %s108
      %s110 = sshll.u32 [#allocation10], 4
      %s111 = int_to_ptr.vmem [resolvable:$true] %s110
      %113 = dma.hbm_to_vmem [thread:$0]  %s109, 128, %s111, [#allocation11]
    $region41: #{lenet_forward.1} parent=1 // pred_fallthru
      _
    // Predicated region
    $region42: #{lenet_forward.1} parent=1 // pred_check
      _
    $region43: #{lenet_forward.1} parent=1 // pred_check_branch
      %115 = sbr.rel (0) target = $region45
    $region44: #{lenet_forward.1} parent=1 // pred_region
      %117 = vsyncadd [#allocation11], 0
      %s118 = sshll.u32 %s10, 4
      %s119 = int_to_ptr.hbm [resolvable:$true] %s118
      %s120 = sshll.u32 [#allocation12], 4
      %s121 = int_to_ptr.vmem [resolvable:$true] %s120
      %126 = dma.hbm_to_vmem [thread:$0]  %s119, 3072, %s121, [#allocation11], 128, 128, 8
    $region45: #{lenet_forward.1} parent=1 // pred_fallthru
      _
    // Predicated region
    $region46: #{lenet_forward.1} parent=1 // pred_check
      _
    $region47: #{lenet_forward.1} parent=1 // pred_check_branch
      %128 = sbr.rel (0) target = $region49
    $region48: #{lenet_forward.1} parent=1 // pred_region
      %130 = vsyncadd [#allocation14], 0
      %s131 = sshll.u32 %s11, 4
      %s132 = int_to_ptr.hbm [resolvable:$true] %s131
      %s133 = sshll.u32 [#allocation13], 4
      %s134 = int_to_ptr.vmem [resolvable:$true] %s133
      %139 = dma.hbm_to_vmem [thread:$0]  %s132, 3072, %s134, [#allocation14], 128, 128, 8
    $region49: #{lenet_forward.1} parent=1 // pred_fallthru
      _
    // Predicated region
    $region50: #{lenet_forward.1} parent=1 // pred_check
      _
    $region51: #{lenet_forward.1} parent=1 // pred_check_branch
      %141 = sbr.rel (0) target = $region53
    $region52: #{lenet_forward.1} parent=1 // pred_region
      _
    $region53: #{lenet_forward.1} parent=1 // pred_fallthru
      _
    // Predicated region
    $region54: #{lenet_forward.1} parent=1 // pred_check
      _
    $region55: #{lenet_forward.1} parent=1 // pred_check_branch
      %143 = sbr.rel (0) target = $region57
    $region56: #{lenet_forward.1} parent=1 // pred_region
      _
    $region57: #{lenet_forward.1} parent=1 // pred_fallthru
      _
    // Predicated region
    $region58: #{lenet_forward.1} parent=1 // pred_check
      _
    $region59: #{lenet_forward.1} parent=1 // pred_check_branch
      %145 = sbr.rel (0) target = $region61
    $region60: #{lenet_forward.1} parent=1 // pred_region
      %147 = vsyncadd [#allocation14], 0
      %s148 = sshll.u32 %s14, 4
      %s149 = int_to_ptr.hbm [resolvable:$true] %s148
      %s150 = sshll.u32 [#allocation15], 4
      %s151 = int_to_ptr.vmem [resolvable:$true] %s150
      %156 = dma.hbm_to_vmem [thread:$0]  %s149, 9216, %s151, [#allocation14], 128, 128, 8
    $region61: #{lenet_forward.1} parent=1 // pred_fallthru
      _
    // Predicated region
    $region62: #{lenet_forward.1} parent=1 // pred_check
      _
    $region63: #{lenet_forward.1} parent=1 // pred_check_branch
      %158 = sbr.rel (0) target = $region65
    $region64: #{lenet_forward.1} parent=1 // pred_region
      _
    $region65: #{lenet_forward.1} parent=1 // pred_fallthru
      _
    // Predicated region
    $region66: #{lenet_forward.1} parent=1 // pred_check
      _
    $region67: #{lenet_forward.1} parent=1 // pred_check_branch
      %160 = sbr.rel (0) target = $region69
    $region68: #{lenet_forward.1} parent=1 // pred_region
      _
    $region69: #{lenet_forward.1} parent=1 // pred_fallthru
      _
    // Predicated region
    $region70: #{lenet_forward.1} parent=1 // pred_check
      _
    $region71: #{lenet_forward.1} parent=1 // pred_check_branch
      %162 = sbr.rel (0) target = $region73
    $region72: #{lenet_forward.1} parent=1 // pred_region
      _
    $region73: #{lenet_forward.1} parent=1 // pred_fallthru
      _
    // Predicated region
    $region74: #{lenet_forward.1} parent=1 // pred_check
      _
    $region75: #{lenet_forward.1} parent=1 // pred_check_branch
      %164 = sbr.rel (0) target = $region77
    $region76: #{lenet_forward.1} parent=1 // pred_region
      _
    $region77: #{lenet_forward.1} parent=1 // pred_fallthru
      _
    // Predicated region
    $region78: #{lenet_forward.1} parent=1 // pred_check
      _
    $region79: #{lenet_forward.1} parent=1 // pred_check_branch
      %166 = sbr.rel (0) target = $region81
    $region80: #{lenet_forward.1} parent=1 // pred_region
      _
    $region81: #{lenet_forward.1} parent=1 // pred_fallthru
      _
    // Predicated region
    $region82: #{lenet_forward.1} parent=1 // pred_check
      _
    $region83: #{lenet_forward.1} parent=1 // pred_check_branch
      %168 = sbr.rel (0) target = $region85
    $region84: #{lenet_forward.1} parent=1 // pred_region
      %170 = dma.done [#allocation3], 256
    $region85: #{lenet_forward.1} parent=1 // pred_fallthru
      _
    // Predicated region
    $region86: #{lenet_forward.1} parent=1 // pred_check
      _
    $region87: #{lenet_forward.1} parent=1 // pred_check_branch
      %172 = sbr.rel (0) target = $region89
    $region88: #{lenet_forward.1} parent=1 // pred_region
      %174 = dma.done [#allocation5], 256
    $region89: #{lenet_forward.1} parent=1 // pred_fallthru
      _
    // Predicated region
    $region90: #{lenet_forward.1} parent=1 // pred_check
      _
    $region91: #{lenet_forward.1} parent=1 // pred_check_branch
      %176 = sbr.rel (0) target = $region93
    $region92: #{lenet_forward.1} parent=1 // pred_region
      %178 = dma.done [#allocation5], 2688
    $region93: #{lenet_forward.1} parent=1 // pred_fallthru
      _
    // Predicated region
    $region94: #{lenet_forward.1} parent=1 // pred_check
      _
    $region95: #{lenet_forward.1} parent=1 // pred_check_branch
      %180 = sbr.rel (0) target = $region97
    $region96: #{lenet_forward.1} parent=1 // pred_region
      %182 = dma.done [#allocation8], 2688
    $region97: #{lenet_forward.1} parent=1 // pred_fallthru
      _
    // Predicated region
    $region98: #{lenet_forward.1} parent=1 // pred_check
      _
    $region99: #{lenet_forward.1} parent=1 // pred_check_branch
      %184 = sbr.rel (0) target = $region101
    $region100: #{lenet_forward.1} parent=1 // pred_region
      %186 = dma.done [#allocation8], 8448
    $region101: #{lenet_forward.1} parent=1 // pred_fallthru
      _
    // Predicated region
    $region102: #{lenet_forward.1} parent=1 // pred_check
      _
    $region103: #{lenet_forward.1} parent=1 // pred_check_branch
      %188 = sbr.rel (0) target = $region105
    $region104: #{lenet_forward.1} parent=1 // pred_region
      %190 = dma.done [#allocation11], 128
    $region105: #{lenet_forward.1} parent=1 // pred_fallthru
      _
    // Predicated region
    $region106: #{lenet_forward.1} parent=1 // pred_check
      _
    $region107: #{lenet_forward.1} parent=1 // pred_check_branch
      %192 = sbr.rel (0) target = $region109
    $region108: #{lenet_forward.1} parent=1 // pred_region
      %194 = dma.done [#allocation11], 3072
    $region109: #{lenet_forward.1} parent=1 // pred_fallthru
      _
    // Predicated region
    $region110: #{lenet_forward.1} parent=1 // pred_check
      _
    $region111: #{lenet_forward.1} parent=1 // pred_check_branch
      %196 = sbr.rel (0) target = $region113
    $region112: #{lenet_forward.1} parent=1 // pred_region
      %198 = dma.done [#allocation14], 3072
    $region113: #{lenet_forward.1} parent=1 // pred_fallthru
      _
    // Predicated region
    $region114: #{lenet_forward.1} parent=1 // pred_check
      _
    $region115: #{lenet_forward.1} parent=1 // pred_check_branch
      %200 = sbr.rel (0) target = $region117
    $region116: #{lenet_forward.1} parent=1 // pred_region
      %202 = dma.done [#allocation14], 9216
    $region117: #{lenet_forward.1} parent=1 // pred_fallthru
      _
    %v203 = vld [vmem:[%s0] sm:$0xff]
    %v204 = vld [vmem:[%s0 + $0x8] sm:$0xff]
    %v205 = vld [vmem:[%s0 + $0x10] sm:$0xff]
    %v206 = vld [vmem:[%s0 + $0x18] sm:$0xff]
    %v207 = vld [vmem:[%s0 + $0x20] sm:$0xff]
    %v208 = vld [vmem:[%s0 + $0x28] sm:$0xff]
    %v209 = vld [vmem:[%s0 + $0x30] sm:$0xff]
    %v210 = vld [vmem:[%s0 + $0x38] sm:$0xff]
    %v211 = vld [vmem:[%s0 + $0x40] sm:$0xff]
    %v212 = vld [vmem:[%s0 + $0x48] sm:$0xff]
    %v213 = vld [vmem:[%s0 + $0x50] sm:$0xff]
    %v214 = vld [vmem:[%s0 + $0x58] sm:$0xff]
    %v215 = vld [vmem:[%s0 + $0x60] sm:$0xff]
    %v216 = vld [vmem:[%s0 + $0x68] sm:$0xff]
    %v217 = vld [vmem:[%s0 + $0x70] sm:$0xff]
    %v218 = vld [vmem:[%s0 + $0x78] sm:$0xff]
    %v219 = vld [vmem:[%s0 + $0x80] sm:$0xff]
    %v220 = vld [vmem:[%s0 + $0x88] sm:$0xff]
    %v221 = vld [vmem:[%s0 + $0x90] sm:$0xff]
    %v222 = vld [vmem:[%s0 + $0x98] sm:$0xff]
    %v223 = vld [vmem:[%s0 + $0xa0] sm:$0xff]
    %v224 = vld [vmem:[%s0 + $0xa8] sm:$0xff]
    %v225 = vld [vmem:[%s0 + $0xb0] sm:$0xff]
    %v226 = vld [vmem:[%s0 + $0xb8] sm:$0xff]
    %v227 = vld [vmem:[%s0 + $0xc0] sm:$0xff]
    %v228 = vld [vmem:[%s0 + $0xc8] sm:$0xff]
    %v229 = vld [vmem:[%s0 + $0xd0] sm:$0xff]
    %v230 = vld [vmem:[%s0 + $0xd8] sm:$0xff]
    %v231 = vld [vmem:[%s0 + $0xe0] sm:$0xff]
    %v232 = vld [vmem:[%s0 + $0xe8] sm:$0xff]
    %v233 = vld [vmem:[%s0 + $0xf0] sm:$0xff]
    %v234 = vld [vmem:[%s0 + $0xf8] sm:$0xff]
    %v235 = vld [vmem:[%s1] sm:$0xff]
    %v236 = vld [vmem:[%s1 + $0x8] sm:$0xff]
    %v237 = vld [vmem:[%s1 + $0x10] sm:$0xff]
    %v238 = vld [vmem:[%s1 + $0x18] sm:$0xff]
    %v239 = vld [vmem:[%s1 + $0x20] sm:$0xff]
    %v240 = vld [vmem:[%s1 + $0x28] sm:$0xff]
    %v241 = vld [vmem:[%s1 + $0x30] sm:$0xff]
    %v242 = vld [vmem:[%s1 + $0x38] sm:$0xff]
    %vm243 = vcmask 261120
    %v245 = vsel %vm243, %v203, 0
    %v248 = vsel %vm243, %v204, 0
    %v251 = vsel %vm243, %v205, 0
    %v254 = vsel %vm243, %v206, 0
    %v257 = vsel %vm243, %v207, 0
    %v260 = vsel %vm243, %v208, 0
    %v263 = vsel %vm243, %v209, 0
    %v266 = vsel %vm243, %v210, 0
    %v269 = vsel %vm243, %v211, 0
    %v272 = vsel %vm243, %v212, 0
    %v275 = vsel %vm243, %v213, 0
    %v278 = vsel %vm243, %v214, 0
    %v281 = vsel %vm243, %v215, 0
    %v284 = vsel %vm243, %v216, 0
    %v287 = vsel %vm243, %v217, 0
    %v290 = vsel %vm243, %v218, 0
    %v293 = vsel %vm243, %v219, 0
    %v296 = vsel %vm243, %v220, 0
    %v299 = vsel %vm243, %v221, 0
    %v302 = vsel %vm243, %v222, 0
    %v305 = vsel %vm243, %v223, 0
    %v308 = vsel %vm243, %v224, 0
    %v311 = vsel %vm243, %v225, 0
    %v314 = vsel %vm243, %v226, 0
    %v317 = vsel %vm243, %v227, 0
    %v320 = vsel %vm243, %v228, 0
    %v323 = vsel %vm243, %v229, 0
    %v326 = vsel %vm243, %v230, 0
    %v329 = vsel %vm243, %v231, 0
    %v332 = vsel %vm243, %v232, 0
    %v335 = vsel %vm243, %v233, 0
    %v338 = vsel %vm243, %v234, 0
    %340 = vmatpush.msra.mxu0 0.0
    %341 = vmatpush.msra.mxu0 0.0
    %342 = vmatpush.msra.mxu0 0.0
    %343 = vmatpush.msra.mxu0 0.0
    %344 = vmatpush.msra.mxu0 0.0
    %345 = vmatpush.msra.mxu0 0.0
    %346 = vmatpush.msra.mxu0 0.0
    %347 = vmatpush.msra.mxu0 0.0
    %348 = vmatpush.msra.mxu0 0.0
    %349 = vmatpush.msra.mxu0 0.0
    %350 = vmatpush.msra.mxu0 0.0
    %351 = vmatpush.msra.mxu0 0.0
    %352 = vmatpush.msra.mxu0 %v241
    %353 = vmatpush.msra.mxu0 %v239
    %354 = vmatpush.msra.mxu0 %v237
    %355 = vmatpush.msra.mxu0 %v235
    %356 = vmatmul.f32.gmra.mxu0 %v245
    %v357 = vpop.f32.mrf.mxu0
    %v358 = vadd.f32 0.0, %v357
    %359 = vmatmul.f32.gmra.mxu0 %v248
    %v360 = vpop.f32.mrf.mxu0
    %v361 = vadd.f32 0.0, %v360
    %362 = vmatmul.f32.gmra.mxu0 %v251
    %v363 = vpop.f32.mrf.mxu0
    %v364 = vadd.f32 0.0, %v363
    %365 = vmatmul.f32.gmra.mxu0 %v254
    %v366 = vpop.f32.mrf.mxu0
    %v367 = vadd.f32 0.0, %v366
    %368 = vmatmul.f32.gmra.mxu0 %v257
    %v369 = vpop.f32.mrf.mxu0
    %v370 = vadd.f32 0.0, %v369
    %371 = vmatmul.f32.gmra.mxu0 %v260
    %v372 = vpop.f32.mrf.mxu0
    %v373 = vadd.f32 0.0, %v372
    %374 = vmatmul.f32.gmra.mxu0 %v263
    %v375 = vpop.f32.mrf.mxu0
    %v376 = vadd.f32 0.0, %v375
    %377 = vmatmul.f32.gmra.mxu0 %v266
    %v378 = vpop.f32.mrf.mxu0
    %v379 = vadd.f32 0.0, %v378
    %380 = vmatmul.f32.gmra.mxu0 %v269
    %v381 = vpop.f32.mrf.mxu0
    %v382 = vadd.f32 0.0, %v381
    %383 = vmatmul.f32.gmra.mxu0 %v272
    %v384 = vpop.f32.mrf.mxu0
    %v385 = vadd.f32 0.0, %v384
    %386 = vmatmul.f32.gmra.mxu0 %v275
    %v387 = vpop.f32.mrf.mxu0
    %v388 = vadd.f32 0.0, %v387
    %389 = vmatmul.f32.gmra.mxu0 %v278
    %v390 = vpop.f32.mrf.mxu0
    %v391 = vadd.f32 0.0, %v390
    %392 = vmatmul.f32.gmra.mxu0 %v281
    %v393 = vpop.f32.mrf.mxu0
    %v394 = vadd.f32 0.0, %v393
    %395 = vmatmul.f32.gmra.mxu0 %v284
    %v396 = vpop.f32.mrf.mxu0
    %v397 = vadd.f32 0.0, %v396
    %398 = vmatmul.f32.gmra.mxu0 %v287
    %v399 = vpop.f32.mrf.mxu0
    %v400 = vadd.f32 0.0, %v399
    %401 = vmatmul.f32.gmra.mxu0 %v290
    %v402 = vpop.f32.mrf.mxu0
    %v403 = vadd.f32 0.0, %v402
    %404 = vmatmul.f32.gmra.mxu0 %v293
    %v405 = vpop.f32.mrf.mxu0
    %v406 = vadd.f32 0.0, %v405
    %407 = vmatmul.f32.gmra.mxu0 %v296
    %v408 = vpop.f32.mrf.mxu0
    %v409 = vadd.f32 0.0, %v408
    %410 = vmatmul.f32.gmra.mxu0 %v299
    %v411 = vpop.f32.mrf.mxu0
    %v412 = vadd.f32 0.0, %v411
    %413 = vmatmul.f32.gmra.mxu0 %v302
    %v414 = vpop.f32.mrf.mxu0
    %v415 = vadd.f32 0.0, %v414
    %416 = vmatmul.f32.gmra.mxu0 %v305
    %v417 = vpop.f32.mrf.mxu0
    %v418 = vadd.f32 0.0, %v417
    %419 = vmatmul.f32.gmra.mxu0 %v308
    %v420 = vpop.f32.mrf.mxu0
    %v421 = vadd.f32 0.0, %v420
    %422 = vmatmul.f32.gmra.mxu0 %v311
    %v423 = vpop.f32.mrf.mxu0
    %v424 = vadd.f32 0.0, %v423
    %425 = vmatmul.f32.gmra.mxu0 %v314
    %v426 = vpop.f32.mrf.mxu0
    %v427 = vadd.f32 0.0, %v426
    %428 = vmatmul.f32.gmra.mxu0 %v317
    %v429 = vpop.f32.mrf.mxu0
    %v430 = vadd.f32 0.0, %v429
    %431 = vmatmul.f32.gmra.mxu0 %v320
    %v432 = vpop.f32.mrf.mxu0
    %v433 = vadd.f32 0.0, %v432
    %434 = vmatmul.f32.gmra.mxu0 %v323
    %v435 = vpop.f32.mrf.mxu0
    %v436 = vadd.f32 0.0, %v435
    %437 = vmatmul.f32.gmra.mxu0 %v326
    %v438 = vpop.f32.mrf.mxu0
    %v439 = vadd.f32 0.0, %v438
    %440 = vmatmul.f32.gmra.mxu0 %v329
    %v441 = vpop.f32.mrf.mxu0
    %v442 = vadd.f32 0.0, %v441
    %443 = vmatmul.f32.gmra.mxu0 %v332
    %v444 = vpop.f32.mrf.mxu0
    %v445 = vadd.f32 0.0, %v444
    %446 = vmatmul.f32.gmra.mxu0 %v335
    %v447 = vpop.f32.mrf.mxu0
    %v448 = vadd.f32 0.0, %v447
    %449 = vmatmul.f32.gmra.mxu0 %v338
    %v450 = vpop.f32.mrf.mxu0
    %v451 = vadd.f32 0.0, %v450
    %452 = vdwg.mxu0
    %453 = vmatpush.msra.mxu0 0.0
    %454 = vmatpush.msra.mxu0 0.0
    %455 = vmatpush.msra.mxu0 0.0
    %456 = vmatpush.msra.mxu0 0.0
    %457 = vmatpush.msra.mxu0 0.0
    %458 = vmatpush.msra.mxu0 0.0
    %459 = vmatpush.msra.mxu0 0.0
    %460 = vmatpush.msra.mxu0 0.0
    %461 = vmatpush.msra.mxu0 0.0
    %462 = vmatpush.msra.mxu0 0.0
    %463 = vmatpush.msra.mxu0 0.0
    %464 = vmatpush.msra.mxu0 0.0
    %465 = vmatpush.msra.mxu0 %v242
    %466 = vmatpush.msra.mxu0 %v240
    %467 = vmatpush.msra.mxu0 %v238
    %468 = vmatpush.msra.mxu0 %v236
    %469 = vmatmul.f32.gmra.mxu0 %v245
    %v470 = vpop.f32.mrf.mxu0
    %v471 = vadd.f32 0.0, %v470
    %472 = vmatmul.f32.gmra.mxu0 %v248
    %v473 = vpop.f32.mrf.mxu0
    %v474 = vadd.f32 0.0, %v473
    %475 = vmatmul.f32.gmra.mxu0 %v251
    %v476 = vpop.f32.mrf.mxu0
    %v477 = vadd.f32 0.0, %v476
    %478 = vmatmul.f32.gmra.mxu0 %v254
    %v479 = vpop.f32.mrf.mxu0
    %v480 = vadd.f32 0.0, %v479
    %481 = vmatmul.f32.gmra.mxu0 %v257
    %v482 = vpop.f32.mrf.mxu0
    %v483 = vadd.f32 0.0, %v482
    %484 = vmatmul.f32.gmra.mxu0 %v260
    %v485 = vpop.f32.mrf.mxu0
    %v486 = vadd.f32 0.0, %v485
    %487 = vmatmul.f32.gmra.mxu0 %v263
    %v488 = vpop.f32.mrf.mxu0
    %v489 = vadd.f32 0.0, %v488
    %490 = vmatmul.f32.gmra.mxu0 %v266
    %v491 = vpop.f32.mrf.mxu0
    %v492 = vadd.f32 0.0, %v491
    %493 = vmatmul.f32.gmra.mxu0 %v269
    %v494 = vpop.f32.mrf.mxu0
    %v495 = vadd.f32 0.0, %v494
    %496 = vmatmul.f32.gmra.mxu0 %v272
    %v497 = vpop.f32.mrf.mxu0
    %v498 = vadd.f32 0.0, %v497
    %499 = vmatmul.f32.gmra.mxu0 %v275
    %v500 = vpop.f32.mrf.mxu0
    %v501 = vadd.f32 0.0, %v500
    %502 = vmatmul.f32.gmra.mxu0 %v278
    %v503 = vpop.f32.mrf.mxu0
    %v504 = vadd.f32 0.0, %v503
    %505 = vmatmul.f32.gmra.mxu0 %v281
    %v506 = vpop.f32.mrf.mxu0
    %v507 = vadd.f32 0.0, %v506
    %508 = vmatmul.f32.gmra.mxu0 %v284
    %v509 = vpop.f32.mrf.mxu0
    %v510 = vadd.f32 0.0, %v509
    %511 = vmatmul.f32.gmra.mxu0 %v287
    %v512 = vpop.f32.mrf.mxu0
    %v513 = vadd.f32 0.0, %v512
    %514 = vmatmul.f32.gmra.mxu0 %v290
    %v515 = vpop.f32.mrf.mxu0
    %v516 = vadd.f32 0.0, %v515
    %517 = vmatmul.f32.gmra.mxu0 %v293
    %v518 = vpop.f32.mrf.mxu0
    %v519 = vadd.f32 0.0, %v518
    %520 = vmatmul.f32.gmra.mxu0 %v296
    %v521 = vpop.f32.mrf.mxu0
    %v522 = vadd.f32 0.0, %v521
    %523 = vmatmul.f32.gmra.mxu0 %v299
    %v524 = vpop.f32.mrf.mxu0
    %v525 = vadd.f32 0.0, %v524
    %526 = vmatmul.f32.gmra.mxu0 %v302
    %v527 = vpop.f32.mrf.mxu0
    %v528 = vadd.f32 0.0, %v527
    %529 = vmatmul.f32.gmra.mxu0 %v305
    %v530 = vpop.f32.mrf.mxu0
    %v531 = vadd.f32 0.0, %v530
    %532 = vmatmul.f32.gmra.mxu0 %v308
    %v533 = vpop.f32.mrf.mxu0
    %v534 = vadd.f32 0.0, %v533
    %535 = vmatmul.f32.gmra.mxu0 %v311
    %v536 = vpop.f32.mrf.mxu0
    %v537 = vadd.f32 0.0, %v536
    %538 = vmatmul.f32.gmra.mxu0 %v314
    %v539 = vpop.f32.mrf.mxu0
    %v540 = vadd.f32 0.0, %v539
    %541 = vmatmul.f32.gmra.mxu0 %v317
    %v542 = vpop.f32.mrf.mxu0
    %v543 = vadd.f32 0.0, %v542
    %544 = vmatmul.f32.gmra.mxu0 %v320
    %v545 = vpop.f32.mrf.mxu0
    %v546 = vadd.f32 0.0, %v545
    %547 = vmatmul.f32.gmra.mxu0 %v323
    %v548 = vpop.f32.mrf.mxu0
    %v549 = vadd.f32 0.0, %v548
    %550 = vmatmul.f32.gmra.mxu0 %v326
    %v551 = vpop.f32.mrf.mxu0
    %v552 = vadd.f32 0.0, %v551
    %553 = vmatmul.f32.gmra.mxu0 %v329
    %v554 = vpop.f32.mrf.mxu0
    %v555 = vadd.f32 0.0, %v554
    %556 = vmatmul.f32.gmra.mxu0 %v332
    %v557 = vpop.f32.mrf.mxu0
    %v558 = vadd.f32 0.0, %v557
    %559 = vmatmul.f32.gmra.mxu0 %v335
    %v560 = vpop.f32.mrf.mxu0
    %v561 = vadd.f32 0.0, %v560
    %562 = vmatmul.f32.gmra.mxu0 %v338
    %v563 = vpop.f32.mrf.mxu0
    %v564 = vadd.f32 0.0, %v563
    %565 = vdwg.mxu0
    %s566 = scalar_lea.vmem %s1, 64
    %v567 = vld [vmem:[%s566] sm:$0xff]
    %v568 = vld [vmem:[%s566 + $0x8] sm:$0xff]
    %v569 = vld [vmem:[%s566 + $0x10] sm:$0xff]
    %v570 = vld [vmem:[%s566 + $0x18] sm:$0xff]
    %v571 = vld [vmem:[%s566 + $0x20] sm:$0xff]
    %v572 = vld [vmem:[%s566 + $0x28] sm:$0xff]
    %v573 = vld [vmem:[%s566 + $0x30] sm:$0xff]
    %v574 = vld [vmem:[%s566 + $0x38] sm:$0xff]
    %575 = vmatpush.msra.mxu0 0.0
    %576 = vmatpush.msra.mxu0 0.0
    %577 = vmatpush.msra.mxu0 0.0
    %578 = vmatpush.msra.mxu0 0.0
    %579 = vmatpush.msra.mxu0 0.0
    %580 = vmatpush.msra.mxu0 0.0
    %581 = vmatpush.msra.mxu0 0.0
    %582 = vmatpush.msra.mxu0 0.0
    %583 = vmatpush.msra.mxu0 0.0
    %584 = vmatpush.msra.mxu0 0.0
    %585 = vmatpush.msra.mxu0 0.0
    %586 = vmatpush.msra.mxu0 0.0
    %587 = vmatpush.msra.mxu0 %v573
    %588 = vmatpush.msra.mxu0 %v571
    %589 = vmatpush.msra.mxu0 %v569
    %590 = vmatpush.msra.mxu0 %v567
    %591 = vmatmul.f32.gmra.mxu0 %v245
    %v592 = vpop.f32.mrf.mxu0
    %v593 = vadd.f32 0.0, %v592
    %594 = vmatmul.f32.gmra.mxu0 %v248
    %v595 = vpop.f32.mrf.mxu0
    %v596 = vadd.f32 0.0, %v595
    %597 = vmatmul.f32.gmra.mxu0 %v251
    %v598 = vpop.f32.mrf.mxu0
    %v599 = vadd.f32 0.0, %v598
    %600 = vmatmul.f32.gmra.mxu0 %v254
    %v601 = vpop.f32.mrf.mxu0
    %v602 = vadd.f32 0.0, %v601
    %603 = vmatmul.f32.gmra.mxu0 %v257
    %v604 = vpop.f32.mrf.mxu0
    %v605 = vadd.f32 0.0, %v604
    %606 = vmatmul.f32.gmra.mxu0 %v260
    %v607 = vpop.f32.mrf.mxu0
    %v608 = vadd.f32 0.0, %v607
    %609 = vmatmul.f32.gmra.mxu0 %v263
    %v610 = vpop.f32.mrf.mxu0
    %v611 = vadd.f32 0.0, %v610
    %612 = vmatmul.f32.gmra.mxu0 %v266
    %v613 = vpop.f32.mrf.mxu0
    %v614 = vadd.f32 0.0, %v613
    %615 = vmatmul.f32.gmra.mxu0 %v269
    %v616 = vpop.f32.mrf.mxu0
    %v617 = vadd.f32 0.0, %v616
    %618 = vmatmul.f32.gmra.mxu0 %v272
    %v619 = vpop.f32.mrf.mxu0
    %v620 = vadd.f32 0.0, %v619
    %621 = vmatmul.f32.gmra.mxu0 %v275
    %v622 = vpop.f32.mrf.mxu0
    %v623 = vadd.f32 0.0, %v622
    %624 = vmatmul.f32.gmra.mxu0 %v278
    %v625 = vpop.f32.mrf.mxu0
    %v626 = vadd.f32 0.0, %v625
    %627 = vmatmul.f32.gmra.mxu0 %v281
    %v628 = vpop.f32.mrf.mxu0
    %v629 = vadd.f32 0.0, %v628
    %630 = vmatmul.f32.gmra.mxu0 %v284
    %v631 = vpop.f32.mrf.mxu0
    %v632 = vadd.f32 0.0, %v631
    %633 = vmatmul.f32.gmra.mxu0 %v287
    %v634 = vpop.f32.mrf.mxu0
    %v635 = vadd.f32 0.0, %v634
    %636 = vmatmul.f32.gmra.mxu0 %v290
    %v637 = vpop.f32.mrf.mxu0
    %v638 = vadd.f32 0.0, %v637
    %639 = vmatmul.f32.gmra.mxu0 %v293
    %v640 = vpop.f32.mrf.mxu0
    %v641 = vadd.f32 0.0, %v640
    %642 = vmatmul.f32.gmra.mxu0 %v296
    %v643 = vpop.f32.mrf.mxu0
    %v644 = vadd.f32 0.0, %v643
    %645 = vmatmul.f32.gmra.mxu0 %v299
    %v646 = vpop.f32.mrf.mxu0
    %v647 = vadd.f32 0.0, %v646
    %648 = vmatmul.f32.gmra.mxu0 %v302
    %v649 = vpop.f32.mrf.mxu0
    %v650 = vadd.f32 0.0, %v649
    %651 = vmatmul.f32.gmra.mxu0 %v305
    %v652 = vpop.f32.mrf.mxu0
    %v653 = vadd.f32 0.0, %v652
    %654 = vmatmul.f32.gmra.mxu0 %v308
    %v655 = vpop.f32.mrf.mxu0
    %v656 = vadd.f32 0.0, %v655
    %657 = vmatmul.f32.gmra.mxu0 %v311
    %v658 = vpop.f32.mrf.mxu0
    %v659 = vadd.f32 0.0, %v658
    %660 = vmatmul.f32.gmra.mxu0 %v314
    %v661 = vpop.f32.mrf.mxu0
    %v662 = vadd.f32 0.0, %v661
    %663 = vmatmul.f32.gmra.mxu0 %v317
    %v664 = vpop.f32.mrf.mxu0
    %v665 = vadd.f32 0.0, %v664
    %666 = vmatmul.f32.gmra.mxu0 %v320
    %v667 = vpop.f32.mrf.mxu0
    %v668 = vadd.f32 0.0, %v667
    %669 = vmatmul.f32.gmra.mxu0 %v323
    %v670 = vpop.f32.mrf.mxu0
    %v671 = vadd.f32 0.0, %v670
    %672 = vmatmul.f32.gmra.mxu0 %v326
    %v673 = vpop.f32.mrf.mxu0
    %v674 = vadd.f32 0.0, %v673
    %675 = vmatmul.f32.gmra.mxu0 %v329
    %v676 = vpop.f32.mrf.mxu0
    %v677 = vadd.f32 0.0, %v676
    %678 = vmatmul.f32.gmra.mxu0 %v332
    %v679 = vpop.f32.mrf.mxu0
    %v680 = vadd.f32 0.0, %v679
    %681 = vmatmul.f32.gmra.mxu0 %v335
    %v682 = vpop.f32.mrf.mxu0
    %v683 = vadd.f32 0.0, %v682
    %684 = vmatmul.f32.gmra.mxu0 %v338
    %v685 = vpop.f32.mrf.mxu0
    %v686 = vadd.f32 0.0, %v685
    %687 = vdwg.mxu0
    %688 = vmatpush.msra.mxu0 0.0
    %689 = vmatpush.msra.mxu0 0.0
    %690 = vmatpush.msra.mxu0 0.0
    %691 = vmatpush.msra.mxu0 0.0
    %692 = vmatpush.msra.mxu0 0.0
    %693 = vmatpush.msra.mxu0 0.0
    %694 = vmatpush.msra.mxu0 0.0
    %695 = vmatpush.msra.mxu0 0.0
    %696 = vmatpush.msra.mxu0 0.0
    %697 = vmatpush.msra.mxu0 0.0
    %698 = vmatpush.msra.mxu0 0.0
    %699 = vmatpush.msra.mxu0 0.0
    %700 = vmatpush.msra.mxu0 %v574
    %701 = vmatpush.msra.mxu0 %v572
    %702 = vmatpush.msra.mxu0 %v570
    %703 = vmatpush.msra.mxu0 %v568
    %704 = vmatmul.f32.gmra.mxu0 %v245
    %v705 = vpop.f32.mrf.mxu0
    %v706 = vadd.f32 0.0, %v705
    %707 = vmatmul.f32.gmra.mxu0 %v248
    %v708 = vpop.f32.mrf.mxu0
    %v709 = vadd.f32 0.0, %v708
    %710 = vmatmul.f32.gmra.mxu0 %v251
    %v711 = vpop.f32.mrf.mxu0
    %v712 = vadd.f32 0.0, %v711
    %713 = vmatmul.f32.gmra.mxu0 %v254
    %v714 = vpop.f32.mrf.mxu0
    %v715 = vadd.f32 0.0, %v714
    %716 = vmatmul.f32.gmra.mxu0 %v257
    %v717 = vpop.f32.mrf.mxu0
    %v718 = vadd.f32 0.0, %v717
    %719 = vmatmul.f32.gmra.mxu0 %v260
    %v720 = vpop.f32.mrf.mxu0
    %v721 = vadd.f32 0.0, %v720
    %722 = vmatmul.f32.gmra.mxu0 %v263
    %v723 = vpop.f32.mrf.mxu0
    %v724 = vadd.f32 0.0, %v723
    %725 = vmatmul.f32.gmra.mxu0 %v266
    %v726 = vpop.f32.mrf.mxu0
    %v727 = vadd.f32 0.0, %v726
    %728 = vmatmul.f32.gmra.mxu0 %v269
    %v729 = vpop.f32.mrf.mxu0
    %v730 = vadd.f32 0.0, %v729
    %731 = vmatmul.f32.gmra.mxu0 %v272
    %v732 = vpop.f32.mrf.mxu0
    %v733 = vadd.f32 0.0, %v732
    %734 = vmatmul.f32.gmra.mxu0 %v275
    %v735 = vpop.f32.mrf.mxu0
    %v736 = vadd.f32 0.0, %v735
    %737 = vmatmul.f32.gmra.mxu0 %v278
    %v738 = vpop.f32.mrf.mxu0
    %v739 = vadd.f32 0.0, %v738
    %740 = vmatmul.f32.gmra.mxu0 %v281
    %v741 = vpop.f32.mrf.mxu0
    %v742 = vadd.f32 0.0, %v741
    %743 = vmatmul.f32.gmra.mxu0 %v284
    %v744 = vpop.f32.mrf.mxu0
    %v745 = vadd.f32 0.0, %v744
    %746 = vmatmul.f32.gmra.mxu0 %v287
    %v747 = vpop.f32.mrf.mxu0
    %v748 = vadd.f32 0.0, %v747
    %749 = vmatmul.f32.gmra.mxu0 %v290
    %v750 = vpop.f32.mrf.mxu0
    %v751 = vadd.f32 0.0, %v750
    %752 = vmatmul.f32.gmra.mxu0 %v293
    %v753 = vpop.f32.mrf.mxu0
    %v754 = vadd.f32 0.0, %v753
    %755 = vmatmul.f32.gmra.mxu0 %v296
    %v756 = vpop.f32.mrf.mxu0
    %v757 = vadd.f32 0.0, %v756
    %758 = vmatmul.f32.gmra.mxu0 %v299
    %v759 = vpop.f32.mrf.mxu0
    %v760 = vadd.f32 0.0, %v759
    %761 = vmatmul.f32.gmra.mxu0 %v302
    %v762 = vpop.f32.mrf.mxu0
    %v763 = vadd.f32 0.0, %v762
    %764 = vmatmul.f32.gmra.mxu0 %v305
    %v765 = vpop.f32.mrf.mxu0
    %v766 = vadd.f32 0.0, %v765
    %767 = vmatmul.f32.gmra.mxu0 %v308
    %v768 = vpop.f32.mrf.mxu0
    %v769 = vadd.f32 0.0, %v768
    %770 = vmatmul.f32.gmra.mxu0 %v311
    %v771 = vpop.f32.mrf.mxu0
    %v772 = vadd.f32 0.0, %v771
    %773 = vmatmul.f32.gmra.mxu0 %v314
    %v774 = vpop.f32.mrf.mxu0
    %v775 = vadd.f32 0.0, %v774
    %776 = vmatmul.f32.gmra.mxu0 %v317
    %v777 = vpop.f32.mrf.mxu0
    %v778 = vadd.f32 0.0, %v777
    %779 = vmatmul.f32.gmra.mxu0 %v320
    %v780 = vpop.f32.mrf.mxu0
    %v781 = vadd.f32 0.0, %v780
    %782 = vmatmul.f32.gmra.mxu0 %v323
    %v783 = vpop.f32.mrf.mxu0
    %v784 = vadd.f32 0.0, %v783
    %785 = vmatmul.f32.gmra.mxu0 %v326
    %v786 = vpop.f32.mrf.mxu0
    %v787 = vadd.f32 0.0, %v786
    %788 = vmatmul.f32.gmra.mxu0 %v329
    %v789 = vpop.f32.mrf.mxu0
    %v790 = vadd.f32 0.0, %v789
    %791 = vmatmul.f32.gmra.mxu0 %v332
    %v792 = vpop.f32.mrf.mxu0
    %v793 = vadd.f32 0.0, %v792
    %794 = vmatmul.f32.gmra.mxu0 %v335
    %v795 = vpop.f32.mrf.mxu0
    %v796 = vadd.f32 0.0, %v795
    %797 = vmatmul.f32.gmra.mxu0 %v338
    %v798 = vpop.f32.mrf.mxu0
    %v799 = vadd.f32 0.0, %v798
    %800 = vdwg.mxu0
    %vm865 = vcmask 1046528
    %v866 = vrot.slane %v593, 1
    %v867 = vrot.slane %v596, 1
    %v868 = vsel %vm865, %v866, %v867
    %v869 = vrot.slane %v706, 1
    %v870 = vrot.slane %v709, 1
    %v871 = vsel %vm865, %v869, %v870
    %v872 = vrot.slane %v599, 1
    %v873 = vsel %vm865, %v867, %v872
    %v874 = vrot.slane %v712, 1
    %v875 = vsel %vm865, %v870, %v874
    %v876 = vrot.slane %v602, 1
    %v877 = vsel %vm865, %v872, %v876
    %v878 = vrot.slane %v715, 1
    %v879 = vsel %vm865, %v874, %v878
    %v880 = vrot.slane %v605, 1
    %v881 = vrot.slane %v608, 1
    %v882 = vsel %vm865, %v880, %v881
    %v883 = vrot.slane %v718, 1
    %v884 = vrot.slane %v721, 1
    %v885 = vsel %vm865, %v883, %v884
    %v886 = vrot.slane %v611, 1
    %v887 = vsel %vm865, %v881, %v886
    %v888 = vrot.slane %v724, 1
    %v889 = vsel %vm865, %v884, %v888
    %v890 = vrot.slane %v614, 1
    %v891 = vsel %vm865, %v886, %v890
    %v892 = vrot.slane %v727, 1
    %v893 = vsel %vm865, %v888, %v892
    %v894 = vrot.slane %v617, 1
    %v895 = vrot.slane %v620, 1
    %v896 = vsel %vm865, %v894, %v895
    %v897 = vrot.slane %v730, 1
    %v898 = vrot.slane %v733, 1
    %v899 = vsel %vm865, %v897, %v898
    %v900 = vrot.slane %v623, 1
    %v901 = vsel %vm865, %v895, %v900
    %v902 = vrot.slane %v736, 1
    %v903 = vsel %vm865, %v898, %v902
    %v904 = vrot.slane %v626, 1
    %v905 = vsel %vm865, %v900, %v904
    %v906 = vrot.slane %v739, 1
    %v907 = vsel %vm865, %v902, %v906
    %v908 = vrot.slane %v629, 1
    %v909 = vrot.slane %v632, 1
    %v910 = vsel %vm865, %v908, %v909
    %v911 = vrot.slane %v742, 1
    %v912 = vrot.slane %v745, 1
    %v913 = vsel %vm865, %v911, %v912
    %v914 = vrot.slane %v635, 1
    %v915 = vsel %vm865, %v909, %v914
    %v916 = vrot.slane %v748, 1
    %v917 = vsel %vm865, %v912, %v916
    %v918 = vrot.slane %v638, 1
    %v919 = vsel %vm865, %v914, %v918
    %v920 = vrot.slane %v751, 1
    %v921 = vsel %vm865, %v916, %v920
    %v922 = vrot.slane %v641, 1
    %v923 = vrot.slane %v644, 1
    %v924 = vsel %vm865, %v922, %v923
    %v925 = vrot.slane %v754, 1
    %v926 = vrot.slane %v757, 1
    %v927 = vsel %vm865, %v925, %v926
    %v928 = vrot.slane %v647, 1
    %v929 = vsel %vm865, %v923, %v928
    %v930 = vrot.slane %v760, 1
    %v931 = vsel %vm865, %v926, %v930
    %v932 = vrot.slane %v650, 1
    %v933 = vsel %vm865, %v928, %v932
    %v934 = vrot.slane %v763, 1
    %v935 = vsel %vm865, %v930, %v934
    %v936 = vrot.slane %v653, 1
    %v937 = vrot.slane %v656, 1
    %v938 = vsel %vm865, %v936, %v937
    %v939 = vrot.slane %v766, 1
    %v940 = vrot.slane %v769, 1
    %v941 = vsel %vm865, %v939, %v940
    %v942 = vrot.slane %v659, 1
    %v943 = vsel %vm865, %v937, %v942
    %v944 = vrot.slane %v772, 1
    %v945 = vsel %vm865, %v940, %v944
    %v946 = vrot.slane %v662, 1
    %v947 = vsel %vm865, %v942, %v946
    %v948 = vrot.slane %v775, 1
    %v949 = vsel %vm865, %v944, %v948
    %v950 = vrot.slane %v665, 1
    %v951 = vrot.slane %v668, 1
    %v952 = vsel %vm865, %v950, %v951
    %v953 = vrot.slane %v778, 1
    %v954 = vrot.slane %v781, 1
    %v955 = vsel %vm865, %v953, %v954
    %v956 = vrot.slane %v671, 1
    %v957 = vsel %vm865, %v951, %v956
    %v958 = vrot.slane %v784, 1
    %v959 = vsel %vm865, %v954, %v958
    %v960 = vrot.slane %v674, 1
    %v961 = vsel %vm865, %v956, %v960
    %v962 = vrot.slane %v787, 1
    %v963 = vsel %vm865, %v958, %v962
    %v964 = vrot.slane %v677, 1
    %v965 = vrot.slane %v680, 1
    %v966 = vsel %vm865, %v964, %v965
    %v967 = vrot.slane %v790, 1
    %v968 = vrot.slane %v793, 1
    %v969 = vsel %vm865, %v967, %v968
    %v970 = vrot.slane %v683, 1
    %v971 = vsel %vm865, %v965, %v970
    %v972 = vrot.slane %v796, 1
    %v973 = vsel %vm865, %v968, %v972
    %v974 = vrot.slane %v686, 1
    %v975 = vsel %vm865, %v970, %v974
    %v976 = vrot.slane %v799, 1
    %v977 = vsel %vm865, %v972, %v976
    %v1042 = vadd.f32 %v358, %v868
    %v1043 = vadd.f32 %v471, %v871
    %v1044 = vadd.f32 %v361, %v873
    %v1045 = vadd.f32 %v474, %v875
    %v1046 = vadd.f32 %v364, %v877
    %v1047 = vadd.f32 %v477, %v879
    %v1048 = vadd.f32 %v367, %v876
    %v1049 = vadd.f32 %v480, %v878
    %v1050 = vadd.f32 %v370, %v882
    %v1051 = vadd.f32 %v483, %v885
    %v1052 = vadd.f32 %v373, %v887
    %v1053 = vadd.f32 %v486, %v889
    %v1054 = vadd.f32 %v376, %v891
    %v1055 = vadd.f32 %v489, %v893
    %v1056 = vadd.f32 %v379, %v890
    %v1057 = vadd.f32 %v492, %v892
    %v1058 = vadd.f32 %v382, %v896
    %v1059 = vadd.f32 %v495, %v899
    %v1060 = vadd.f32 %v385, %v901
    %v1061 = vadd.f32 %v498, %v903
    %v1062 = vadd.f32 %v388, %v905
    %v1063 = vadd.f32 %v501, %v907
    %v1064 = vadd.f32 %v391, %v904
    %v1065 = vadd.f32 %v504, %v906
    %v1066 = vadd.f32 %v394, %v910
    %v1067 = vadd.f32 %v507, %v913
    %v1068 = vadd.f32 %v397, %v915
    %v1069 = vadd.f32 %v510, %v917
    %v1070 = vadd.f32 %v400, %v919
    %v1071 = vadd.f32 %v513, %v921
    %v1072 = vadd.f32 %v403, %v918
    %v1073 = vadd.f32 %v516, %v920
    %v1074 = vadd.f32 %v406, %v924
    %v1075 = vadd.f32 %v519, %v927
    %v1076 = vadd.f32 %v409, %v929
    %v1077 = vadd.f32 %v522, %v931
    %v1078 = vadd.f32 %v412, %v933
    %v1079 = vadd.f32 %v525, %v935
    %v1080 = vadd.f32 %v415, %v932
    %v1081 = vadd.f32 %v528, %v934
    %v1082 = vadd.f32 %v418, %v938
    %v1083 = vadd.f32 %v531, %v941
    %v1084 = vadd.f32 %v421, %v943
    %v1085 = vadd.f32 %v534, %v945
    %v1086 = vadd.f32 %v424, %v947
    %v1087 = vadd.f32 %v537, %v949
    %v1088 = vadd.f32 %v427, %v946
    %v1089 = vadd.f32 %v540, %v948
    %v1090 = vadd.f32 %v430, %v952
    %v1091 = vadd.f32 %v543, %v955
    %v1092 = vadd.f32 %v433, %v957
    %v1093 = vadd.f32 %v546, %v959
    %v1094 = vadd.f32 %v436, %v961
    %v1095 = vadd.f32 %v549, %v963
    %v1096 = vadd.f32 %v439, %v960
    %v1097 = vadd.f32 %v552, %v962
    %v1098 = vadd.f32 %v442, %v966
    %v1099 = vadd.f32 %v555, %v969
    %v1100 = vadd.f32 %v445, %v971
    %v1101 = vadd.f32 %v558, %v973
    %v1102 = vadd.f32 %v448, %v975
    %v1103 = vadd.f32 %v561, %v977
    %v1104 = vadd.f32 %v451, %v974
    %v1105 = vadd.f32 %v564, %v976
    %s1106 = scalar_lea.vmem %s1, 128
    %v1107 = vld [vmem:[%s1106] sm:$0xff]
    %v1108 = vld [vmem:[%s1106 + $0x8] sm:$0xff]
    %v1109 = vld [vmem:[%s1106 + $0x10] sm:$0xff]
    %v1110 = vld [vmem:[%s1106 + $0x18] sm:$0xff]
    %v1111 = vld [vmem:[%s1106 + $0x20] sm:$0xff]
    %v1112 = vld [vmem:[%s1106 + $0x28] sm:$0xff]
    %v1113 = vld [vmem:[%s1106 + $0x30] sm:$0xff]
    %v1114 = vld [vmem:[%s1106 + $0x38] sm:$0xff]
    %1115 = vmatpush.msra.mxu0 0.0
    %1116 = vmatpush.msra.mxu0 0.0
    %1117 = vmatpush.msra.mxu0 0.0
    %1118 = vmatpush.msra.mxu0 0.0
    %1119 = vmatpush.msra.mxu0 0.0
    %1120 = vmatpush.msra.mxu0 0.0
    %1121 = vmatpush.msra.mxu0 0.0
    %1122 = vmatpush.msra.mxu0 0.0
    %1123 = vmatpush.msra.mxu0 0.0
    %1124 = vmatpush.msra.mxu0 0.0
    %1125 = vmatpush.msra.mxu0 0.0
    %1126 = vmatpush.msra.mxu0 0.0
    %1127 = vmatpush.msra.mxu0 %v1113
    %1128 = vmatpush.msra.mxu0 %v1111
    %1129 = vmatpush.msra.mxu0 %v1109
    %1130 = vmatpush.msra.mxu0 %v1107
    %1131 = vmatmul.f32.gmra.mxu0 %v245
    %v1132 = vpop.f32.mrf.mxu0
    %v1133 = vadd.f32 0.0, %v1132
    %1134 = vmatmul.f32.gmra.mxu0 %v248
    %v1135 = vpop.f32.mrf.mxu0
    %v1136 = vadd.f32 0.0, %v1135
    %1137 = vmatmul.f32.gmra.mxu0 %v251
    %v1138 = vpop.f32.mrf.mxu0
    %v1139 = vadd.f32 0.0, %v1138
    %1140 = vmatmul.f32.gmra.mxu0 %v254
    %v1141 = vpop.f32.mrf.mxu0
    %v1142 = vadd.f32 0.0, %v1141
    %1143 = vmatmul.f32.gmra.mxu0 %v257
    %v1144 = vpop.f32.mrf.mxu0
    %v1145 = vadd.f32 0.0, %v1144
    %1146 = vmatmul.f32.gmra.mxu0 %v260
    %v1147 = vpop.f32.mrf.mxu0
    %v1148 = vadd.f32 0.0, %v1147
    %1149 = vmatmul.f32.gmra.mxu0 %v263
    %v1150 = vpop.f32.mrf.mxu0
    %v1151 = vadd.f32 0.0, %v1150
    %1152 = vmatmul.f32.gmra.mxu0 %v266
    %v1153 = vpop.f32.mrf.mxu0
    %v1154 = vadd.f32 0.0, %v1153
    %1155 = vmatmul.f32.gmra.mxu0 %v269
    %v1156 = vpop.f32.mrf.mxu0
    %v1157 = vadd.f32 0.0, %v1156
    %1158 = vmatmul.f32.gmra.mxu0 %v272
    %v1159 = vpop.f32.mrf.mxu0
    %v1160 = vadd.f32 0.0, %v1159
    %1161 = vmatmul.f32.gmra.mxu0 %v275
    %v1162 = vpop.f32.mrf.mxu0
    %v1163 = vadd.f32 0.0, %v1162
    %1164 = vmatmul.f32.gmra.mxu0 %v278
    %v1165 = vpop.f32.mrf.mxu0
    %v1166 = vadd.f32 0.0, %v1165
    %1167 = vmatmul.f32.gmra.mxu0 %v281
    %v1168 = vpop.f32.mrf.mxu0
    %v1169 = vadd.f32 0.0, %v1168
    %1170 = vmatmul.f32.gmra.mxu0 %v284
    %v1171 = vpop.f32.mrf.mxu0
    %v1172 = vadd.f32 0.0, %v1171
    %1173 = vmatmul.f32.gmra.mxu0 %v287
    %v1174 = vpop.f32.mrf.mxu0
    %v1175 = vadd.f32 0.0, %v1174
    %1176 = vmatmul.f32.gmra.mxu0 %v290
    %v1177 = vpop.f32.mrf.mxu0
    %v1178 = vadd.f32 0.0, %v1177
    %1179 = vmatmul.f32.gmra.mxu0 %v293
    %v1180 = vpop.f32.mrf.mxu0
    %v1181 = vadd.f32 0.0, %v1180
    %1182 = vmatmul.f32.gmra.mxu0 %v296
    %v1183 = vpop.f32.mrf.mxu0
    %v1184 = vadd.f32 0.0, %v1183
    %1185 = vmatmul.f32.gmra.mxu0 %v299
    %v1186 = vpop.f32.mrf.mxu0
    %v1187 = vadd.f32 0.0, %v1186
    %1188 = vmatmul.f32.gmra.mxu0 %v302
    %v1189 = vpop.f32.mrf.mxu0
    %v1190 = vadd.f32 0.0, %v1189
    %1191 = vmatmul.f32.gmra.mxu0 %v305
    %v1192 = vpop.f32.mrf.mxu0
    %v1193 = vadd.f32 0.0, %v1192
    %1194 = vmatmul.f32.gmra.mxu0 %v308
    %v1195 = vpop.f32.mrf.mxu0
    %v1196 = vadd.f32 0.0, %v1195
    %1197 = vmatmul.f32.gmra.mxu0 %v311
    %v1198 = vpop.f32.mrf.mxu0
    %v1199 = vadd.f32 0.0, %v1198
    %1200 = vmatmul.f32.gmra.mxu0 %v314
    %v1201 = vpop.f32.mrf.mxu0
    %v1202 = vadd.f32 0.0, %v1201
    %1203 = vmatmul.f32.gmra.mxu0 %v317
    %v1204 = vpop.f32.mrf.mxu0
    %v1205 = vadd.f32 0.0, %v1204
    %1206 = vmatmul.f32.gmra.mxu0 %v320
    %v1207 = vpop.f32.mrf.mxu0
    %v1208 = vadd.f32 0.0, %v1207
    %1209 = vmatmul.f32.gmra.mxu0 %v323
    %v1210 = vpop.f32.mrf.mxu0
    %v1211 = vadd.f32 0.0, %v1210
    %1212 = vmatmul.f32.gmra.mxu0 %v326
    %v1213 = vpop.f32.mrf.mxu0
    %v1214 = vadd.f32 0.0, %v1213
    %1215 = vmatmul.f32.gmra.mxu0 %v329
    %v1216 = vpop.f32.mrf.mxu0
    %v1217 = vadd.f32 0.0, %v1216
    %1218 = vmatmul.f32.gmra.mxu0 %v332
    %v1219 = vpop.f32.mrf.mxu0
    %v1220 = vadd.f32 0.0, %v1219
    %1221 = vmatmul.f32.gmra.mxu0 %v335
    %v1222 = vpop.f32.mrf.mxu0
    %v1223 = vadd.f32 0.0, %v1222
    %1224 = vmatmul.f32.gmra.mxu0 %v338
    %v1225 = vpop.f32.mrf.mxu0
    %v1226 = vadd.f32 0.0, %v1225
    %1227 = vdwg.mxu0
    %1228 = vmatpush.msra.mxu0 0.0
    %1229 = vmatpush.msra.mxu0 0.0
    %1230 = vmatpush.msra.mxu0 0.0
    %1231 = vmatpush.msra.mxu0 0.0
    %1232 = vmatpush.msra.mxu0 0.0
    %1233 = vmatpush.msra.mxu0 0.0
    %1234 = vmatpush.msra.mxu0 0.0
    %1235 = vmatpush.msra.mxu0 0.0
    %1236 = vmatpush.msra.mxu0 0.0
    %1237 = vmatpush.msra.mxu0 0.0
    %1238 = vmatpush.msra.mxu0 0.0
    %1239 = vmatpush.msra.mxu0 0.0
    %1240 = vmatpush.msra.mxu0 %v1114
    %1241 = vmatpush.msra.mxu0 %v1112
    %1242 = vmatpush.msra.mxu0 %v1110
    %1243 = vmatpush.msra.mxu0 %v1108
    %1244 = vmatmul.f32.gmra.mxu0 %v245
    %v1245 = vpop.f32.mrf.mxu0
    %v1246 = vadd.f32 0.0, %v1245
    %1247 = vmatmul.f32.gmra.mxu0 %v248
    %v1248 = vpop.f32.mrf.mxu0
    %v1249 = vadd.f32 0.0, %v1248
    %1250 = vmatmul.f32.gmra.mxu0 %v251
    %v1251 = vpop.f32.mrf.mxu0
    %v1252 = vadd.f32 0.0, %v1251
    %1253 = vmatmul.f32.gmra.mxu0 %v254
    %v1254 = vpop.f32.mrf.mxu0
    %v1255 = vadd.f32 0.0, %v1254
    %1256 = vmatmul.f32.gmra.mxu0 %v257
    %v1257 = vpop.f32.mrf.mxu0
    %v1258 = vadd.f32 0.0, %v1257
    %1259 = vmatmul.f32.gmra.mxu0 %v260
    %v1260 = vpop.f32.mrf.mxu0
    %v1261 = vadd.f32 0.0, %v1260
    %1262 = vmatmul.f32.gmra.mxu0 %v263
    %v1263 = vpop.f32.mrf.mxu0
    %v1264 = vadd.f32 0.0, %v1263
    %1265 = vmatmul.f32.gmra.mxu0 %v266
    %v1266 = vpop.f32.mrf.mxu0
    %v1267 = vadd.f32 0.0, %v1266
    %1268 = vmatmul.f32.gmra.mxu0 %v269
    %v1269 = vpop.f32.mrf.mxu0
    %v1270 = vadd.f32 0.0, %v1269
    %1271 = vmatmul.f32.gmra.mxu0 %v272
    %v1272 = vpop.f32.mrf.mxu0
    %v1273 = vadd.f32 0.0, %v1272
    %1274 = vmatmul.f32.gmra.mxu0 %v275
    %v1275 = vpop.f32.mrf.mxu0
    %v1276 = vadd.f32 0.0, %v1275
    %1277 = vmatmul.f32.gmra.mxu0 %v278
    %v1278 = vpop.f32.mrf.mxu0
    %v1279 = vadd.f32 0.0, %v1278
    %1280 = vmatmul.f32.gmra.mxu0 %v281
    %v1281 = vpop.f32.mrf.mxu0
    %v1282 = vadd.f32 0.0, %v1281
    %1283 = vmatmul.f32.gmra.mxu0 %v284
    %v1284 = vpop.f32.mrf.mxu0
    %v1285 = vadd.f32 0.0, %v1284
    %1286 = vmatmul.f32.gmra.mxu0 %v287
    %v1287 = vpop.f32.mrf.mxu0
    %v1288 = vadd.f32 0.0, %v1287
    %1289 = vmatmul.f32.gmra.mxu0 %v290
    %v1290 = vpop.f32.mrf.mxu0
    %v1291 = vadd.f32 0.0, %v1290
    %1292 = vmatmul.f32.gmra.mxu0 %v293
    %v1293 = vpop.f32.mrf.mxu0
    %v1294 = vadd.f32 0.0, %v1293
    %1295 = vmatmul.f32.gmra.mxu0 %v296
    %v1296 = vpop.f32.mrf.mxu0
    %v1297 = vadd.f32 0.0, %v1296
    %1298 = vmatmul.f32.gmra.mxu0 %v299
    %v1299 = vpop.f32.mrf.mxu0
    %v1300 = vadd.f32 0.0, %v1299
    %1301 = vmatmul.f32.gmra.mxu0 %v302
    %v1302 = vpop.f32.mrf.mxu0
    %v1303 = vadd.f32 0.0, %v1302
    %1304 = vmatmul.f32.gmra.mxu0 %v305
    %v1305 = vpop.f32.mrf.mxu0
    %v1306 = vadd.f32 0.0, %v1305
    %1307 = vmatmul.f32.gmra.mxu0 %v308
    %v1308 = vpop.f32.mrf.mxu0
    %v1309 = vadd.f32 0.0, %v1308
    %1310 = vmatmul.f32.gmra.mxu0 %v311
    %v1311 = vpop.f32.mrf.mxu0
    %v1312 = vadd.f32 0.0, %v1311
    %1313 = vmatmul.f32.gmra.mxu0 %v314
    %v1314 = vpop.f32.mrf.mxu0
    %v1315 = vadd.f32 0.0, %v1314
    %1316 = vmatmul.f32.gmra.mxu0 %v317
    %v1317 = vpop.f32.mrf.mxu0
    %v1318 = vadd.f32 0.0, %v1317
    %1319 = vmatmul.f32.gmra.mxu0 %v320
    %v1320 = vpop.f32.mrf.mxu0
    %v1321 = vadd.f32 0.0, %v1320
    %1322 = vmatmul.f32.gmra.mxu0 %v323
    %v1323 = vpop.f32.mrf.mxu0
    %v1324 = vadd.f32 0.0, %v1323
    %1325 = vmatmul.f32.gmra.mxu0 %v326
    %v1326 = vpop.f32.mrf.mxu0
    %v1327 = vadd.f32 0.0, %v1326
    %1328 = vmatmul.f32.gmra.mxu0 %v329
    %v1329 = vpop.f32.mrf.mxu0
    %v1330 = vadd.f32 0.0, %v1329
    %1331 = vmatmul.f32.gmra.mxu0 %v332
    %v1332 = vpop.f32.mrf.mxu0
    %v1333 = vadd.f32 0.0, %v1332
    %1334 = vmatmul.f32.gmra.mxu0 %v335
    %v1335 = vpop.f32.mrf.mxu0
    %v1336 = vadd.f32 0.0, %v1335
    %1337 = vmatmul.f32.gmra.mxu0 %v338
    %v1338 = vpop.f32.mrf.mxu0
    %v1339 = vadd.f32 0.0, %v1338
    %1340 = vdwg.mxu0
    %vm1405 = vcmask 1045504
    %v1406 = vrot.slane %v1133, 2
    %v1407 = vrot.slane %v1136, 2
    %v1408 = vsel %vm1405, %v1406, %v1407
    %v1409 = vrot.slane %v1246, 2
    %v1410 = vrot.slane %v1249, 2
    %v1411 = vsel %vm1405, %v1409, %v1410
    %v1412 = vrot.slane %v1139, 2
    %v1413 = vsel %vm1405, %v1407, %v1412
    %v1414 = vrot.slane %v1252, 2
    %v1415 = vsel %vm1405, %v1410, %v1414
    %v1416 = vrot.slane %v1142, 2
    %v1417 = vsel %vm1405, %v1412, %v1416
    %v1418 = vrot.slane %v1255, 2
    %v1419 = vsel %vm1405, %v1414, %v1418
    %v1420 = vrot.slane %v1145, 2
    %v1421 = vrot.slane %v1148, 2
    %v1422 = vsel %vm1405, %v1420, %v1421
    %v1423 = vrot.slane %v1258, 2
    %v1424 = vrot.slane %v1261, 2
    %v1425 = vsel %vm1405, %v1423, %v1424
    %v1426 = vrot.slane %v1151, 2
    %v1427 = vsel %vm1405, %v1421, %v1426
    %v1428 = vrot.slane %v1264, 2
    %v1429 = vsel %vm1405, %v1424, %v1428
    %v1430 = vrot.slane %v1154, 2
    %v1431 = vsel %vm1405, %v1426, %v1430
    %v1432 = vrot.slane %v1267, 2
    %v1433 = vsel %vm1405, %v1428, %v1432
    %v1434 = vrot.slane %v1157, 2
    %v1435 = vrot.slane %v1160, 2
    %v1436 = vsel %vm1405, %v1434, %v1435
    %v1437 = vrot.slane %v1270, 2
    %v1438 = vrot.slane %v1273, 2
    %v1439 = vsel %vm1405, %v1437, %v1438
    %v1440 = vrot.slane %v1163, 2
    %v1441 = vsel %vm1405, %v1435, %v1440
    %v1442 = vrot.slane %v1276, 2
    %v1443 = vsel %vm1405, %v1438, %v1442
    %v1444 = vrot.slane %v1166, 2
    %v1445 = vsel %vm1405, %v1440, %v1444
    %v1446 = vrot.slane %v1279, 2
    %v1447 = vsel %vm1405, %v1442, %v1446
    %v1448 = vrot.slane %v1169, 2
    %v1449 = vrot.slane %v1172, 2
    %v1450 = vsel %vm1405, %v1448, %v1449
    %v1451 = vrot.slane %v1282, 2
    %v1452 = vrot.slane %v1285, 2
    %v1453 = vsel %vm1405, %v1451, %v1452
    %v1454 = vrot.slane %v1175, 2
    %v1455 = vsel %vm1405, %v1449, %v1454
    %v1456 = vrot.slane %v1288, 2
    %v1457 = vsel %vm1405, %v1452, %v1456
    %v1458 = vrot.slane %v1178, 2
    %v1459 = vsel %vm1405, %v1454, %v1458
    %v1460 = vrot.slane %v1291, 2
    %v1461 = vsel %vm1405, %v1456, %v1460
    %v1462 = vrot.slane %v1181, 2
    %v1463 = vrot.slane %v1184, 2
    %v1464 = vsel %vm1405, %v1462, %v1463
    %v1465 = vrot.slane %v1294, 2
    %v1466 = vrot.slane %v1297, 2
    %v1467 = vsel %vm1405, %v1465, %v1466
    %v1468 = vrot.slane %v1187, 2
    %v1469 = vsel %vm1405, %v1463, %v1468
    %v1470 = vrot.slane %v1300, 2
    %v1471 = vsel %vm1405, %v1466, %v1470
    %v1472 = vrot.slane %v1190, 2
    %v1473 = vsel %vm1405, %v1468, %v1472
    %v1474 = vrot.slane %v1303, 2
    %v1475 = vsel %vm1405, %v1470, %v1474
    %v1476 = vrot.slane %v1193, 2
    %v1477 = vrot.slane %v1196, 2
    %v1478 = vsel %vm1405, %v1476, %v1477
    %v1479 = vrot.slane %v1306, 2
    %v1480 = vrot.slane %v1309, 2
    %v1481 = vsel %vm1405, %v1479, %v1480
    %v1482 = vrot.slane %v1199, 2
    %v1483 = vsel %vm1405, %v1477, %v1482
    %v1484 = vrot.slane %v1312, 2
    %v1485 = vsel %vm1405, %v1480, %v1484
    %v1486 = vrot.slane %v1202, 2
    %v1487 = vsel %vm1405, %v1482, %v1486
    %v1488 = vrot.slane %v1315, 2
    %v1489 = vsel %vm1405, %v1484, %v1488
    %v1490 = vrot.slane %v1205, 2
    %v1491 = vrot.slane %v1208, 2
    %v1492 = vsel %vm1405, %v1490, %v1491
    %v1493 = vrot.slane %v1318, 2
    %v1494 = vrot.slane %v1321, 2
    %v1495 = vsel %vm1405, %v1493, %v1494
    %v1496 = vrot.slane %v1211, 2
    %v1497 = vsel %vm1405, %v1491, %v1496
    %v1498 = vrot.slane %v1324, 2
    %v1499 = vsel %vm1405, %v1494, %v1498
    %v1500 = vrot.slane %v1214, 2
    %v1501 = vsel %vm1405, %v1496, %v1500
    %v1502 = vrot.slane %v1327, 2
    %v1503 = vsel %vm1405, %v1498, %v1502
    %v1504 = vrot.slane %v1217, 2
    %v1505 = vrot.slane %v1220, 2
    %v1506 = vsel %vm1405, %v1504, %v1505
    %v1507 = vrot.slane %v1330, 2
    %v1508 = vrot.slane %v1333, 2
    %v1509 = vsel %vm1405, %v1507, %v1508
    %v1510 = vrot.slane %v1223, 2
    %v1511 = vsel %vm1405, %v1505, %v1510
    %v1512 = vrot.slane %v1336, 2
    %v1513 = vsel %vm1405, %v1508, %v1512
    %v1514 = vrot.slane %v1226, 2
    %v1515 = vsel %vm1405, %v1510, %v1514
    %v1516 = vrot.slane %v1339, 2
    %v1517 = vsel %vm1405, %v1512, %v1516
    %v1582 = vadd.f32 %v1042, %v1408
    %v1583 = vadd.f32 %v1043, %v1411
    %v1584 = vadd.f32 %v1044, %v1413
    %v1585 = vadd.f32 %v1045, %v1415
    %v1586 = vadd.f32 %v1046, %v1417
    %v1587 = vadd.f32 %v1047, %v1419
    %v1588 = vadd.f32 %v1048, %v1416
    %v1589 = vadd.f32 %v1049, %v1418
    %v1590 = vadd.f32 %v1050, %v1422
    %v1591 = vadd.f32 %v1051, %v1425
    %v1592 = vadd.f32 %v1052, %v1427
    %v1593 = vadd.f32 %v1053, %v1429
    %v1594 = vadd.f32 %v1054, %v1431
    %v1595 = vadd.f32 %v1055, %v1433
    %v1596 = vadd.f32 %v1056, %v1430
    %v1597 = vadd.f32 %v1057, %v1432
    %v1598 = vadd.f32 %v1058, %v1436
    %v1599 = vadd.f32 %v1059, %v1439
    %v1600 = vadd.f32 %v1060, %v1441
    %v1601 = vadd.f32 %v1061, %v1443
    %v1602 = vadd.f32 %v1062, %v1445
    %v1603 = vadd.f32 %v1063, %v1447
    %v1604 = vadd.f32 %v1064, %v1444
    %v1605 = vadd.f32 %v1065, %v1446
    %v1606 = vadd.f32 %v1066, %v1450
    %v1607 = vadd.f32 %v1067, %v1453
    %v1608 = vadd.f32 %v1068, %v1455
    %v1609 = vadd.f32 %v1069, %v1457
    %v1610 = vadd.f32 %v1070, %v1459
    %v1611 = vadd.f32 %v1071, %v1461
    %v1612 = vadd.f32 %v1072, %v1458
    %v1613 = vadd.f32 %v1073, %v1460
    %v1614 = vadd.f32 %v1074, %v1464
    %v1615 = vadd.f32 %v1075, %v1467
    %v1616 = vadd.f32 %v1076, %v1469
    %v1617 = vadd.f32 %v1077, %v1471
    %v1618 = vadd.f32 %v1078, %v1473
    %v1619 = vadd.f32 %v1079, %v1475
    %v1620 = vadd.f32 %v1080, %v1472
    %v1621 = vadd.f32 %v1081, %v1474
    %v1622 = vadd.f32 %v1082, %v1478
    %v1623 = vadd.f32 %v1083, %v1481
    %v1624 = vadd.f32 %v1084, %v1483
    %v1625 = vadd.f32 %v1085, %v1485
    %v1626 = vadd.f32 %v1086, %v1487
    %v1627 = vadd.f32 %v1087, %v1489
    %v1628 = vadd.f32 %v1088, %v1486
    %v1629 = vadd.f32 %v1089, %v1488
    %v1630 = vadd.f32 %v1090, %v1492
    %v1631 = vadd.f32 %v1091, %v1495
    %v1632 = vadd.f32 %v1092, %v1497
    %v1633 = vadd.f32 %v1093, %v1499
    %v1634 = vadd.f32 %v1094, %v1501
    %v1635 = vadd.f32 %v1095, %v1503
    %v1636 = vadd.f32 %v1096, %v1500
    %v1637 = vadd.f32 %v1097, %v1502
    %v1638 = vadd.f32 %v1098, %v1506
    %v1639 = vadd.f32 %v1099, %v1509
    %v1640 = vadd.f32 %v1100, %v1511
    %v1641 = vadd.f32 %v1101, %v1513
    %v1642 = vadd.f32 %v1102, %v1515
    %v1643 = vadd.f32 %v1103, %v1517
    %v1644 = vadd.f32 %v1104, %v1514
    %v1645 = vadd.f32 %v1105, %v1516
    %s1646 = scalar_lea.vmem %s1, 192
    %v1647 = vld [vmem:[%s1646] sm:$0xff]
    %v1648 = vld [vmem:[%s1646 + $0x8] sm:$0xff]
    %v1649 = vld [vmem:[%s1646 + $0x10] sm:$0xff]
    %v1650 = vld [vmem:[%s1646 + $0x18] sm:$0xff]
    %v1651 = vld [vmem:[%s1646 + $0x20] sm:$0xff]
    %v1652 = vld [vmem:[%s1646 + $0x28] sm:$0xff]
    %v1653 = vld [vmem:[%s1646 + $0x30] sm:$0xff]
    %v1654 = vld [vmem:[%s1646 + $0x38] sm:$0xff]
    %1655 = vmatpush.msra.mxu0 0.0
    %1656 = vmatpush.msra.mxu0 0.0
    %1657 = vmatpush.msra.mxu0 0.0
    %1658 = vmatpush.msra.mxu0 0.0
    %1659 = vmatpush.msra.mxu0 0.0
    %1660 = vmatpush.msra.mxu0 0.0
    %1661 = vmatpush.msra.mxu0 0.0
    %1662 = vmatpush.msra.mxu0 0.0
    %1663 = vmatpush.msra.mxu0 0.0
    %1664 = vmatpush.msra.mxu0 0.0
    %1665 = vmatpush.msra.mxu0 0.0
    %1666 = vmatpush.msra.mxu0 0.0
    %1667 = vmatpush.msra.mxu0 %v1653
    %1668 = vmatpush.msra.mxu0 %v1651
    %1669 = vmatpush.msra.mxu0 %v1649
    %1670 = vmatpush.msra.mxu0 %v1647
    %1671 = vmatmul.f32.gmra.mxu0 %v245
    %v1672 = vpop.f32.mrf.mxu0
    %v1673 = vadd.f32 0.0, %v1672
    %1674 = vmatmul.f32.gmra.mxu0 %v248
    %v1675 = vpop.f32.mrf.mxu0
    %v1676 = vadd.f32 0.0, %v1675
    %1677 = vmatmul.f32.gmra.mxu0 %v251
    %v1678 = vpop.f32.mrf.mxu0
    %v1679 = vadd.f32 0.0, %v1678
    %1680 = vmatmul.f32.gmra.mxu0 %v254
    %v1681 = vpop.f32.mrf.mxu0
    %v1682 = vadd.f32 0.0, %v1681
    %1683 = vmatmul.f32.gmra.mxu0 %v257
    %v1684 = vpop.f32.mrf.mxu0
    %v1685 = vadd.f32 0.0, %v1684
    %1686 = vmatmul.f32.gmra.mxu0 %v260
    %v1687 = vpop.f32.mrf.mxu0
    %v1688 = vadd.f32 0.0, %v1687
    %1689 = vmatmul.f32.gmra.mxu0 %v263
    %v1690 = vpop.f32.mrf.mxu0
    %v1691 = vadd.f32 0.0, %v1690
    %1692 = vmatmul.f32.gmra.mxu0 %v266
    %v1693 = vpop.f32.mrf.mxu0
    %v1694 = vadd.f32 0.0, %v1693
    %1695 = vmatmul.f32.gmra.mxu0 %v269
    %v1696 = vpop.f32.mrf.mxu0
    %v1697 = vadd.f32 0.0, %v1696
    %1698 = vmatmul.f32.gmra.mxu0 %v272
    %v1699 = vpop.f32.mrf.mxu0
    %v1700 = vadd.f32 0.0, %v1699
    %1701 = vmatmul.f32.gmra.mxu0 %v275
    %v1702 = vpop.f32.mrf.mxu0
    %v1703 = vadd.f32 0.0, %v1702
    %1704 = vmatmul.f32.gmra.mxu0 %v278
    %v1705 = vpop.f32.mrf.mxu0
    %v1706 = vadd.f32 0.0, %v1705
    %1707 = vmatmul.f32.gmra.mxu0 %v281
    %v1708 = vpop.f32.mrf.mxu0
    %v1709 = vadd.f32 0.0, %v1708
    %1710 = vmatmul.f32.gmra.mxu0 %v284
    %v1711 = vpop.f32.mrf.mxu0
    %v1712 = vadd.f32 0.0, %v1711
    %1713 = vmatmul.f32.gmra.mxu0 %v287
    %v1714 = vpop.f32.mrf.mxu0
    %v1715 = vadd.f32 0.0, %v1714
    %1716 = vmatmul.f32.gmra.mxu0 %v290
    %v1717 = vpop.f32.mrf.mxu0
    %v1718 = vadd.f32 0.0, %v1717
    %1719 = vmatmul.f32.gmra.mxu0 %v293
    %v1720 = vpop.f32.mrf.mxu0
    %v1721 = vadd.f32 0.0, %v1720
    %1722 = vmatmul.f32.gmra.mxu0 %v296
    %v1723 = vpop.f32.mrf.mxu0
    %v1724 = vadd.f32 0.0, %v1723
    %1725 = vmatmul.f32.gmra.mxu0 %v299
    %v1726 = vpop.f32.mrf.mxu0
    %v1727 = vadd.f32 0.0, %v1726
    %1728 = vmatmul.f32.gmra.mxu0 %v302
    %v1729 = vpop.f32.mrf.mxu0
    %v1730 = vadd.f32 0.0, %v1729
    %1731 = vmatmul.f32.gmra.mxu0 %v305
    %v1732 = vpop.f32.mrf.mxu0
    %v1733 = vadd.f32 0.0, %v1732
    %1734 = vmatmul.f32.gmra.mxu0 %v308
    %v1735 = vpop.f32.mrf.mxu0
    %v1736 = vadd.f32 0.0, %v1735
    %1737 = vmatmul.f32.gmra.mxu0 %v311
    %v1738 = vpop.f32.mrf.mxu0
    %v1739 = vadd.f32 0.0, %v1738
    %1740 = vmatmul.f32.gmra.mxu0 %v314
    %v1741 = vpop.f32.mrf.mxu0
    %v1742 = vadd.f32 0.0, %v1741
    %1743 = vmatmul.f32.gmra.mxu0 %v317
    %v1744 = vpop.f32.mrf.mxu0
    %v1745 = vadd.f32 0.0, %v1744
    %1746 = vmatmul.f32.gmra.mxu0 %v320
    %v1747 = vpop.f32.mrf.mxu0
    %v1748 = vadd.f32 0.0, %v1747
    %1749 = vmatmul.f32.gmra.mxu0 %v323
    %v1750 = vpop.f32.mrf.mxu0
    %v1751 = vadd.f32 0.0, %v1750
    %1752 = vmatmul.f32.gmra.mxu0 %v326
    %v1753 = vpop.f32.mrf.mxu0
    %v1754 = vadd.f32 0.0, %v1753
    %1755 = vmatmul.f32.gmra.mxu0 %v329
    %v1756 = vpop.f32.mrf.mxu0
    %v1757 = vadd.f32 0.0, %v1756
    %1758 = vmatmul.f32.gmra.mxu0 %v332
    %v1759 = vpop.f32.mrf.mxu0
    %v1760 = vadd.f32 0.0, %v1759
    %1761 = vmatmul.f32.gmra.mxu0 %v335
    %v1762 = vpop.f32.mrf.mxu0
    %v1763 = vadd.f32 0.0, %v1762
    %1764 = vmatmul.f32.gmra.mxu0 %v338
    %v1765 = vpop.f32.mrf.mxu0
    %v1766 = vadd.f32 0.0, %v1765
    %1767 = vdwg.mxu0
    %1768 = vmatpush.msra.mxu0 0.0
    %1769 = vmatpush.msra.mxu0 0.0
    %1770 = vmatpush.msra.mxu0 0.0
    %1771 = vmatpush.msra.mxu0 0.0
    %1772 = vmatpush.msra.mxu0 0.0
    %1773 = vmatpush.msra.mxu0 0.0
    %1774 = vmatpush.msra.mxu0 0.0
    %1775 = vmatpush.msra.mxu0 0.0
    %1776 = vmatpush.msra.mxu0 0.0
    %1777 = vmatpush.msra.mxu0 0.0
    %1778 = vmatpush.msra.mxu0 0.0
    %1779 = vmatpush.msra.mxu0 0.0
    %1780 = vmatpush.msra.mxu0 %v1654
    %1781 = vmatpush.msra.mxu0 %v1652
    %1782 = vmatpush.msra.mxu0 %v1650
    %1783 = vmatpush.msra.mxu0 %v1648
    %1784 = vmatmul.f32.gmra.mxu0 %v245
    %v1785 = vpop.f32.mrf.mxu0
    %v1786 = vadd.f32 0.0, %v1785
    %1787 = vmatmul.f32.gmra.mxu0 %v248
    %v1788 = vpop.f32.mrf.mxu0
    %v1789 = vadd.f32 0.0, %v1788
    %1790 = vmatmul.f32.gmra.mxu0 %v251
    %v1791 = vpop.f32.mrf.mxu0
    %v1792 = vadd.f32 0.0, %v1791
    %1793 = vmatmul.f32.gmra.mxu0 %v254
    %v1794 = vpop.f32.mrf.mxu0
    %v1795 = vadd.f32 0.0, %v1794
    %1796 = vmatmul.f32.gmra.mxu0 %v257
    %v1797 = vpop.f32.mrf.mxu0
    %v1798 = vadd.f32 0.0, %v1797
    %1799 = vmatmul.f32.gmra.mxu0 %v260
    %v1800 = vpop.f32.mrf.mxu0
    %v1801 = vadd.f32 0.0, %v1800
    %1802 = vmatmul.f32.gmra.mxu0 %v263
    %v1803 = vpop.f32.mrf.mxu0
    %v1804 = vadd.f32 0.0, %v1803
    %1805 = vmatmul.f32.gmra.mxu0 %v266
    %v1806 = vpop.f32.mrf.mxu0
    %v1807 = vadd.f32 0.0, %v1806
    %1808 = vmatmul.f32.gmra.mxu0 %v269
    %v1809 = vpop.f32.mrf.mxu0
    %v1810 = vadd.f32 0.0, %v1809
    %1811 = vmatmul.f32.gmra.mxu0 %v272
    %v1812 = vpop.f32.mrf.mxu0
    %v1813 = vadd.f32 0.0, %v1812
    %1814 = vmatmul.f32.gmra.mxu0 %v275
    %v1815 = vpop.f32.mrf.mxu0
    %v1816 = vadd.f32 0.0, %v1815
    %1817 = vmatmul.f32.gmra.mxu0 %v278
    %v1818 = vpop.f32.mrf.mxu0
    %v1819 = vadd.f32 0.0, %v1818
    %1820 = vmatmul.f32.gmra.mxu0 %v281
    %v1821 = vpop.f32.mrf.mxu0
    %v1822 = vadd.f32 0.0, %v1821
    %1823 = vmatmul.f32.gmra.mxu0 %v284
    %v1824 = vpop.f32.mrf.mxu0
    %v1825 = vadd.f32 0.0, %v1824
    %1826 = vmatmul.f32.gmra.mxu0 %v287
    %v1827 = vpop.f32.mrf.mxu0
    %v1828 = vadd.f32 0.0, %v1827
    %1829 = vmatmul.f32.gmra.mxu0 %v290
    %v1830 = vpop.f32.mrf.mxu0
    %v1831 = vadd.f32 0.0, %v1830
    %1832 = vmatmul.f32.gmra.mxu0 %v293
    %v1833 = vpop.f32.mrf.mxu0
    %v1834 = vadd.f32 0.0, %v1833
    %1835 = vmatmul.f32.gmra.mxu0 %v296
    %v1836 = vpop.f32.mrf.mxu0
    %v1837 = vadd.f32 0.0, %v1836
    %1838 = vmatmul.f32.gmra.mxu0 %v299
    %v1839 = vpop.f32.mrf.mxu0
    %v1840 = vadd.f32 0.0, %v1839
    %1841 = vmatmul.f32.gmra.mxu0 %v302
    %v1842 = vpop.f32.mrf.mxu0
    %v1843 = vadd.f32 0.0, %v1842
    %1844 = vmatmul.f32.gmra.mxu0 %v305
    %v1845 = vpop.f32.mrf.mxu0
    %v1846 = vadd.f32 0.0, %v1845
    %1847 = vmatmul.f32.gmra.mxu0 %v308
    %v1848 = vpop.f32.mrf.mxu0
    %v1849 = vadd.f32 0.0, %v1848
    %1850 = vmatmul.f32.gmra.mxu0 %v311
    %v1851 = vpop.f32.mrf.mxu0
    %v1852 = vadd.f32 0.0, %v1851
    %1853 = vmatmul.f32.gmra.mxu0 %v314
    %v1854 = vpop.f32.mrf.mxu0
    %v1855 = vadd.f32 0.0, %v1854
    %1856 = vmatmul.f32.gmra.mxu0 %v317
    %v1857 = vpop.f32.mrf.mxu0
    %v1858 = vadd.f32 0.0, %v1857
    %1859 = vmatmul.f32.gmra.mxu0 %v320
    %v1860 = vpop.f32.mrf.mxu0
    %v1861 = vadd.f32 0.0, %v1860
    %1862 = vmatmul.f32.gmra.mxu0 %v323
    %v1863 = vpop.f32.mrf.mxu0
    %v1864 = vadd.f32 0.0, %v1863
    %1865 = vmatmul.f32.gmra.mxu0 %v326
    %v1866 = vpop.f32.mrf.mxu0
    %v1867 = vadd.f32 0.0, %v1866
    %1868 = vmatmul.f32.gmra.mxu0 %v329
    %v1869 = vpop.f32.mrf.mxu0
    %v1870 = vadd.f32 0.0, %v1869
    %1871 = vmatmul.f32.gmra.mxu0 %v332
    %v1872 = vpop.f32.mrf.mxu0
    %v1873 = vadd.f32 0.0, %v1872
    %1874 = vmatmul.f32.gmra.mxu0 %v335
    %v1875 = vpop.f32.mrf.mxu0
    %v1876 = vadd.f32 0.0, %v1875
    %1877 = vmatmul.f32.gmra.mxu0 %v338
    %v1878 = vpop.f32.mrf.mxu0
    %v1879 = vadd.f32 0.0, %v1878
    %1880 = vdwg.mxu0
    %vm1945 = vcmask 1044480
    %v1946 = vrot.slane %v1673, 3
    %v1947 = vrot.slane %v1676, 3
    %v1948 = vsel %vm1945, %v1946, %v1947
    %v1949 = vrot.slane %v1786, 3
    %v1950 = vrot.slane %v1789, 3
    %v1951 = vsel %vm1945, %v1949, %v1950
    %v1952 = vrot.slane %v1679, 3
    %v1953 = vsel %vm1945, %v1947, %v1952
    %v1954 = vrot.slane %v1792, 3
    %v1955 = vsel %vm1945, %v1950, %v1954
    %v1956 = vrot.slane %v1682, 3
    %v1957 = vsel %vm1945, %v1952, %v1956
    %v1958 = vrot.slane %v1795, 3
    %v1959 = vsel %vm1945, %v1954, %v1958
    %v1960 = vrot.slane %v1685, 3
    %v1961 = vrot.slane %v1688, 3
    %v1962 = vsel %vm1945, %v1960, %v1961
    %v1963 = vrot.slane %v1798, 3
    %v1964 = vrot.slane %v1801, 3
    %v1965 = vsel %vm1945, %v1963, %v1964
    %v1966 = vrot.slane %v1691, 3
    %v1967 = vsel %vm1945, %v1961, %v1966
    %v1968 = vrot.slane %v1804, 3
    %v1969 = vsel %vm1945, %v1964, %v1968
    %v1970 = vrot.slane %v1694, 3
    %v1971 = vsel %vm1945, %v1966, %v1970
    %v1972 = vrot.slane %v1807, 3
    %v1973 = vsel %vm1945, %v1968, %v1972
    %v1974 = vrot.slane %v1697, 3
    %v1975 = vrot.slane %v1700, 3
    %v1976 = vsel %vm1945, %v1974, %v1975
    %v1977 = vrot.slane %v1810, 3
    %v1978 = vrot.slane %v1813, 3
    %v1979 = vsel %vm1945, %v1977, %v1978
    %v1980 = vrot.slane %v1703, 3
    %v1981 = vsel %vm1945, %v1975, %v1980
    %v1982 = vrot.slane %v1816, 3
    %v1983 = vsel %vm1945, %v1978, %v1982
    %v1984 = vrot.slane %v1706, 3
    %v1985 = vsel %vm1945, %v1980, %v1984
    %v1986 = vrot.slane %v1819, 3
    %v1987 = vsel %vm1945, %v1982, %v1986
    %v1988 = vrot.slane %v1709, 3
    %v1989 = vrot.slane %v1712, 3
    %v1990 = vsel %vm1945, %v1988, %v1989
    %v1991 = vrot.slane %v1822, 3
    %v1992 = vrot.slane %v1825, 3
    %v1993 = vsel %vm1945, %v1991, %v1992
    %v1994 = vrot.slane %v1715, 3
    %v1995 = vsel %vm1945, %v1989, %v1994
    %v1996 = vrot.slane %v1828, 3
    %v1997 = vsel %vm1945, %v1992, %v1996
    %v1998 = vrot.slane %v1718, 3
    %v1999 = vsel %vm1945, %v1994, %v1998
    %v2000 = vrot.slane %v1831, 3
    %v2001 = vsel %vm1945, %v1996, %v2000
    %v2002 = vrot.slane %v1721, 3
    %v2003 = vrot.slane %v1724, 3
    %v2004 = vsel %vm1945, %v2002, %v2003
    %v2005 = vrot.slane %v1834, 3
    %v2006 = vrot.slane %v1837, 3
    %v2007 = vsel %vm1945, %v2005, %v2006
    %v2008 = vrot.slane %v1727, 3
    %v2009 = vsel %vm1945, %v2003, %v2008
    %v2010 = vrot.slane %v1840, 3
    %v2011 = vsel %vm1945, %v2006, %v2010
    %v2012 = vrot.slane %v1730, 3
    %v2013 = vsel %vm1945, %v2008, %v2012
    %v2014 = vrot.slane %v1843, 3
    %v2015 = vsel %vm1945, %v2010, %v2014
    %v2016 = vrot.slane %v1733, 3
    %v2017 = vrot.slane %v1736, 3
    %v2018 = vsel %vm1945, %v2016, %v2017
    %v2019 = vrot.slane %v1846, 3
    %v2020 = vrot.slane %v1849, 3
    %v2021 = vsel %vm1945, %v2019, %v2020
    %v2022 = vrot.slane %v1739, 3
    %v2023 = vsel %vm1945, %v2017, %v2022
    %v2024 = vrot.slane %v1852, 3
    %v2025 = vsel %vm1945, %v2020, %v2024
    %v2026 = vrot.slane %v1742, 3
    %v2027 = vsel %vm1945, %v2022, %v2026
    %v2028 = vrot.slane %v1855, 3
    %v2029 = vsel %vm1945, %v2024, %v2028
    %v2030 = vrot.slane %v1745, 3
    %v2031 = vrot.slane %v1748, 3
    %v2032 = vsel %vm1945, %v2030, %v2031
    %v2033 = vrot.slane %v1858, 3
    %v2034 = vrot.slane %v1861, 3
    %v2035 = vsel %vm1945, %v2033, %v2034
    %v2036 = vrot.slane %v1751, 3
    %v2037 = vsel %vm1945, %v2031, %v2036
    %v2038 = vrot.slane %v1864, 3
    %v2039 = vsel %vm1945, %v2034, %v2038
    %v2040 = vrot.slane %v1754, 3
    %v2041 = vsel %vm1945, %v2036, %v2040
    %v2042 = vrot.slane %v1867, 3
    %v2043 = vsel %vm1945, %v2038, %v2042
    %v2044 = vrot.slane %v1757, 3
    %v2045 = vrot.slane %v1760, 3
    %v2046 = vsel %vm1945, %v2044, %v2045
    %v2047 = vrot.slane %v1870, 3
    %v2048 = vrot.slane %v1873, 3
    %v2049 = vsel %vm1945, %v2047, %v2048
    %v2050 = vrot.slane %v1763, 3
    %v2051 = vsel %vm1945, %v2045, %v2050
    %v2052 = vrot.slane %v1876, 3
    %v2053 = vsel %vm1945, %v2048, %v2052
    %v2054 = vrot.slane %v1766, 3
    %v2055 = vsel %vm1945, %v2050, %v2054
    %v2056 = vrot.slane %v1879, 3
    %v2057 = vsel %vm1945, %v2052, %v2056
    %v2122 = vadd.f32 %v1582, %v1948
    %v2123 = vadd.f32 %v1583, %v1951
    %v2124 = vadd.f32 %v1584, %v1953
    %v2125 = vadd.f32 %v1585, %v1955
    %v2126 = vadd.f32 %v1586, %v1957
    %v2127 = vadd.f32 %v1587, %v1959
    %v2128 = vadd.f32 %v1588, %v1956
    %v2129 = vadd.f32 %v1589, %v1958
    %v2130 = vadd.f32 %v1590, %v1962
    %v2131 = vadd.f32 %v1591, %v1965
    %v2132 = vadd.f32 %v1592, %v1967
    %v2133 = vadd.f32 %v1593, %v1969
    %v2134 = vadd.f32 %v1594, %v1971
    %v2135 = vadd.f32 %v1595, %v1973
    %v2136 = vadd.f32 %v1596, %v1970
    %v2137 = vadd.f32 %v1597, %v1972
    %v2138 = vadd.f32 %v1598, %v1976
    %v2139 = vadd.f32 %v1599, %v1979
    %v2140 = vadd.f32 %v1600, %v1981
    %v2141 = vadd.f32 %v1601, %v1983
    %v2142 = vadd.f32 %v1602, %v1985
    %v2143 = vadd.f32 %v1603, %v1987
    %v2144 = vadd.f32 %v1604, %v1984
    %v2145 = vadd.f32 %v1605, %v1986
    %v2146 = vadd.f32 %v1606, %v1990
    %v2147 = vadd.f32 %v1607, %v1993
    %v2148 = vadd.f32 %v1608, %v1995
    %v2149 = vadd.f32 %v1609, %v1997
    %v2150 = vadd.f32 %v1610, %v1999
    %v2151 = vadd.f32 %v1611, %v2001
    %v2152 = vadd.f32 %v1612, %v1998
    %v2153 = vadd.f32 %v1613, %v2000
    %v2154 = vadd.f32 %v1614, %v2004
    %v2155 = vadd.f32 %v1615, %v2007
    %v2156 = vadd.f32 %v1616, %v2009
    %v2157 = vadd.f32 %v1617, %v2011
    %v2158 = vadd.f32 %v1618, %v2013
    %v2159 = vadd.f32 %v1619, %v2015
    %v2160 = vadd.f32 %v1620, %v2012
    %v2161 = vadd.f32 %v1621, %v2014
    %v2162 = vadd.f32 %v1622, %v2018
    %v2163 = vadd.f32 %v1623, %v2021
    %v2164 = vadd.f32 %v1624, %v2023
    %v2165 = vadd.f32 %v1625, %v2025
    %v2166 = vadd.f32 %v1626, %v2027
    %v2167 = vadd.f32 %v1627, %v2029
    %v2168 = vadd.f32 %v1628, %v2026
    %v2169 = vadd.f32 %v1629, %v2028
    %v2170 = vadd.f32 %v1630, %v2032
    %v2171 = vadd.f32 %v1631, %v2035
    %v2172 = vadd.f32 %v1632, %v2037
    %v2173 = vadd.f32 %v1633, %v2039
    %v2174 = vadd.f32 %v1634, %v2041
    %v2175 = vadd.f32 %v1635, %v2043
    %v2176 = vadd.f32 %v1636, %v2040
    %v2177 = vadd.f32 %v1637, %v2042
    %v2178 = vadd.f32 %v1638, %v2046
    %v2179 = vadd.f32 %v1639, %v2049
    %v2180 = vadd.f32 %v1640, %v2051
    %v2181 = vadd.f32 %v1641, %v2053
    %v2182 = vadd.f32 %v1642, %v2055
    %v2183 = vadd.f32 %v1643, %v2057
    %v2184 = vadd.f32 %v1644, %v2054
    %v2185 = vadd.f32 %v1645, %v2056
    %s2186 = scalar_lea.vmem %s1, 256
    %v2187 = vld [vmem:[%s2186] sm:$0xff]
    %v2188 = vld [vmem:[%s2186 + $0x8] sm:$0xff]
    %v2189 = vld [vmem:[%s2186 + $0x10] sm:$0xff]
    %v2190 = vld [vmem:[%s2186 + $0x18] sm:$0xff]
    %v2191 = vld [vmem:[%s2186 + $0x20] sm:$0xff]
    %v2192 = vld [vmem:[%s2186 + $0x28] sm:$0xff]
    %v2193 = vld [vmem:[%s2186 + $0x30] sm:$0xff]
    %v2194 = vld [vmem:[%s2186 + $0x38] sm:$0xff]
    %2195 = vmatpush.msra.mxu0 0.0
    %2196 = vmatpush.msra.mxu0 0.0
    %2197 = vmatpush.msra.mxu0 0.0
    %2198 = vmatpush.msra.mxu0 0.0
    %2199 = vmatpush.msra.mxu0 0.0
    %2200 = vmatpush.msra.mxu0 0.0
    %2201 = vmatpush.msra.mxu0 0.0
    %2202 = vmatpush.msra.mxu0 0.0
    %2203 = vmatpush.msra.mxu0 0.0
    %2204 = vmatpush.msra.mxu0 0.0
    %2205 = vmatpush.msra.mxu0 0.0
    %2206 = vmatpush.msra.mxu0 0.0
    %2207 = vmatpush.msra.mxu0 %v2193
    %2208 = vmatpush.msra.mxu0 %v2191
    %2209 = vmatpush.msra.mxu0 %v2189
    %2210 = vmatpush.msra.mxu0 %v2187
    %2211 = vmatmul.f32.gmra.mxu0 %v245
    %v2212 = vpop.f32.mrf.mxu0
    %v2213 = vadd.f32 0.0, %v2212
    %2214 = vmatmul.f32.gmra.mxu0 %v248
    %v2215 = vpop.f32.mrf.mxu0
    %v2216 = vadd.f32 0.0, %v2215
    %2217 = vmatmul.f32.gmra.mxu0 %v251
    %v2218 = vpop.f32.mrf.mxu0
    %v2219 = vadd.f32 0.0, %v2218
    %2220 = vmatmul.f32.gmra.mxu0 %v254
    %v2221 = vpop.f32.mrf.mxu0
    %v2222 = vadd.f32 0.0, %v2221
    %2223 = vmatmul.f32.gmra.mxu0 %v257
    %v2224 = vpop.f32.mrf.mxu0
    %v2225 = vadd.f32 0.0, %v2224
    %2226 = vmatmul.f32.gmra.mxu0 %v260
    %v2227 = vpop.f32.mrf.mxu0
    %v2228 = vadd.f32 0.0, %v2227
    %2229 = vmatmul.f32.gmra.mxu0 %v263
    %v2230 = vpop.f32.mrf.mxu0
    %v2231 = vadd.f32 0.0, %v2230
    %2232 = vmatmul.f32.gmra.mxu0 %v266
    %v2233 = vpop.f32.mrf.mxu0
    %v2234 = vadd.f32 0.0, %v2233
    %2235 = vmatmul.f32.gmra.mxu0 %v269
    %v2236 = vpop.f32.mrf.mxu0
    %v2237 = vadd.f32 0.0, %v2236
    %2238 = vmatmul.f32.gmra.mxu0 %v272
    %v2239 = vpop.f32.mrf.mxu0
    %v2240 = vadd.f32 0.0, %v2239
    %2241 = vmatmul.f32.gmra.mxu0 %v275
    %v2242 = vpop.f32.mrf.mxu0
    %v2243 = vadd.f32 0.0, %v2242
    %2244 = vmatmul.f32.gmra.mxu0 %v278
    %v2245 = vpop.f32.mrf.mxu0
    %v2246 = vadd.f32 0.0, %v2245
    %2247 = vmatmul.f32.gmra.mxu0 %v281
    %v2248 = vpop.f32.mrf.mxu0
    %v2249 = vadd.f32 0.0, %v2248
    %2250 = vmatmul.f32.gmra.mxu0 %v284
    %v2251 = vpop.f32.mrf.mxu0
    %v2252 = vadd.f32 0.0, %v2251
    %2253 = vmatmul.f32.gmra.mxu0 %v287
    %v2254 = vpop.f32.mrf.mxu0
    %v2255 = vadd.f32 0.0, %v2254
    %2256 = vmatmul.f32.gmra.mxu0 %v290
    %v2257 = vpop.f32.mrf.mxu0
    %v2258 = vadd.f32 0.0, %v2257
    %2259 = vmatmul.f32.gmra.mxu0 %v293
    %v2260 = vpop.f32.mrf.mxu0
    %v2261 = vadd.f32 0.0, %v2260
    %2262 = vmatmul.f32.gmra.mxu0 %v296
    %v2263 = vpop.f32.mrf.mxu0
    %v2264 = vadd.f32 0.0, %v2263
    %2265 = vmatmul.f32.gmra.mxu0 %v299
    %v2266 = vpop.f32.mrf.mxu0
    %v2267 = vadd.f32 0.0, %v2266
    %2268 = vmatmul.f32.gmra.mxu0 %v302
    %v2269 = vpop.f32.mrf.mxu0
    %v2270 = vadd.f32 0.0, %v2269
    %2271 = vmatmul.f32.gmra.mxu0 %v305
    %v2272 = vpop.f32.mrf.mxu0
    %v2273 = vadd.f32 0.0, %v2272
    %2274 = vmatmul.f32.gmra.mxu0 %v308
    %v2275 = vpop.f32.mrf.mxu0
    %v2276 = vadd.f32 0.0, %v2275
    %2277 = vmatmul.f32.gmra.mxu0 %v311
    %v2278 = vpop.f32.mrf.mxu0
    %v2279 = vadd.f32 0.0, %v2278
    %2280 = vmatmul.f32.gmra.mxu0 %v314
    %v2281 = vpop.f32.mrf.mxu0
    %v2282 = vadd.f32 0.0, %v2281
    %2283 = vmatmul.f32.gmra.mxu0 %v317
    %v2284 = vpop.f32.mrf.mxu0
    %v2285 = vadd.f32 0.0, %v2284
    %2286 = vmatmul.f32.gmra.mxu0 %v320
    %v2287 = vpop.f32.mrf.mxu0
    %v2288 = vadd.f32 0.0, %v2287
    %2289 = vmatmul.f32.gmra.mxu0 %v323
    %v2290 = vpop.f32.mrf.mxu0
    %v2291 = vadd.f32 0.0, %v2290
    %2292 = vmatmul.f32.gmra.mxu0 %v326
    %v2293 = vpop.f32.mrf.mxu0
    %v2294 = vadd.f32 0.0, %v2293
    %2295 = vmatmul.f32.gmra.mxu0 %v329
    %v2296 = vpop.f32.mrf.mxu0
    %v2297 = vadd.f32 0.0, %v2296
    %2298 = vmatmul.f32.gmra.mxu0 %v332
    %v2299 = vpop.f32.mrf.mxu0
    %v2300 = vadd.f32 0.0, %v2299
    %2301 = vmatmul.f32.gmra.mxu0 %v335
    %v2302 = vpop.f32.mrf.mxu0
    %v2303 = vadd.f32 0.0, %v2302
    %2304 = vmatmul.f32.gmra.mxu0 %v338
    %v2305 = vpop.f32.mrf.mxu0
    %v2306 = vadd.f32 0.0, %v2305
    %2307 = vdwg.mxu0
    %2308 = vmatpush.msra.mxu0 0.0
    %2309 = vmatpush.msra.mxu0 0.0
    %2310 = vmatpush.msra.mxu0 0.0
    %2311 = vmatpush.msra.mxu0 0.0
    %2312 = vmatpush.msra.mxu0 0.0
    %2313 = vmatpush.msra.mxu0 0.0
    %2314 = vmatpush.msra.mxu0 0.0
    %2315 = vmatpush.msra.mxu0 0.0
    %2316 = vmatpush.msra.mxu0 0.0
    %2317 = vmatpush.msra.mxu0 0.0
    %2318 = vmatpush.msra.mxu0 0.0
    %2319 = vmatpush.msra.mxu0 0.0
    %2320 = vmatpush.msra.mxu0 %v2194
    %2321 = vmatpush.msra.mxu0 %v2192
    %2322 = vmatpush.msra.mxu0 %v2190
    %2323 = vmatpush.msra.mxu0 %v2188
    %2324 = vmatmul.f32.gmra.mxu0 %v245
    %v2325 = vpop.f32.mrf.mxu0
    %v2326 = vadd.f32 0.0, %v2325
    %2327 = vmatmul.f32.gmra.mxu0 %v248
    %v2328 = vpop.f32.mrf.mxu0
    %v2329 = vadd.f32 0.0, %v2328
    %2330 = vmatmul.f32.gmra.mxu0 %v251
    %v2331 = vpop.f32.mrf.mxu0
    %v2332 = vadd.f32 0.0, %v2331
    %2333 = vmatmul.f32.gmra.mxu0 %v254
    %v2334 = vpop.f32.mrf.mxu0
    %v2335 = vadd.f32 0.0, %v2334
    %2336 = vmatmul.f32.gmra.mxu0 %v257
    %v2337 = vpop.f32.mrf.mxu0
    %v2338 = vadd.f32 0.0, %v2337
    %2339 = vmatmul.f32.gmra.mxu0 %v260
    %v2340 = vpop.f32.mrf.mxu0
    %v2341 = vadd.f32 0.0, %v2340
    %2342 = vmatmul.f32.gmra.mxu0 %v263
    %v2343 = vpop.f32.mrf.mxu0
    %v2344 = vadd.f32 0.0, %v2343
    %2345 = vmatmul.f32.gmra.mxu0 %v266
    %v2346 = vpop.f32.mrf.mxu0
    %v2347 = vadd.f32 0.0, %v2346
    %2348 = vmatmul.f32.gmra.mxu0 %v269
    %v2349 = vpop.f32.mrf.mxu0
    %v2350 = vadd.f32 0.0, %v2349
    %2351 = vmatmul.f32.gmra.mxu0 %v272
    %v2352 = vpop.f32.mrf.mxu0
    %v2353 = vadd.f32 0.0, %v2352
    %2354 = vmatmul.f32.gmra.mxu0 %v275
    %v2355 = vpop.f32.mrf.mxu0
    %v2356 = vadd.f32 0.0, %v2355
    %2357 = vmatmul.f32.gmra.mxu0 %v278
    %v2358 = vpop.f32.mrf.mxu0
    %v2359 = vadd.f32 0.0, %v2358
    %2360 = vmatmul.f32.gmra.mxu0 %v281
    %v2361 = vpop.f32.mrf.mxu0
    %v2362 = vadd.f32 0.0, %v2361
    %2363 = vmatmul.f32.gmra.mxu0 %v284
    %v2364 = vpop.f32.mrf.mxu0
    %v2365 = vadd.f32 0.0, %v2364
    %2366 = vmatmul.f32.gmra.mxu0 %v287
    %v2367 = vpop.f32.mrf.mxu0
    %v2368 = vadd.f32 0.0, %v2367
    %2369 = vmatmul.f32.gmra.mxu0 %v290
    %v2370 = vpop.f32.mrf.mxu0
    %v2371 = vadd.f32 0.0, %v2370
    %2372 = vmatmul.f32.gmra.mxu0 %v293
    %v2373 = vpop.f32.mrf.mxu0
    %v2374 = vadd.f32 0.0, %v2373
    %2375 = vmatmul.f32.gmra.mxu0 %v296
    %v2376 = vpop.f32.mrf.mxu0
    %v2377 = vadd.f32 0.0, %v2376
    %2378 = vmatmul.f32.gmra.mxu0 %v299
    %v2379 = vpop.f32.mrf.mxu0
    %v2380 = vadd.f32 0.0, %v2379
    %2381 = vmatmul.f32.gmra.mxu0 %v302
    %v2382 = vpop.f32.mrf.mxu0
    %v2383 = vadd.f32 0.0, %v2382
    %2384 = vmatmul.f32.gmra.mxu0 %v305
    %v2385 = vpop.f32.mrf.mxu0
    %v2386 = vadd.f32 0.0, %v2385
    %2387 = vmatmul.f32.gmra.mxu0 %v308
    %v2388 = vpop.f32.mrf.mxu0
    %v2389 = vadd.f32 0.0, %v2388
    %2390 = vmatmul.f32.gmra.mxu0 %v311
    %v2391 = vpop.f32.mrf.mxu0
    %v2392 = vadd.f32 0.0, %v2391
    %2393 = vmatmul.f32.gmra.mxu0 %v314
    %v2394 = vpop.f32.mrf.mxu0
    %v2395 = vadd.f32 0.0, %v2394
    %2396 = vmatmul.f32.gmra.mxu0 %v317
    %v2397 = vpop.f32.mrf.mxu0
    %v2398 = vadd.f32 0.0, %v2397
    %2399 = vmatmul.f32.gmra.mxu0 %v320
    %v2400 = vpop.f32.mrf.mxu0
    %v2401 = vadd.f32 0.0, %v2400
    %2402 = vmatmul.f32.gmra.mxu0 %v323
    %v2403 = vpop.f32.mrf.mxu0
    %v2404 = vadd.f32 0.0, %v2403
    %2405 = vmatmul.f32.gmra.mxu0 %v326
    %v2406 = vpop.f32.mrf.mxu0
    %v2407 = vadd.f32 0.0, %v2406
    %2408 = vmatmul.f32.gmra.mxu0 %v329
    %v2409 = vpop.f32.mrf.mxu0
    %v2410 = vadd.f32 0.0, %v2409
    %2411 = vmatmul.f32.gmra.mxu0 %v332
    %v2412 = vpop.f32.mrf.mxu0
    %v2413 = vadd.f32 0.0, %v2412
    %2414 = vmatmul.f32.gmra.mxu0 %v335
    %v2415 = vpop.f32.mrf.mxu0
    %v2416 = vadd.f32 0.0, %v2415
    %2417 = vmatmul.f32.gmra.mxu0 %v338
    %v2418 = vpop.f32.mrf.mxu0
    %v2419 = vadd.f32 0.0, %v2418
    %2420 = vdwg.mxu0
    %vm2485 = vcmask 1043456
    %v2486 = vrot.slane %v2213, 4
    %v2487 = vrot.slane %v2216, 4
    %v2488 = vsel %vm2485, %v2486, %v2487
    %v2489 = vrot.slane %v2326, 4
    %v2490 = vrot.slane %v2329, 4
    %v2491 = vsel %vm2485, %v2489, %v2490
    %v2492 = vrot.slane %v2219, 4
    %v2493 = vsel %vm2485, %v2487, %v2492
    %v2494 = vrot.slane %v2332, 4
    %v2495 = vsel %vm2485, %v2490, %v2494
    %v2496 = vrot.slane %v2222, 4
    %v2497 = vsel %vm2485, %v2492, %v2496
    %v2498 = vrot.slane %v2335, 4
    %v2499 = vsel %vm2485, %v2494, %v2498
    %v2500 = vrot.slane %v2225, 4
    %v2501 = vrot.slane %v2228, 4
    %v2502 = vsel %vm2485, %v2500, %v2501
    %v2503 = vrot.slane %v2338, 4
    %v2504 = vrot.slane %v2341, 4
    %v2505 = vsel %vm2485, %v2503, %v2504
    %v2506 = vrot.slane %v2231, 4
    %v2507 = vsel %vm2485, %v2501, %v2506
    %v2508 = vrot.slane %v2344, 4
    %v2509 = vsel %vm2485, %v2504, %v2508
    %v2510 = vrot.slane %v2234, 4
    %v2511 = vsel %vm2485, %v2506, %v2510
    %v2512 = vrot.slane %v2347, 4
    %v2513 = vsel %vm2485, %v2508, %v2512
    %v2514 = vrot.slane %v2237, 4
    %v2515 = vrot.slane %v2240, 4
    %v2516 = vsel %vm2485, %v2514, %v2515
    %v2517 = vrot.slane %v2350, 4
    %v2518 = vrot.slane %v2353, 4
    %v2519 = vsel %vm2485, %v2517, %v2518
    %v2520 = vrot.slane %v2243, 4
    %v2521 = vsel %vm2485, %v2515, %v2520
    %v2522 = vrot.slane %v2356, 4
    %v2523 = vsel %vm2485, %v2518, %v2522
    %v2524 = vrot.slane %v2246, 4
    %v2525 = vsel %vm2485, %v2520, %v2524
    %v2526 = vrot.slane %v2359, 4
    %v2527 = vsel %vm2485, %v2522, %v2526
    %v2528 = vrot.slane %v2249, 4
    %v2529 = vrot.slane %v2252, 4
    %v2530 = vsel %vm2485, %v2528, %v2529
    %v2531 = vrot.slane %v2362, 4
    %v2532 = vrot.slane %v2365, 4
    %v2533 = vsel %vm2485, %v2531, %v2532
    %v2534 = vrot.slane %v2255, 4
    %v2535 = vsel %vm2485, %v2529, %v2534
    %v2536 = vrot.slane %v2368, 4
    %v2537 = vsel %vm2485, %v2532, %v2536
    %v2538 = vrot.slane %v2258, 4
    %v2539 = vsel %vm2485, %v2534, %v2538
    %v2540 = vrot.slane %v2371, 4
    %v2541 = vsel %vm2485, %v2536, %v2540
    %v2542 = vrot.slane %v2261, 4
    %v2543 = vrot.slane %v2264, 4
    %v2544 = vsel %vm2485, %v2542, %v2543
    %v2545 = vrot.slane %v2374, 4
    %v2546 = vrot.slane %v2377, 4
    %v2547 = vsel %vm2485, %v2545, %v2546
    %v2548 = vrot.slane %v2267, 4
    %v2549 = vsel %vm2485, %v2543, %v2548
    %v2550 = vrot.slane %v2380, 4
    %v2551 = vsel %vm2485, %v2546, %v2550
    %v2552 = vrot.slane %v2270, 4
    %v2553 = vsel %vm2485, %v2548, %v2552
    %v2554 = vrot.slane %v2383, 4
    %v2555 = vsel %vm2485, %v2550, %v2554
    %v2556 = vrot.slane %v2273, 4
    %v2557 = vrot.slane %v2276, 4
    %v2558 = vsel %vm2485, %v2556, %v2557
    %v2559 = vrot.slane %v2386, 4
    %v2560 = vrot.slane %v2389, 4
    %v2561 = vsel %vm2485, %v2559, %v2560
    %v2562 = vrot.slane %v2279, 4
    %v2563 = vsel %vm2485, %v2557, %v2562
    %v2564 = vrot.slane %v2392, 4
    %v2565 = vsel %vm2485, %v2560, %v2564
    %v2566 = vrot.slane %v2282, 4
    %v2567 = vsel %vm2485, %v2562, %v2566
    %v2568 = vrot.slane %v2395, 4
    %v2569 = vsel %vm2485, %v2564, %v2568
    %v2570 = vrot.slane %v2285, 4
    %v2571 = vrot.slane %v2288, 4
    %v2572 = vsel %vm2485, %v2570, %v2571
    %v2573 = vrot.slane %v2398, 4
    %v2574 = vrot.slane %v2401, 4
    %v2575 = vsel %vm2485, %v2573, %v2574
    %v2576 = vrot.slane %v2291, 4
    %v2577 = vsel %vm2485, %v2571, %v2576
    %v2578 = vrot.slane %v2404, 4
    %v2579 = vsel %vm2485, %v2574, %v2578
    %v2580 = vrot.slane %v2294, 4
    %v2581 = vsel %vm2485, %v2576, %v2580
    %v2582 = vrot.slane %v2407, 4
    %v2583 = vsel %vm2485, %v2578, %v2582
    %v2584 = vrot.slane %v2297, 4
    %v2585 = vrot.slane %v2300, 4
    %v2586 = vsel %vm2485, %v2584, %v2585
    %v2587 = vrot.slane %v2410, 4
    %v2588 = vrot.slane %v2413, 4
    %v2589 = vsel %vm2485, %v2587, %v2588
    %v2590 = vrot.slane %v2303, 4
    %v2591 = vsel %vm2485, %v2585, %v2590
    %v2592 = vrot.slane %v2416, 4
    %v2593 = vsel %vm2485, %v2588, %v2592
    %v2594 = vrot.slane %v2306, 4
    %v2595 = vsel %vm2485, %v2590, %v2594
    %v2596 = vrot.slane %v2419, 4
    %v2597 = vsel %vm2485, %v2592, %v2596
    %v2662 = vadd.f32 %v2122, %v2488
    %v2663 = vadd.f32 %v2123, %v2491
    %v2664 = vadd.f32 %v2124, %v2493
    %v2665 = vadd.f32 %v2125, %v2495
    %v2666 = vadd.f32 %v2126, %v2497
    %v2667 = vadd.f32 %v2127, %v2499
    %v2668 = vadd.f32 %v2128, %v2496
    %v2669 = vadd.f32 %v2129, %v2498
    %v2670 = vadd.f32 %v2130, %v2502
    %v2671 = vadd.f32 %v2131, %v2505
    %v2672 = vadd.f32 %v2132, %v2507
    %v2673 = vadd.f32 %v2133, %v2509
    %v2674 = vadd.f32 %v2134, %v2511
    %v2675 = vadd.f32 %v2135, %v2513
    %v2676 = vadd.f32 %v2136, %v2510
    %v2677 = vadd.f32 %v2137, %v2512
    %v2678 = vadd.f32 %v2138, %v2516
    %v2679 = vadd.f32 %v2139, %v2519
    %v2680 = vadd.f32 %v2140, %v2521
    %v2681 = vadd.f32 %v2141, %v2523
    %v2682 = vadd.f32 %v2142, %v2525
    %v2683 = vadd.f32 %v2143, %v2527
    %v2684 = vadd.f32 %v2144, %v2524
    %v2685 = vadd.f32 %v2145, %v2526
    %v2686 = vadd.f32 %v2146, %v2530
    %v2687 = vadd.f32 %v2147, %v2533
    %v2688 = vadd.f32 %v2148, %v2535
    %v2689 = vadd.f32 %v2149, %v2537
    %v2690 = vadd.f32 %v2150, %v2539
    %v2691 = vadd.f32 %v2151, %v2541
    %v2692 = vadd.f32 %v2152, %v2538
    %v2693 = vadd.f32 %v2153, %v2540
    %v2694 = vadd.f32 %v2154, %v2544
    %v2695 = vadd.f32 %v2155, %v2547
    %v2696 = vadd.f32 %v2156, %v2549
    %v2697 = vadd.f32 %v2157, %v2551
    %v2698 = vadd.f32 %v2158, %v2553
    %v2699 = vadd.f32 %v2159, %v2555
    %v2700 = vadd.f32 %v2160, %v2552
    %v2701 = vadd.f32 %v2161, %v2554
    %v2702 = vadd.f32 %v2162, %v2558
    %v2703 = vadd.f32 %v2163, %v2561
    %v2704 = vadd.f32 %v2164, %v2563
    %v2705 = vadd.f32 %v2165, %v2565
    %v2706 = vadd.f32 %v2166, %v2567
    %v2707 = vadd.f32 %v2167, %v2569
    %v2708 = vadd.f32 %v2168, %v2566
    %v2709 = vadd.f32 %v2169, %v2568
    %v2710 = vadd.f32 %v2170, %v2572
    %v2711 = vadd.f32 %v2171, %v2575
    %v2712 = vadd.f32 %v2172, %v2577
    %v2713 = vadd.f32 %v2173, %v2579
    %v2714 = vadd.f32 %v2174, %v2581
    %v2715 = vadd.f32 %v2175, %v2583
    %v2716 = vadd.f32 %v2176, %v2580
    %v2717 = vadd.f32 %v2177, %v2582
    %v2718 = vadd.f32 %v2178, %v2586
    %v2719 = vadd.f32 %v2179, %v2589
    %v2720 = vadd.f32 %v2180, %v2591
    %v2721 = vadd.f32 %v2181, %v2593
    %v2722 = vadd.f32 %v2182, %v2595
    %v2723 = vadd.f32 %v2183, %v2597
    %v2724 = vadd.f32 %v2184, %v2594
    %v2725 = vadd.f32 %v2185, %v2596
    %v2726 = vld [vmem:[#allocation2] sm:$0xff]
    %v2727 = vld [vmem:[#allocation2 + $0x8] sm:$0xff]
    %v2728 = vld [vmem:[#allocation4] sm:$0xff]
    %v2729 = vld [vmem:[#allocation4 + $0x8] sm:$0xff]
    %vm2730 = vcmask 228352
    %v2732 = vsel %vm2730, %v2726, 0
    %v2735 = vsel %vm2730, %v2727, 0
    %v2738 = vsel %vm2485, %v2668, 0
    %v2741 = vsel %vm2485, %v2669, 0
    %2743 = vmatpush.msra.mxu0 0.0
    %2744 = vmatpush.msra.mxu0 0.0
    %2745 = vmatpush.msra.mxu0 0.0
    %2746 = vmatpush.msra.mxu0 0.0
    %2747 = vmatpush.msra.mxu0 0.0
    %2748 = vmatpush.msra.mxu0 0.0
    %2749 = vmatpush.msra.mxu0 0.0
    %2750 = vmatpush.msra.mxu0 0.0
    %2751 = vmatpush.msra.mxu0 0.0
    %2752 = vmatpush.msra.mxu0 0.0
    %2753 = vmatpush.msra.mxu0 0.0
    %2754 = vmatpush.msra.mxu0 0.0
    %2755 = vmatpush.msra.mxu0 %v2738
    %2756 = vmatpush.msra.mxu0 %v2666
    %2757 = vmatpush.msra.mxu0 %v2664
    %2758 = vmatpush.msra.mxu0 %v2662
    %2759 = vmatmul.f32.gmra.mxu0 %v2732
    %v2760 = vpop.f32.mrf.mxu0
    %v2761 = vadd.f32 0.0, %v2760
    %2762 = vmatmul.f32.gmra.mxu0 %v2735
    %v2763 = vpop.f32.mrf.mxu0
    %v2764 = vadd.f32 0.0, %v2763
    %2765 = vdwg.mxu0
    %2766 = vmatpush.msra.mxu0 0.0
    %2767 = vmatpush.msra.mxu0 0.0
    %2768 = vmatpush.msra.mxu0 0.0
    %2769 = vmatpush.msra.mxu0 0.0
    %2770 = vmatpush.msra.mxu0 0.0
    %2771 = vmatpush.msra.mxu0 0.0
    %2772 = vmatpush.msra.mxu0 0.0
    %2773 = vmatpush.msra.mxu0 0.0
    %2774 = vmatpush.msra.mxu0 0.0
    %2775 = vmatpush.msra.mxu0 0.0
    %2776 = vmatpush.msra.mxu0 0.0
    %2777 = vmatpush.msra.mxu0 0.0
    %2778 = vmatpush.msra.mxu0 %v2741
    %2779 = vmatpush.msra.mxu0 %v2667
    %2780 = vmatpush.msra.mxu0 %v2665
    %2781 = vmatpush.msra.mxu0 %v2663
    %2782 = vmatmul.f32.gmra.mxu0 %v2732
    %v2783 = vpop.f32.mrf.mxu0
    %v2784 = vadd.f32 0.0, %v2783
    %2785 = vmatmul.f32.gmra.mxu0 %v2735
    %v2786 = vpop.f32.mrf.mxu0
    %v2787 = vadd.f32 0.0, %v2786
    %2788 = vdwg.mxu0
    %v2790 = vsel %vm2730, %v2728, 0
    %v2793 = vsel %vm2730, %v2729, 0
    %2795 = vmatpush.msra.mxu0 0.0
    %2796 = vmatpush.msra.mxu0 0.0
    %2797 = vmatpush.msra.mxu0 0.0
    %2798 = vmatpush.msra.mxu0 0.0
    %2799 = vmatpush.msra.mxu0 0.0
    %2800 = vmatpush.msra.mxu0 0.0
    %2801 = vmatpush.msra.mxu0 0.0
    %2802 = vmatpush.msra.mxu0 0.0
    %2803 = vmatpush.msra.mxu0 0.0
    %2804 = vmatpush.msra.mxu0 0.0
    %2805 = vmatpush.msra.mxu0 0.0
    %2806 = vmatpush.msra.mxu0 0.0
    %2807 = vmatpush.msra.mxu0 %v2738
    %2808 = vmatpush.msra.mxu0 %v2666
    %2809 = vmatpush.msra.mxu0 %v2664
    %2810 = vmatpush.msra.mxu0 %v2662
    %2811 = vmatmul.f32.gmra.mxu0 %v2790
    %v2812 = vpop.f32.mrf.mxu0
    %v2813 = vadd.f32 0.0, %v2812
    %2814 = vmatmul.f32.gmra.mxu0 %v2793
    %v2815 = vpop.f32.mrf.mxu0
    %v2816 = vadd.f32 0.0, %v2815
    %2817 = vdwg.mxu0
    %2818 = vmatpush.msra.mxu0 0.0
    %2819 = vmatpush.msra.mxu0 0.0
    %2820 = vmatpush.msra.mxu0 0.0
    %2821 = vmatpush.msra.mxu0 0.0
    %2822 = vmatpush.msra.mxu0 0.0
    %2823 = vmatpush.msra.mxu0 0.0
    %2824 = vmatpush.msra.mxu0 0.0
    %2825 = vmatpush.msra.mxu0 0.0
    %2826 = vmatpush.msra.mxu0 0.0
    %2827 = vmatpush.msra.mxu0 0.0
    %2828 = vmatpush.msra.mxu0 0.0
    %2829 = vmatpush.msra.mxu0 0.0
    %2830 = vmatpush.msra.mxu0 %v2741
    %2831 = vmatpush.msra.mxu0 %v2667
    %2832 = vmatpush.msra.mxu0 %v2665
    %2833 = vmatpush.msra.mxu0 %v2663
    %2834 = vmatmul.f32.gmra.mxu0 %v2790
    %v2835 = vpop.f32.mrf.mxu0
    %v2836 = vadd.f32 0.0, %v2835
    %2837 = vmatmul.f32.gmra.mxu0 %v2793
    %v2838 = vpop.f32.mrf.mxu0
    %v2839 = vadd.f32 0.0, %v2838
    %2840 = vdwg.mxu0
    %v2841 = vmax.f32 %v2761, %v2813
    %v2842 = vmax.f32 %v2784, %v2836
    %v2843 = vmax.f32 %v2764, %v2816
    %v2844 = vmax.f32 %v2787, %v2839
    %v2846 = vsel %vm2485, %v2676, 0
    %v2849 = vsel %vm2485, %v2677, 0
    %2851 = vmatpush.msra.mxu0 0.0
    %2852 = vmatpush.msra.mxu0 0.0
    %2853 = vmatpush.msra.mxu0 0.0
    %2854 = vmatpush.msra.mxu0 0.0
    %2855 = vmatpush.msra.mxu0 0.0
    %2856 = vmatpush.msra.mxu0 0.0
    %2857 = vmatpush.msra.mxu0 0.0
    %2858 = vmatpush.msra.mxu0 0.0
    %2859 = vmatpush.msra.mxu0 0.0
    %2860 = vmatpush.msra.mxu0 0.0
    %2861 = vmatpush.msra.mxu0 0.0
    %2862 = vmatpush.msra.mxu0 0.0
    %2863 = vmatpush.msra.mxu0 %v2846
    %2864 = vmatpush.msra.mxu0 %v2674
    %2865 = vmatpush.msra.mxu0 %v2672
    %2866 = vmatpush.msra.mxu0 %v2670
    %2867 = vmatmul.f32.gmra.mxu0 %v2732
    %v2868 = vpop.f32.mrf.mxu0
    %v2869 = vadd.f32 0.0, %v2868
    %2870 = vmatmul.f32.gmra.mxu0 %v2735
    %v2871 = vpop.f32.mrf.mxu0
    %v2872 = vadd.f32 0.0, %v2871
    %2873 = vdwg.mxu0
    %2874 = vmatpush.msra.mxu0 0.0
    %2875 = vmatpush.msra.mxu0 0.0
    %2876 = vmatpush.msra.mxu0 0.0
    %2877 = vmatpush.msra.mxu0 0.0
    %2878 = vmatpush.msra.mxu0 0.0
    %2879 = vmatpush.msra.mxu0 0.0
    %2880 = vmatpush.msra.mxu0 0.0
    %2881 = vmatpush.msra.mxu0 0.0
    %2882 = vmatpush.msra.mxu0 0.0
    %2883 = vmatpush.msra.mxu0 0.0
    %2884 = vmatpush.msra.mxu0 0.0
    %2885 = vmatpush.msra.mxu0 0.0
    %2886 = vmatpush.msra.mxu0 %v2849
    %2887 = vmatpush.msra.mxu0 %v2675
    %2888 = vmatpush.msra.mxu0 %v2673
    %2889 = vmatpush.msra.mxu0 %v2671
    %2890 = vmatmul.f32.gmra.mxu0 %v2732
    %v2891 = vpop.f32.mrf.mxu0
    %v2892 = vadd.f32 0.0, %v2891
    %2893 = vmatmul.f32.gmra.mxu0 %v2735
    %v2894 = vpop.f32.mrf.mxu0
    %v2895 = vadd.f32 0.0, %v2894
    %2896 = vdwg.mxu0
    %2897 = vmatpush.msra.mxu0 0.0
    %2898 = vmatpush.msra.mxu0 0.0
    %2899 = vmatpush.msra.mxu0 0.0
    %2900 = vmatpush.msra.mxu0 0.0
    %2901 = vmatpush.msra.mxu0 0.0
    %2902 = vmatpush.msra.mxu0 0.0
    %2903 = vmatpush.msra.mxu0 0.0
    %2904 = vmatpush.msra.mxu0 0.0
    %2905 = vmatpush.msra.mxu0 0.0
    %2906 = vmatpush.msra.mxu0 0.0
    %2907 = vmatpush.msra.mxu0 0.0
    %2908 = vmatpush.msra.mxu0 0.0
    %2909 = vmatpush.msra.mxu0 %v2846
    %2910 = vmatpush.msra.mxu0 %v2674
    %2911 = vmatpush.msra.mxu0 %v2672
    %2912 = vmatpush.msra.mxu0 %v2670
    %2913 = vmatmul.f32.gmra.mxu0 %v2790
    %v2914 = vpop.f32.mrf.mxu0
    %v2915 = vadd.f32 0.0, %v2914
    %2916 = vmatmul.f32.gmra.mxu0 %v2793
    %v2917 = vpop.f32.mrf.mxu0
    %v2918 = vadd.f32 0.0, %v2917
    %2919 = vdwg.mxu0
    %2920 = vmatpush.msra.mxu0 0.0
    %2921 = vmatpush.msra.mxu0 0.0
    %2922 = vmatpush.msra.mxu0 0.0
    %2923 = vmatpush.msra.mxu0 0.0
    %2924 = vmatpush.msra.mxu0 0.0
    %2925 = vmatpush.msra.mxu0 0.0
    %2926 = vmatpush.msra.mxu0 0.0
    %2927 = vmatpush.msra.mxu0 0.0
    %2928 = vmatpush.msra.mxu0 0.0
    %2929 = vmatpush.msra.mxu0 0.0
    %2930 = vmatpush.msra.mxu0 0.0
    %2931 = vmatpush.msra.mxu0 0.0
    %2932 = vmatpush.msra.mxu0 %v2849
    %2933 = vmatpush.msra.mxu0 %v2675
    %2934 = vmatpush.msra.mxu0 %v2673
    %2935 = vmatpush.msra.mxu0 %v2671
    %2936 = vmatmul.f32.gmra.mxu0 %v2790
    %v2937 = vpop.f32.mrf.mxu0
    %v2938 = vadd.f32 0.0, %v2937
    %2939 = vmatmul.f32.gmra.mxu0 %v2793
    %v2940 = vpop.f32.mrf.mxu0
    %v2941 = vadd.f32 0.0, %v2940
    %2942 = vdwg.mxu0
    %v2943 = vmax.f32 %v2869, %v2915
    %v2944 = vmax.f32 %v2892, %v2938
    %v2945 = vmax.f32 %v2872, %v2918
    %v2946 = vmax.f32 %v2895, %v2941
    %v2948 = vsel %vm2485, %v2684, 0
    %v2951 = vsel %vm2485, %v2685, 0
    %2953 = vmatpush.msra.mxu0 0.0
    %2954 = vmatpush.msra.mxu0 0.0
    %2955 = vmatpush.msra.mxu0 0.0
    %2956 = vmatpush.msra.mxu0 0.0
    %2957 = vmatpush.msra.mxu0 0.0
    %2958 = vmatpush.msra.mxu0 0.0
    %2959 = vmatpush.msra.mxu0 0.0
    %2960 = vmatpush.msra.mxu0 0.0
    %2961 = vmatpush.msra.mxu0 0.0
    %2962 = vmatpush.msra.mxu0 0.0
    %2963 = vmatpush.msra.mxu0 0.0
    %2964 = vmatpush.msra.mxu0 0.0
    %2965 = vmatpush.msra.mxu0 %v2948
    %2966 = vmatpush.msra.mxu0 %v2682
    %2967 = vmatpush.msra.mxu0 %v2680
    %2968 = vmatpush.msra.mxu0 %v2678
    %2969 = vmatmul.f32.gmra.mxu0 %v2732
    %v2970 = vpop.f32.mrf.mxu0
    %v2971 = vadd.f32 0.0, %v2970
    %2972 = vmatmul.f32.gmra.mxu0 %v2735
    %v2973 = vpop.f32.mrf.mxu0
    %v2974 = vadd.f32 0.0, %v2973
    %2975 = vdwg.mxu0
    %2976 = vmatpush.msra.mxu0 0.0
    %2977 = vmatpush.msra.mxu0 0.0
    %2978 = vmatpush.msra.mxu0 0.0
    %2979 = vmatpush.msra.mxu0 0.0
    %2980 = vmatpush.msra.mxu0 0.0
    %2981 = vmatpush.msra.mxu0 0.0
    %2982 = vmatpush.msra.mxu0 0.0
    %2983 = vmatpush.msra.mxu0 0.0
    %2984 = vmatpush.msra.mxu0 0.0
    %2985 = vmatpush.msra.mxu0 0.0
    %2986 = vmatpush.msra.mxu0 0.0
    %2987 = vmatpush.msra.mxu0 0.0
    %2988 = vmatpush.msra.mxu0 %v2951
    %2989 = vmatpush.msra.mxu0 %v2683
    %2990 = vmatpush.msra.mxu0 %v2681
    %2991 = vmatpush.msra.mxu0 %v2679
    %2992 = vmatmul.f32.gmra.mxu0 %v2732
    %v2993 = vpop.f32.mrf.mxu0
    %v2994 = vadd.f32 0.0, %v2993
    %2995 = vmatmul.f32.gmra.mxu0 %v2735
    %v2996 = vpop.f32.mrf.mxu0
    %v2997 = vadd.f32 0.0, %v2996
    %2998 = vdwg.mxu0
    %2999 = vmatpush.msra.mxu0 0.0
    %3000 = vmatpush.msra.mxu0 0.0
    %3001 = vmatpush.msra.mxu0 0.0
    %3002 = vmatpush.msra.mxu0 0.0
    %3003 = vmatpush.msra.mxu0 0.0
    %3004 = vmatpush.msra.mxu0 0.0
    %3005 = vmatpush.msra.mxu0 0.0
    %3006 = vmatpush.msra.mxu0 0.0
    %3007 = vmatpush.msra.mxu0 0.0
    %3008 = vmatpush.msra.mxu0 0.0
    %3009 = vmatpush.msra.mxu0 0.0
    %3010 = vmatpush.msra.mxu0 0.0
    %3011 = vmatpush.msra.mxu0 %v2948
    %3012 = vmatpush.msra.mxu0 %v2682
    %3013 = vmatpush.msra.mxu0 %v2680
    %3014 = vmatpush.msra.mxu0 %v2678
    %3015 = vmatmul.f32.gmra.mxu0 %v2790
    %v3016 = vpop.f32.mrf.mxu0
    %v3017 = vadd.f32 0.0, %v3016
    %3018 = vmatmul.f32.gmra.mxu0 %v2793
    %v3019 = vpop.f32.mrf.mxu0
    %v3020 = vadd.f32 0.0, %v3019
    %3021 = vdwg.mxu0
    %3022 = vmatpush.msra.mxu0 0.0
    %3023 = vmatpush.msra.mxu0 0.0
    %3024 = vmatpush.msra.mxu0 0.0
    %3025 = vmatpush.msra.mxu0 0.0
    %3026 = vmatpush.msra.mxu0 0.0
    %3027 = vmatpush.msra.mxu0 0.0
    %3028 = vmatpush.msra.mxu0 0.0
    %3029 = vmatpush.msra.mxu0 0.0
    %3030 = vmatpush.msra.mxu0 0.0
    %3031 = vmatpush.msra.mxu0 0.0
    %3032 = vmatpush.msra.mxu0 0.0
    %3033 = vmatpush.msra.mxu0 0.0
    %3034 = vmatpush.msra.mxu0 %v2951
    %3035 = vmatpush.msra.mxu0 %v2683
    %3036 = vmatpush.msra.mxu0 %v2681
    %3037 = vmatpush.msra.mxu0 %v2679
    %3038 = vmatmul.f32.gmra.mxu0 %v2790
    %v3039 = vpop.f32.mrf.mxu0
    %v3040 = vadd.f32 0.0, %v3039
    %3041 = vmatmul.f32.gmra.mxu0 %v2793
    %v3042 = vpop.f32.mrf.mxu0
    %v3043 = vadd.f32 0.0, %v3042
    %3044 = vdwg.mxu0
    %v3045 = vmax.f32 %v2971, %v3017
    %v3046 = vmax.f32 %v2994, %v3040
    %v3047 = vmax.f32 %v2974, %v3020
    %v3048 = vmax.f32 %v2997, %v3043
    %v3050 = vsel %vm2485, %v2692, 0
    %v3053 = vsel %vm2485, %v2693, 0
    %3055 = vmatpush.msra.mxu0 0.0
    %3056 = vmatpush.msra.mxu0 0.0
    %3057 = vmatpush.msra.mxu0 0.0
    %3058 = vmatpush.msra.mxu0 0.0
    %3059 = vmatpush.msra.mxu0 0.0
    %3060 = vmatpush.msra.mxu0 0.0
    %3061 = vmatpush.msra.mxu0 0.0
    %3062 = vmatpush.msra.mxu0 0.0
    %3063 = vmatpush.msra.mxu0 0.0
    %3064 = vmatpush.msra.mxu0 0.0
    %3065 = vmatpush.msra.mxu0 0.0
    %3066 = vmatpush.msra.mxu0 0.0
    %3067 = vmatpush.msra.mxu0 %v3050
    %3068 = vmatpush.msra.mxu0 %v2690
    %3069 = vmatpush.msra.mxu0 %v2688
    %3070 = vmatpush.msra.mxu0 %v2686
    %3071 = vmatmul.f32.gmra.mxu0 %v2732
    %v3072 = vpop.f32.mrf.mxu0
    %v3073 = vadd.f32 0.0, %v3072
    %3074 = vmatmul.f32.gmra.mxu0 %v2735
    %v3075 = vpop.f32.mrf.mxu0
    %v3076 = vadd.f32 0.0, %v3075
    %3077 = vdwg.mxu0
    %3078 = vmatpush.msra.mxu0 0.0
    %3079 = vmatpush.msra.mxu0 0.0
    %3080 = vmatpush.msra.mxu0 0.0
    %3081 = vmatpush.msra.mxu0 0.0
    %3082 = vmatpush.msra.mxu0 0.0
    %3083 = vmatpush.msra.mxu0 0.0
    %3084 = vmatpush.msra.mxu0 0.0
    %3085 = vmatpush.msra.mxu0 0.0
    %3086 = vmatpush.msra.mxu0 0.0
    %3087 = vmatpush.msra.mxu0 0.0
    %3088 = vmatpush.msra.mxu0 0.0
    %3089 = vmatpush.msra.mxu0 0.0
    %3090 = vmatpush.msra.mxu0 %v3053
    %3091 = vmatpush.msra.mxu0 %v2691
    %3092 = vmatpush.msra.mxu0 %v2689
    %3093 = vmatpush.msra.mxu0 %v2687
    %3094 = vmatmul.f32.gmra.mxu0 %v2732
    %v3095 = vpop.f32.mrf.mxu0
    %v3096 = vadd.f32 0.0, %v3095
    %3097 = vmatmul.f32.gmra.mxu0 %v2735
    %v3098 = vpop.f32.mrf.mxu0
    %v3099 = vadd.f32 0.0, %v3098
    %3100 = vdwg.mxu0
    %3101 = vmatpush.msra.mxu0 0.0
    %3102 = vmatpush.msra.mxu0 0.0
    %3103 = vmatpush.msra.mxu0 0.0
    %3104 = vmatpush.msra.mxu0 0.0
    %3105 = vmatpush.msra.mxu0 0.0
    %3106 = vmatpush.msra.mxu0 0.0
    %3107 = vmatpush.msra.mxu0 0.0
    %3108 = vmatpush.msra.mxu0 0.0
    %3109 = vmatpush.msra.mxu0 0.0
    %3110 = vmatpush.msra.mxu0 0.0
    %3111 = vmatpush.msra.mxu0 0.0
    %3112 = vmatpush.msra.mxu0 0.0
    %3113 = vmatpush.msra.mxu0 %v3050
    %3114 = vmatpush.msra.mxu0 %v2690
    %3115 = vmatpush.msra.mxu0 %v2688
    %3116 = vmatpush.msra.mxu0 %v2686
    %3117 = vmatmul.f32.gmra.mxu0 %v2790
    %v3118 = vpop.f32.mrf.mxu0
    %v3119 = vadd.f32 0.0, %v3118
    %3120 = vmatmul.f32.gmra.mxu0 %v2793
    %v3121 = vpop.f32.mrf.mxu0
    %v3122 = vadd.f32 0.0, %v3121
    %3123 = vdwg.mxu0
    %3124 = vmatpush.msra.mxu0 0.0
    %3125 = vmatpush.msra.mxu0 0.0
    %3126 = vmatpush.msra.mxu0 0.0
    %3127 = vmatpush.msra.mxu0 0.0
    %3128 = vmatpush.msra.mxu0 0.0
    %3129 = vmatpush.msra.mxu0 0.0
    %3130 = vmatpush.msra.mxu0 0.0
    %3131 = vmatpush.msra.mxu0 0.0
    %3132 = vmatpush.msra.mxu0 0.0
    %3133 = vmatpush.msra.mxu0 0.0
    %3134 = vmatpush.msra.mxu0 0.0
    %3135 = vmatpush.msra.mxu0 0.0
    %3136 = vmatpush.msra.mxu0 %v3053
    %3137 = vmatpush.msra.mxu0 %v2691
    %3138 = vmatpush.msra.mxu0 %v2689
    %3139 = vmatpush.msra.mxu0 %v2687
    %3140 = vmatmul.f32.gmra.mxu0 %v2790
    %v3141 = vpop.f32.mrf.mxu0
    %v3142 = vadd.f32 0.0, %v3141
    %3143 = vmatmul.f32.gmra.mxu0 %v2793
    %v3144 = vpop.f32.mrf.mxu0
    %v3145 = vadd.f32 0.0, %v3144
    %3146 = vdwg.mxu0
    %v3147 = vmax.f32 %v3073, %v3119
    %v3148 = vmax.f32 %v3096, %v3142
    %v3149 = vmax.f32 %v3076, %v3122
    %v3150 = vmax.f32 %v3099, %v3145
    %v3152 = vsel %vm2485, %v2700, 0
    %v3155 = vsel %vm2485, %v2701, 0
    %3157 = vmatpush.msra.mxu0 0.0
    %3158 = vmatpush.msra.mxu0 0.0
    %3159 = vmatpush.msra.mxu0 0.0
    %3160 = vmatpush.msra.mxu0 0.0
    %3161 = vmatpush.msra.mxu0 0.0
    %3162 = vmatpush.msra.mxu0 0.0
    %3163 = vmatpush.msra.mxu0 0.0
    %3164 = vmatpush.msra.mxu0 0.0
    %3165 = vmatpush.msra.mxu0 0.0
    %3166 = vmatpush.msra.mxu0 0.0
    %3167 = vmatpush.msra.mxu0 0.0
    %3168 = vmatpush.msra.mxu0 0.0
    %3169 = vmatpush.msra.mxu0 %v3152
    %3170 = vmatpush.msra.mxu0 %v2698
    %3171 = vmatpush.msra.mxu0 %v2696
    %3172 = vmatpush.msra.mxu0 %v2694
    %3173 = vmatmul.f32.gmra.mxu0 %v2732
    %v3174 = vpop.f32.mrf.mxu0
    %v3175 = vadd.f32 0.0, %v3174
    %3176 = vmatmul.f32.gmra.mxu0 %v2735
    %v3177 = vpop.f32.mrf.mxu0
    %v3178 = vadd.f32 0.0, %v3177
    %3179 = vdwg.mxu0
    %3180 = vmatpush.msra.mxu0 0.0
    %3181 = vmatpush.msra.mxu0 0.0
    %3182 = vmatpush.msra.mxu0 0.0
    %3183 = vmatpush.msra.mxu0 0.0
    %3184 = vmatpush.msra.mxu0 0.0
    %3185 = vmatpush.msra.mxu0 0.0
    %3186 = vmatpush.msra.mxu0 0.0
    %3187 = vmatpush.msra.mxu0 0.0
    %3188 = vmatpush.msra.mxu0 0.0
    %3189 = vmatpush.msra.mxu0 0.0
    %3190 = vmatpush.msra.mxu0 0.0
    %3191 = vmatpush.msra.mxu0 0.0
    %3192 = vmatpush.msra.mxu0 %v3155
    %3193 = vmatpush.msra.mxu0 %v2699
    %3194 = vmatpush.msra.mxu0 %v2697
    %3195 = vmatpush.msra.mxu0 %v2695
    %3196 = vmatmul.f32.gmra.mxu0 %v2732
    %v3197 = vpop.f32.mrf.mxu0
    %v3198 = vadd.f32 0.0, %v3197
    %3199 = vmatmul.f32.gmra.mxu0 %v2735
    %v3200 = vpop.f32.mrf.mxu0
    %v3201 = vadd.f32 0.0, %v3200
    %3202 = vdwg.mxu0
    %3203 = vmatpush.msra.mxu0 0.0
    %3204 = vmatpush.msra.mxu0 0.0
    %3205 = vmatpush.msra.mxu0 0.0
    %3206 = vmatpush.msra.mxu0 0.0
    %3207 = vmatpush.msra.mxu0 0.0
    %3208 = vmatpush.msra.mxu0 0.0
    %3209 = vmatpush.msra.mxu0 0.0
    %3210 = vmatpush.msra.mxu0 0.0
    %3211 = vmatpush.msra.mxu0 0.0
    %3212 = vmatpush.msra.mxu0 0.0
    %3213 = vmatpush.msra.mxu0 0.0
    %3214 = vmatpush.msra.mxu0 0.0
    %3215 = vmatpush.msra.mxu0 %v3152
    %3216 = vmatpush.msra.mxu0 %v2698
    %3217 = vmatpush.msra.mxu0 %v2696
    %3218 = vmatpush.msra.mxu0 %v2694
    %3219 = vmatmul.f32.gmra.mxu0 %v2790
    %v3220 = vpop.f32.mrf.mxu0
    %v3221 = vadd.f32 0.0, %v3220
    %3222 = vmatmul.f32.gmra.mxu0 %v2793
    %v3223 = vpop.f32.mrf.mxu0
    %v3224 = vadd.f32 0.0, %v3223
    %3225 = vdwg.mxu0
    %3226 = vmatpush.msra.mxu0 0.0
    %3227 = vmatpush.msra.mxu0 0.0
    %3228 = vmatpush.msra.mxu0 0.0
    %3229 = vmatpush.msra.mxu0 0.0
    %3230 = vmatpush.msra.mxu0 0.0
    %3231 = vmatpush.msra.mxu0 0.0
    %3232 = vmatpush.msra.mxu0 0.0
    %3233 = vmatpush.msra.mxu0 0.0
    %3234 = vmatpush.msra.mxu0 0.0
    %3235 = vmatpush.msra.mxu0 0.0
    %3236 = vmatpush.msra.mxu0 0.0
    %3237 = vmatpush.msra.mxu0 0.0
    %3238 = vmatpush.msra.mxu0 %v3155
    %3239 = vmatpush.msra.mxu0 %v2699
    %3240 = vmatpush.msra.mxu0 %v2697
    %3241 = vmatpush.msra.mxu0 %v2695
    %3242 = vmatmul.f32.gmra.mxu0 %v2790
    %v3243 = vpop.f32.mrf.mxu0
    %v3244 = vadd.f32 0.0, %v3243
    %3245 = vmatmul.f32.gmra.mxu0 %v2793
    %v3246 = vpop.f32.mrf.mxu0
    %v3247 = vadd.f32 0.0, %v3246
    %3248 = vdwg.mxu0
    %v3249 = vmax.f32 %v3175, %v3221
    %v3250 = vmax.f32 %v3198, %v3244
    %v3251 = vmax.f32 %v3178, %v3224
    %v3252 = vmax.f32 %v3201, %v3247
    %v3254 = vsel %vm2485, %v2708, 0
    %v3257 = vsel %vm2485, %v2709, 0
    %3259 = vmatpush.msra.mxu0 0.0
    %3260 = vmatpush.msra.mxu0 0.0
    %3261 = vmatpush.msra.mxu0 0.0
    %3262 = vmatpush.msra.mxu0 0.0
    %3263 = vmatpush.msra.mxu0 0.0
    %3264 = vmatpush.msra.mxu0 0.0
    %3265 = vmatpush.msra.mxu0 0.0
    %3266 = vmatpush.msra.mxu0 0.0
    %3267 = vmatpush.msra.mxu0 0.0
    %3268 = vmatpush.msra.mxu0 0.0
    %3269 = vmatpush.msra.mxu0 0.0
    %3270 = vmatpush.msra.mxu0 0.0
    %3271 = vmatpush.msra.mxu0 %v3254
    %3272 = vmatpush.msra.mxu0 %v2706
    %3273 = vmatpush.msra.mxu0 %v2704
    %3274 = vmatpush.msra.mxu0 %v2702
    %3275 = vmatmul.f32.gmra.mxu0 %v2732
    %v3276 = vpop.f32.mrf.mxu0
    %v3277 = vadd.f32 0.0, %v3276
    %3278 = vmatmul.f32.gmra.mxu0 %v2735
    %v3279 = vpop.f32.mrf.mxu0
    %v3280 = vadd.f32 0.0, %v3279
    %3281 = vdwg.mxu0
    %3282 = vmatpush.msra.mxu0 0.0
    %3283 = vmatpush.msra.mxu0 0.0
    %3284 = vmatpush.msra.mxu0 0.0
    %3285 = vmatpush.msra.mxu0 0.0
    %3286 = vmatpush.msra.mxu0 0.0
    %3287 = vmatpush.msra.mxu0 0.0
    %3288 = vmatpush.msra.mxu0 0.0
    %3289 = vmatpush.msra.mxu0 0.0
    %3290 = vmatpush.msra.mxu0 0.0
    %3291 = vmatpush.msra.mxu0 0.0
    %3292 = vmatpush.msra.mxu0 0.0
    %3293 = vmatpush.msra.mxu0 0.0
    %3294 = vmatpush.msra.mxu0 %v3257
    %3295 = vmatpush.msra.mxu0 %v2707
    %3296 = vmatpush.msra.mxu0 %v2705
    %3297 = vmatpush.msra.mxu0 %v2703
    %3298 = vmatmul.f32.gmra.mxu0 %v2732
    %v3299 = vpop.f32.mrf.mxu0
    %v3300 = vadd.f32 0.0, %v3299
    %3301 = vmatmul.f32.gmra.mxu0 %v2735
    %v3302 = vpop.f32.mrf.mxu0
    %v3303 = vadd.f32 0.0, %v3302
    %3304 = vdwg.mxu0
    %3305 = vmatpush.msra.mxu0 0.0
    %3306 = vmatpush.msra.mxu0 0.0
    %3307 = vmatpush.msra.mxu0 0.0
    %3308 = vmatpush.msra.mxu0 0.0
    %3309 = vmatpush.msra.mxu0 0.0
    %3310 = vmatpush.msra.mxu0 0.0
    %3311 = vmatpush.msra.mxu0 0.0
    %3312 = vmatpush.msra.mxu0 0.0
    %3313 = vmatpush.msra.mxu0 0.0
    %3314 = vmatpush.msra.mxu0 0.0
    %3315 = vmatpush.msra.mxu0 0.0
    %3316 = vmatpush.msra.mxu0 0.0
    %3317 = vmatpush.msra.mxu0 %v3254
    %3318 = vmatpush.msra.mxu0 %v2706
    %3319 = vmatpush.msra.mxu0 %v2704
    %3320 = vmatpush.msra.mxu0 %v2702
    %3321 = vmatmul.f32.gmra.mxu0 %v2790
    %v3322 = vpop.f32.mrf.mxu0
    %v3323 = vadd.f32 0.0, %v3322
    %3324 = vmatmul.f32.gmra.mxu0 %v2793
    %v3325 = vpop.f32.mrf.mxu0
    %v3326 = vadd.f32 0.0, %v3325
    %3327 = vdwg.mxu0
    %3328 = vmatpush.msra.mxu0 0.0
    %3329 = vmatpush.msra.mxu0 0.0
    %3330 = vmatpush.msra.mxu0 0.0
    %3331 = vmatpush.msra.mxu0 0.0
    %3332 = vmatpush.msra.mxu0 0.0
    %3333 = vmatpush.msra.mxu0 0.0
    %3334 = vmatpush.msra.mxu0 0.0
    %3335 = vmatpush.msra.mxu0 0.0
    %3336 = vmatpush.msra.mxu0 0.0
    %3337 = vmatpush.msra.mxu0 0.0
    %3338 = vmatpush.msra.mxu0 0.0
    %3339 = vmatpush.msra.mxu0 0.0
    %3340 = vmatpush.msra.mxu0 %v3257
    %3341 = vmatpush.msra.mxu0 %v2707
    %3342 = vmatpush.msra.mxu0 %v2705
    %3343 = vmatpush.msra.mxu0 %v2703
    %3344 = vmatmul.f32.gmra.mxu0 %v2790
    %v3345 = vpop.f32.mrf.mxu0
    %v3346 = vadd.f32 0.0, %v3345
    %3347 = vmatmul.f32.gmra.mxu0 %v2793
    %v3348 = vpop.f32.mrf.mxu0
    %v3349 = vadd.f32 0.0, %v3348
    %3350 = vdwg.mxu0
    %v3351 = vmax.f32 %v3277, %v3323
    %v3352 = vmax.f32 %v3300, %v3346
    %v3353 = vmax.f32 %v3280, %v3326
    %v3354 = vmax.f32 %v3303, %v3349
    %v3356 = vsel %vm2485, %v2716, 0
    %v3359 = vsel %vm2485, %v2717, 0
    %3361 = vmatpush.msra.mxu0 0.0
    %3362 = vmatpush.msra.mxu0 0.0
    %3363 = vmatpush.msra.mxu0 0.0
    %3364 = vmatpush.msra.mxu0 0.0
    %3365 = vmatpush.msra.mxu0 0.0
    %3366 = vmatpush.msra.mxu0 0.0
    %3367 = vmatpush.msra.mxu0 0.0
    %3368 = vmatpush.msra.mxu0 0.0
    %3369 = vmatpush.msra.mxu0 0.0
    %3370 = vmatpush.msra.mxu0 0.0
    %3371 = vmatpush.msra.mxu0 0.0
    %3372 = vmatpush.msra.mxu0 0.0
    %3373 = vmatpush.msra.mxu0 %v3356
    %3374 = vmatpush.msra.mxu0 %v2714
    %3375 = vmatpush.msra.mxu0 %v2712
    %3376 = vmatpush.msra.mxu0 %v2710
    %3377 = vmatmul.f32.gmra.mxu0 %v2732
    %v3378 = vpop.f32.mrf.mxu0
    %v3379 = vadd.f32 0.0, %v3378
    %3380 = vmatmul.f32.gmra.mxu0 %v2735
    %v3381 = vpop.f32.mrf.mxu0
    %v3382 = vadd.f32 0.0, %v3381
    %3383 = vdwg.mxu0
    %3384 = vmatpush.msra.mxu0 0.0
    %3385 = vmatpush.msra.mxu0 0.0
    %3386 = vmatpush.msra.mxu0 0.0
    %3387 = vmatpush.msra.mxu0 0.0
    %3388 = vmatpush.msra.mxu0 0.0
    %3389 = vmatpush.msra.mxu0 0.0
    %3390 = vmatpush.msra.mxu0 0.0
    %3391 = vmatpush.msra.mxu0 0.0
    %3392 = vmatpush.msra.mxu0 0.0
    %3393 = vmatpush.msra.mxu0 0.0
    %3394 = vmatpush.msra.mxu0 0.0
    %3395 = vmatpush.msra.mxu0 0.0
    %3396 = vmatpush.msra.mxu0 %v3359
    %3397 = vmatpush.msra.mxu0 %v2715
    %3398 = vmatpush.msra.mxu0 %v2713
    %3399 = vmatpush.msra.mxu0 %v2711
    %3400 = vmatmul.f32.gmra.mxu0 %v2732
    %v3401 = vpop.f32.mrf.mxu0
    %v3402 = vadd.f32 0.0, %v3401
    %3403 = vmatmul.f32.gmra.mxu0 %v2735
    %v3404 = vpop.f32.mrf.mxu0
    %v3405 = vadd.f32 0.0, %v3404
    %3406 = vdwg.mxu0
    %3407 = vmatpush.msra.mxu0 0.0
    %3408 = vmatpush.msra.mxu0 0.0
    %3409 = vmatpush.msra.mxu0 0.0
    %3410 = vmatpush.msra.mxu0 0.0
    %3411 = vmatpush.msra.mxu0 0.0
    %3412 = vmatpush.msra.mxu0 0.0
    %3413 = vmatpush.msra.mxu0 0.0
    %3414 = vmatpush.msra.mxu0 0.0
    %3415 = vmatpush.msra.mxu0 0.0
    %3416 = vmatpush.msra.mxu0 0.0
    %3417 = vmatpush.msra.mxu0 0.0
    %3418 = vmatpush.msra.mxu0 0.0
    %3419 = vmatpush.msra.mxu0 %v3356
    %3420 = vmatpush.msra.mxu0 %v2714
    %3421 = vmatpush.msra.mxu0 %v2712
    %3422 = vmatpush.msra.mxu0 %v2710
    %3423 = vmatmul.f32.gmra.mxu0 %v2790
    %v3424 = vpop.f32.mrf.mxu0
    %v3425 = vadd.f32 0.0, %v3424
    %3426 = vmatmul.f32.gmra.mxu0 %v2793
    %v3427 = vpop.f32.mrf.mxu0
    %v3428 = vadd.f32 0.0, %v3427
    %3429 = vdwg.mxu0
    %3430 = vmatpush.msra.mxu0 0.0
    %3431 = vmatpush.msra.mxu0 0.0
    %3432 = vmatpush.msra.mxu0 0.0
    %3433 = vmatpush.msra.mxu0 0.0
    %3434 = vmatpush.msra.mxu0 0.0
    %3435 = vmatpush.msra.mxu0 0.0
    %3436 = vmatpush.msra.mxu0 0.0
    %3437 = vmatpush.msra.mxu0 0.0
    %3438 = vmatpush.msra.mxu0 0.0
    %3439 = vmatpush.msra.mxu0 0.0
    %3440 = vmatpush.msra.mxu0 0.0
    %3441 = vmatpush.msra.mxu0 0.0
    %3442 = vmatpush.msra.mxu0 %v3359
    %3443 = vmatpush.msra.mxu0 %v2715
    %3444 = vmatpush.msra.mxu0 %v2713
    %3445 = vmatpush.msra.mxu0 %v2711
    %3446 = vmatmul.f32.gmra.mxu0 %v2790
    %v3447 = vpop.f32.mrf.mxu0
    %v3448 = vadd.f32 0.0, %v3447
    %3449 = vmatmul.f32.gmra.mxu0 %v2793
    %v3450 = vpop.f32.mrf.mxu0
    %v3451 = vadd.f32 0.0, %v3450
    %3452 = vdwg.mxu0
    %v3453 = vmax.f32 %v3379, %v3425
    %v3454 = vmax.f32 %v3402, %v3448
    %v3455 = vmax.f32 %v3382, %v3428
    %v3456 = vmax.f32 %v3405, %v3451
    %v3458 = vsel %vm2485, %v2724, 0
    %v3461 = vsel %vm2485, %v2725, 0
    %3463 = vmatpush.msra.mxu0 0.0
    %3464 = vmatpush.msra.mxu0 0.0
    %3465 = vmatpush.msra.mxu0 0.0
    %3466 = vmatpush.msra.mxu0 0.0
    %3467 = vmatpush.msra.mxu0 0.0
    %3468 = vmatpush.msra.mxu0 0.0
    %3469 = vmatpush.msra.mxu0 0.0
    %3470 = vmatpush.msra.mxu0 0.0
    %3471 = vmatpush.msra.mxu0 0.0
    %3472 = vmatpush.msra.mxu0 0.0
    %3473 = vmatpush.msra.mxu0 0.0
    %3474 = vmatpush.msra.mxu0 0.0
    %3475 = vmatpush.msra.mxu0 %v3458
    %3476 = vmatpush.msra.mxu0 %v2722
    %3477 = vmatpush.msra.mxu0 %v2720
    %3478 = vmatpush.msra.mxu0 %v2718
    %3479 = vmatmul.f32.gmra.mxu0 %v2732
    %v3480 = vpop.f32.mrf.mxu0
    %v3481 = vadd.f32 0.0, %v3480
    %3482 = vmatmul.f32.gmra.mxu0 %v2735
    %v3483 = vpop.f32.mrf.mxu0
    %v3484 = vadd.f32 0.0, %v3483
    %3485 = vdwg.mxu0
    %3486 = vmatpush.msra.mxu0 0.0
    %3487 = vmatpush.msra.mxu0 0.0
    %3488 = vmatpush.msra.mxu0 0.0
    %3489 = vmatpush.msra.mxu0 0.0
    %3490 = vmatpush.msra.mxu0 0.0
    %3491 = vmatpush.msra.mxu0 0.0
    %3492 = vmatpush.msra.mxu0 0.0
    %3493 = vmatpush.msra.mxu0 0.0
    %3494 = vmatpush.msra.mxu0 0.0
    %3495 = vmatpush.msra.mxu0 0.0
    %3496 = vmatpush.msra.mxu0 0.0
    %3497 = vmatpush.msra.mxu0 0.0
    %3498 = vmatpush.msra.mxu0 %v3461
    %3499 = vmatpush.msra.mxu0 %v2723
    %3500 = vmatpush.msra.mxu0 %v2721
    %3501 = vmatpush.msra.mxu0 %v2719
    %3502 = vmatmul.f32.gmra.mxu0 %v2732
    %v3503 = vpop.f32.mrf.mxu0
    %v3504 = vadd.f32 0.0, %v3503
    %3505 = vmatmul.f32.gmra.mxu0 %v2735
    %v3506 = vpop.f32.mrf.mxu0
    %v3507 = vadd.f32 0.0, %v3506
    %3508 = vdwg.mxu0
    %3509 = vmatpush.msra.mxu0 0.0
    %3510 = vmatpush.msra.mxu0 0.0
    %3511 = vmatpush.msra.mxu0 0.0
    %3512 = vmatpush.msra.mxu0 0.0
    %3513 = vmatpush.msra.mxu0 0.0
    %3514 = vmatpush.msra.mxu0 0.0
    %3515 = vmatpush.msra.mxu0 0.0
    %3516 = vmatpush.msra.mxu0 0.0
    %3517 = vmatpush.msra.mxu0 0.0
    %3518 = vmatpush.msra.mxu0 0.0
    %3519 = vmatpush.msra.mxu0 0.0
    %3520 = vmatpush.msra.mxu0 0.0
    %3521 = vmatpush.msra.mxu0 %v3458
    %3522 = vmatpush.msra.mxu0 %v2722
    %3523 = vmatpush.msra.mxu0 %v2720
    %3524 = vmatpush.msra.mxu0 %v2718
    %3525 = vmatmul.f32.gmra.mxu0 %v2790
    %v3526 = vpop.f32.mrf.mxu0
    %v3527 = vadd.f32 0.0, %v3526
    %3528 = vmatmul.f32.gmra.mxu0 %v2793
    %v3529 = vpop.f32.mrf.mxu0
    %v3530 = vadd.f32 0.0, %v3529
    %3531 = vdwg.mxu0
    %3532 = vmatpush.msra.mxu0 0.0
    %3533 = vmatpush.msra.mxu0 0.0
    %3534 = vmatpush.msra.mxu0 0.0
    %3535 = vmatpush.msra.mxu0 0.0
    %3536 = vmatpush.msra.mxu0 0.0
    %3537 = vmatpush.msra.mxu0 0.0
    %3538 = vmatpush.msra.mxu0 0.0
    %3539 = vmatpush.msra.mxu0 0.0
    %3540 = vmatpush.msra.mxu0 0.0
    %3541 = vmatpush.msra.mxu0 0.0
    %3542 = vmatpush.msra.mxu0 0.0
    %3543 = vmatpush.msra.mxu0 0.0
    %3544 = vmatpush.msra.mxu0 %v3461
    %3545 = vmatpush.msra.mxu0 %v2723
    %3546 = vmatpush.msra.mxu0 %v2721
    %3547 = vmatpush.msra.mxu0 %v2719
    %3548 = vmatmul.f32.gmra.mxu0 %v2790
    %v3549 = vpop.f32.mrf.mxu0
    %v3550 = vadd.f32 0.0, %v3549
    %3551 = vmatmul.f32.gmra.mxu0 %v2793
    %v3552 = vpop.f32.mrf.mxu0
    %v3553 = vadd.f32 0.0, %v3552
    %3554 = vdwg.mxu0
    %v3555 = vmax.f32 %v3481, %v3527
    %v3556 = vmax.f32 %v3504, %v3550
    %v3557 = vmax.f32 %v3484, %v3530
    %v3558 = vmax.f32 %v3507, %v3553
    %v3559 = vld [vmem:[#allocation6] sm:$0xff]
    %v3560 = vld [vmem:[#allocation6 + $0x8] sm:$0xff]
    %v3561 = vld [vmem:[#allocation6 + $0x10] sm:$0xff]
    %v3562 = vld [vmem:[#allocation6 + $0x18] sm:$0xff]
    %v3563 = vld [vmem:[#allocation6 + $0x20] sm:$0xff]
    %v3564 = vld [vmem:[#allocation6 + $0x28] sm:$0xff]
    %v3565 = vld [vmem:[#allocation6 + $0x30] sm:$0xff]
    %v3566 = vld [vmem:[#allocation6 + $0x38] sm:$0xff]
    %v3567 = vld [vmem:[#allocation6 + $0x40] sm:$0xff]
    %v3568 = vld [vmem:[#allocation6 + $0x48] sm:$0xff]
    %v3569 = vld [vmem:[#allocation6 + $0x50] sm:$0xff]
    %v3570 = vld [vmem:[#allocation6 + $0x58] sm:$0xff]
    %v3571 = vld [vmem:[#allocation6 + $0x60] sm:$0xff]
    %v3572 = vld [vmem:[#allocation6 + $0x68] sm:$0xff]
    %v3573 = vld [vmem:[#allocation6 + $0x70] sm:$0xff]
    %v3574 = vld [vmem:[#allocation6 + $0x78] sm:$0xff]
    %v3575 = vld [vmem:[#allocation6 + $0x80] sm:$0xff]
    %v3576 = vld [vmem:[#allocation6 + $0x88] sm:$0xff]
    %v3577 = vld [vmem:[#allocation6 + $0x90] sm:$0xff]
    %v3578 = vld [vmem:[#allocation6 + $0x98] sm:$0xff]
    %v3579 = vld [vmem:[#allocation6 + $0xa0] sm:$0xff]
    %vm3580 = vcmask 326656
    %v3582 = vsel %vm3580, %v2842, 0
    %v3585 = vsel %vm3580, %v2844, 0
    %v3588 = vsel %vm3580, %v2944, 0
    %v3591 = vsel %vm3580, %v2946, 0
    %v3594 = vsel %vm3580, %v3046, 0
    %v3597 = vsel %vm3580, %v3048, 0
    %v3600 = vsel %vm3580, %v3148, 0
    %v3603 = vsel %vm3580, %v3150, 0
    %v3606 = vsel %vm3580, %v3250, 0
    %v3609 = vsel %vm3580, %v3252, 0
    %v3612 = vsel %vm3580, %v3352, 0
    %v3615 = vsel %vm3580, %v3354, 0
    %v3618 = vsel %vm3580, %v3454, 0
    %v3621 = vsel %vm3580, %v3456, 0
    %v3624 = vsel %vm3580, %v3556, 0
    %v3627 = vsel %vm3580, %v3558, 0
    %3629 = vmatpush.msra.mxu0 %v3574
    %3630 = vmatpush.msra.mxu0 %v3573
    %3631 = vmatpush.msra.mxu0 %v3572
    %3632 = vmatpush.msra.mxu0 %v3571
    %3633 = vmatpush.msra.mxu0 %v3570
    %3634 = vmatpush.msra.mxu0 %v3569
    %3635 = vmatpush.msra.mxu0 %v3568
    %3636 = vmatpush.msra.mxu0 %v3567
    %3637 = vmatpush.msra.mxu0 %v3566
    %3638 = vmatpush.msra.mxu0 %v3565
    %3639 = vmatpush.msra.mxu0 %v3564
    %3640 = vmatpush.msra.mxu0 %v3563
    %3641 = vmatpush.msra.mxu0 %v3562
    %3642 = vmatpush.msra.mxu0 %v3561
    %3643 = vmatpush.msra.mxu0 %v3560
    %3644 = vmatpush.msra.mxu0 %v3559
    %3645 = vmatmul.f32.gmra.mxu0 %v2841
    %v3646 = vpop.f32.mrf.mxu0
    %v3647 = vadd.f32 0.0, %v3646
    %3648 = vmatmul.f32.gmra.mxu0 %v2843
    %v3649 = vpop.f32.mrf.mxu0
    %v3650 = vadd.f32 0.0, %v3649
    %3651 = vmatmul.f32.gmra.mxu0 %v2943
    %v3652 = vpop.f32.mrf.mxu0
    %v3653 = vadd.f32 0.0, %v3652
    %3654 = vmatmul.f32.gmra.mxu0 %v2945
    %v3655 = vpop.f32.mrf.mxu0
    %v3656 = vadd.f32 0.0, %v3655
    %3657 = vmatmul.f32.gmra.mxu0 %v3045
    %v3658 = vpop.f32.mrf.mxu0
    %v3659 = vadd.f32 0.0, %v3658
    %3660 = vmatmul.f32.gmra.mxu0 %v3047
    %v3661 = vpop.f32.mrf.mxu0
    %v3662 = vadd.f32 0.0, %v3661
    %3663 = vmatmul.f32.gmra.mxu0 %v3147
    %v3664 = vpop.f32.mrf.mxu0
    %v3665 = vadd.f32 0.0, %v3664
    %3666 = vmatmul.f32.gmra.mxu0 %v3149
    %v3667 = vpop.f32.mrf.mxu0
    %v3668 = vadd.f32 0.0, %v3667
    %3669 = vmatmul.f32.gmra.mxu0 %v3249
    %v3670 = vpop.f32.mrf.mxu0
    %v3671 = vadd.f32 0.0, %v3670
    %3672 = vmatmul.f32.gmra.mxu0 %v3251
    %v3673 = vpop.f32.mrf.mxu0
    %v3674 = vadd.f32 0.0, %v3673
    %3675 = vmatmul.f32.gmra.mxu0 %v3351
    %v3676 = vpop.f32.mrf.mxu0
    %v3677 = vadd.f32 0.0, %v3676
    %3678 = vmatmul.f32.gmra.mxu0 %v3353
    %v3679 = vpop.f32.mrf.mxu0
    %v3680 = vadd.f32 0.0, %v3679
    %3681 = vmatmul.f32.gmra.mxu0 %v3453
    %v3682 = vpop.f32.mrf.mxu0
    %v3683 = vadd.f32 0.0, %v3682
    %3684 = vmatmul.f32.gmra.mxu0 %v3455
    %v3685 = vpop.f32.mrf.mxu0
    %v3686 = vadd.f32 0.0, %v3685
    %3687 = vmatmul.f32.gmra.mxu0 %v3555
    %v3688 = vpop.f32.mrf.mxu0
    %v3689 = vadd.f32 0.0, %v3688
    %3690 = vmatmul.f32.gmra.mxu0 %v3557
    %v3691 = vpop.f32.mrf.mxu0
    %v3692 = vadd.f32 0.0, %v3691
    %3693 = vdwg.mxu0
    %3694 = vmatpush.msra.mxu0 0.0
    %3695 = vmatpush.msra.mxu0 0.0
    %3696 = vmatpush.msra.mxu0 0.0
    %3697 = vmatpush.msra.mxu0 0.0
    %3698 = vmatpush.msra.mxu0 0.0
    %3699 = vmatpush.msra.mxu0 0.0
    %3700 = vmatpush.msra.mxu0 0.0
    %3701 = vmatpush.msra.mxu0 0.0
    %3702 = vmatpush.msra.mxu0 0.0
    %3703 = vmatpush.msra.mxu0 0.0
    %3704 = vmatpush.msra.mxu0 0.0
    %3705 = vmatpush.msra.mxu0 %v3579
    %3706 = vmatpush.msra.mxu0 %v3578
    %3707 = vmatpush.msra.mxu0 %v3577
    %3708 = vmatpush.msra.mxu0 %v3576
    %3709 = vmatpush.msra.mxu0 %v3575
    %3710 = vmatmul.f32.gmra.mxu0 %v3582
    %v3711 = vpop.f32.mrf.mxu0
    %v3712 = vadd.f32 %v3647, %v3711
    %3713 = vmatmul.f32.gmra.mxu0 %v3585
    %v3714 = vpop.f32.mrf.mxu0
    %v3715 = vadd.f32 %v3650, %v3714
    %3716 = vmatmul.f32.gmra.mxu0 %v3588
    %v3717 = vpop.f32.mrf.mxu0
    %v3718 = vadd.f32 %v3653, %v3717
    %3719 = vmatmul.f32.gmra.mxu0 %v3591
    %v3720 = vpop.f32.mrf.mxu0
    %v3721 = vadd.f32 %v3656, %v3720
    %3722 = vmatmul.f32.gmra.mxu0 %v3594
    %v3723 = vpop.f32.mrf.mxu0
    %v3724 = vadd.f32 %v3659, %v3723
    %3725 = vmatmul.f32.gmra.mxu0 %v3597
    %v3726 = vpop.f32.mrf.mxu0
    %v3727 = vadd.f32 %v3662, %v3726
    %3728 = vmatmul.f32.gmra.mxu0 %v3600
    %v3729 = vpop.f32.mrf.mxu0
    %v3730 = vadd.f32 %v3665, %v3729
    %3731 = vmatmul.f32.gmra.mxu0 %v3603
    %v3732 = vpop.f32.mrf.mxu0
    %v3733 = vadd.f32 %v3668, %v3732
    %3734 = vmatmul.f32.gmra.mxu0 %v3606
    %v3735 = vpop.f32.mrf.mxu0
    %v3736 = vadd.f32 %v3671, %v3735
    %3737 = vmatmul.f32.gmra.mxu0 %v3609
    %v3738 = vpop.f32.mrf.mxu0
    %v3739 = vadd.f32 %v3674, %v3738
    %3740 = vmatmul.f32.gmra.mxu0 %v3612
    %v3741 = vpop.f32.mrf.mxu0
    %v3742 = vadd.f32 %v3677, %v3741
    %3743 = vmatmul.f32.gmra.mxu0 %v3615
    %v3744 = vpop.f32.mrf.mxu0
    %v3745 = vadd.f32 %v3680, %v3744
    %3746 = vmatmul.f32.gmra.mxu0 %v3618
    %v3747 = vpop.f32.mrf.mxu0
    %v3748 = vadd.f32 %v3683, %v3747
    %3749 = vmatmul.f32.gmra.mxu0 %v3621
    %v3750 = vpop.f32.mrf.mxu0
    %v3751 = vadd.f32 %v3686, %v3750
    %3752 = vmatmul.f32.gmra.mxu0 %v3624
    %v3753 = vpop.f32.mrf.mxu0
    %v3754 = vadd.f32 %v3689, %v3753
    %3755 = vmatmul.f32.gmra.mxu0 %v3627
    %v3756 = vpop.f32.mrf.mxu0
    %v3757 = vadd.f32 %v3692, %v3756
    %3758 = vdwg.mxu0
    %v3759 = vld [vmem:[#allocation7] sm:$0xff]
    %v3760 = vld [vmem:[#allocation7 + $0x8] sm:$0xff]
    %v3761 = vld [vmem:[#allocation7 + $0x10] sm:$0xff]
    %v3762 = vld [vmem:[#allocation7 + $0x18] sm:$0xff]
    %v3763 = vld [vmem:[#allocation7 + $0x20] sm:$0xff]
    %v3764 = vld [vmem:[#allocation7 + $0x28] sm:$0xff]
    %v3765 = vld [vmem:[#allocation7 + $0x30] sm:$0xff]
    %v3766 = vld [vmem:[#allocation7 + $0x38] sm:$0xff]
    %v3767 = vld [vmem:[#allocation7 + $0x40] sm:$0xff]
    %v3768 = vld [vmem:[#allocation7 + $0x48] sm:$0xff]
    %v3769 = vld [vmem:[#allocation7 + $0x50] sm:$0xff]
    %v3770 = vld [vmem:[#allocation7 + $0x58] sm:$0xff]
    %v3771 = vld [vmem:[#allocation7 + $0x60] sm:$0xff]
    %v3772 = vld [vmem:[#allocation7 + $0x68] sm:$0xff]
    %v3773 = vld [vmem:[#allocation7 + $0x70] sm:$0xff]
    %v3774 = vld [vmem:[#allocation7 + $0x78] sm:$0xff]
    %v3775 = vld [vmem:[#allocation7 + $0x80] sm:$0xff]
    %v3776 = vld [vmem:[#allocation7 + $0x88] sm:$0xff]
    %v3777 = vld [vmem:[#allocation7 + $0x90] sm:$0xff]
    %v3778 = vld [vmem:[#allocation7 + $0x98] sm:$0xff]
    %v3779 = vld [vmem:[#allocation7 + $0xa0] sm:$0xff]
    %3780 = vmatpush.msra.mxu0 %v3774
    %3781 = vmatpush.msra.mxu0 %v3773
    %3782 = vmatpush.msra.mxu0 %v3772
    %3783 = vmatpush.msra.mxu0 %v3771
    %3784 = vmatpush.msra.mxu0 %v3770
    %3785 = vmatpush.msra.mxu0 %v3769
    %3786 = vmatpush.msra.mxu0 %v3768
    %3787 = vmatpush.msra.mxu0 %v3767
    %3788 = vmatpush.msra.mxu0 %v3766
    %3789 = vmatpush.msra.mxu0 %v3765
    %3790 = vmatpush.msra.mxu0 %v3764
    %3791 = vmatpush.msra.mxu0 %v3763
    %3792 = vmatpush.msra.mxu0 %v3762
    %3793 = vmatpush.msra.mxu0 %v3761
    %3794 = vmatpush.msra.mxu0 %v3760
    %3795 = vmatpush.msra.mxu0 %v3759
    %3796 = vmatmul.f32.gmra.mxu0 %v2841
    %v3797 = vpop.f32.mrf.mxu0
    %v3798 = vadd.f32 0.0, %v3797
    %3799 = vmatmul.f32.gmra.mxu0 %v2843
    %v3800 = vpop.f32.mrf.mxu0
    %v3801 = vadd.f32 0.0, %v3800
    %3802 = vmatmul.f32.gmra.mxu0 %v2943
    %v3803 = vpop.f32.mrf.mxu0
    %v3804 = vadd.f32 0.0, %v3803
    %3805 = vmatmul.f32.gmra.mxu0 %v2945
    %v3806 = vpop.f32.mrf.mxu0
    %v3807 = vadd.f32 0.0, %v3806
    %3808 = vmatmul.f32.gmra.mxu0 %v3045
    %v3809 = vpop.f32.mrf.mxu0
    %v3810 = vadd.f32 0.0, %v3809
    %3811 = vmatmul.f32.gmra.mxu0 %v3047
    %v3812 = vpop.f32.mrf.mxu0
    %v3813 = vadd.f32 0.0, %v3812
    %3814 = vmatmul.f32.gmra.mxu0 %v3147
    %v3815 = vpop.f32.mrf.mxu0
    %v3816 = vadd.f32 0.0, %v3815
    %3817 = vmatmul.f32.gmra.mxu0 %v3149
    %v3818 = vpop.f32.mrf.mxu0
    %v3819 = vadd.f32 0.0, %v3818
    %3820 = vmatmul.f32.gmra.mxu0 %v3249
    %v3821 = vpop.f32.mrf.mxu0
    %v3822 = vadd.f32 0.0, %v3821
    %3823 = vmatmul.f32.gmra.mxu0 %v3251
    %v3824 = vpop.f32.mrf.mxu0
    %v3825 = vadd.f32 0.0, %v3824
    %3826 = vmatmul.f32.gmra.mxu0 %v3351
    %v3827 = vpop.f32.mrf.mxu0
    %v3828 = vadd.f32 0.0, %v3827
    %3829 = vmatmul.f32.gmra.mxu0 %v3353
    %v3830 = vpop.f32.mrf.mxu0
    %v3831 = vadd.f32 0.0, %v3830
    %3832 = vmatmul.f32.gmra.mxu0 %v3453
    %v3833 = vpop.f32.mrf.mxu0
    %v3834 = vadd.f32 0.0, %v3833
    %3835 = vmatmul.f32.gmra.mxu0 %v3455
    %v3836 = vpop.f32.mrf.mxu0
    %v3837 = vadd.f32 0.0, %v3836
    %3838 = vmatmul.f32.gmra.mxu0 %v3555
    %v3839 = vpop.f32.mrf.mxu0
    %v3840 = vadd.f32 0.0, %v3839
    %3841 = vmatmul.f32.gmra.mxu0 %v3557
    %v3842 = vpop.f32.mrf.mxu0
    %v3843 = vadd.f32 0.0, %v3842
    %3844 = vdwg.mxu0
    %3845 = vmatpush.msra.mxu0 0.0
    %3846 = vmatpush.msra.mxu0 0.0
    %3847 = vmatpush.msra.mxu0 0.0
    %3848 = vmatpush.msra.mxu0 0.0
    %3849 = vmatpush.msra.mxu0 0.0
    %3850 = vmatpush.msra.mxu0 0.0
    %3851 = vmatpush.msra.mxu0 0.0
    %3852 = vmatpush.msra.mxu0 0.0
    %3853 = vmatpush.msra.mxu0 0.0
    %3854 = vmatpush.msra.mxu0 0.0
    %3855 = vmatpush.msra.mxu0 0.0
    %3856 = vmatpush.msra.mxu0 %v3779
    %3857 = vmatpush.msra.mxu0 %v3778
    %3858 = vmatpush.msra.mxu0 %v3777
    %3859 = vmatpush.msra.mxu0 %v3776
    %3860 = vmatpush.msra.mxu0 %v3775
    %3861 = vmatmul.f32.gmra.mxu0 %v3582
    %v3862 = vpop.f32.mrf.mxu0
    %v3863 = vadd.f32 %v3798, %v3862
    %3864 = vmatmul.f32.gmra.mxu0 %v3585
    %v3865 = vpop.f32.mrf.mxu0
    %v3866 = vadd.f32 %v3801, %v3865
    %3867 = vmatmul.f32.gmra.mxu0 %v3588
    %v3868 = vpop.f32.mrf.mxu0
    %v3869 = vadd.f32 %v3804, %v3868
    %3870 = vmatmul.f32.gmra.mxu0 %v3591
    %v3871 = vpop.f32.mrf.mxu0
    %v3872 = vadd.f32 %v3807, %v3871
    %3873 = vmatmul.f32.gmra.mxu0 %v3594
    %v3874 = vpop.f32.mrf.mxu0
    %v3875 = vadd.f32 %v3810, %v3874
    %3876 = vmatmul.f32.gmra.mxu0 %v3597
    %v3877 = vpop.f32.mrf.mxu0
    %v3878 = vadd.f32 %v3813, %v3877
    %3879 = vmatmul.f32.gmra.mxu0 %v3600
    %v3880 = vpop.f32.mrf.mxu0
    %v3881 = vadd.f32 %v3816, %v3880
    %3882 = vmatmul.f32.gmra.mxu0 %v3603
    %v3883 = vpop.f32.mrf.mxu0
    %v3884 = vadd.f32 %v3819, %v3883
    %3885 = vmatmul.f32.gmra.mxu0 %v3606
    %v3886 = vpop.f32.mrf.mxu0
    %v3887 = vadd.f32 %v3822, %v3886
    %3888 = vmatmul.f32.gmra.mxu0 %v3609
    %v3889 = vpop.f32.mrf.mxu0
    %v3890 = vadd.f32 %v3825, %v3889
    %3891 = vmatmul.f32.gmra.mxu0 %v3612
    %v3892 = vpop.f32.mrf.mxu0
    %v3893 = vadd.f32 %v3828, %v3892
    %3894 = vmatmul.f32.gmra.mxu0 %v3615
    %v3895 = vpop.f32.mrf.mxu0
    %v3896 = vadd.f32 %v3831, %v3895
    %3897 = vmatmul.f32.gmra.mxu0 %v3618
    %v3898 = vpop.f32.mrf.mxu0
    %v3899 = vadd.f32 %v3834, %v3898
    %3900 = vmatmul.f32.gmra.mxu0 %v3621
    %v3901 = vpop.f32.mrf.mxu0
    %v3902 = vadd.f32 %v3837, %v3901
    %3903 = vmatmul.f32.gmra.mxu0 %v3624
    %v3904 = vpop.f32.mrf.mxu0
    %v3905 = vadd.f32 %v3840, %v3904
    %3906 = vmatmul.f32.gmra.mxu0 %v3627
    %v3907 = vpop.f32.mrf.mxu0
    %v3908 = vadd.f32 %v3843, %v3907
    %3909 = vdwg.mxu0
    %v3910 = vmax.f32 %v3712, %v3863
    %v3911 = vmax.f32 %v3715, %v3866
    %v3912 = vmax.f32 %v3718, %v3869
    %v3913 = vmax.f32 %v3721, %v3872
    %v3914 = vmax.f32 %v3724, %v3875
    %v3915 = vmax.f32 %v3727, %v3878
    %v3916 = vmax.f32 %v3730, %v3881
    %v3917 = vmax.f32 %v3733, %v3884
    %v3918 = vmax.f32 %v3736, %v3887
    %v3919 = vmax.f32 %v3739, %v3890
    %v3920 = vmax.f32 %v3742, %v3893
    %v3921 = vmax.f32 %v3745, %v3896
    %v3922 = vmax.f32 %v3748, %v3899
    %v3923 = vmax.f32 %v3751, %v3902
    %v3924 = vmax.f32 %v3754, %v3905
    %v3925 = vmax.f32 %v3757, %v3908
    %v3926 = vld [vmem:[%s6] sm:$0x1]
    %v3928 = vperm.slane %v3926, 0
    %v3930 = vadd.f32 %v3910, %v3928
    %v3931 = vadd.f32 %v3911, %v3928
    %v3932 = vadd.f32 %v3912, %v3928
    %v3933 = vadd.f32 %v3913, %v3928
    %v3934 = vadd.f32 %v3914, %v3928
    %v3935 = vadd.f32 %v3915, %v3928
    %v3936 = vadd.f32 %v3916, %v3928
    %v3937 = vadd.f32 %v3917, %v3928
    %v3938 = vadd.f32 %v3918, %v3928
    %v3939 = vadd.f32 %v3919, %v3928
    %v3940 = vadd.f32 %v3920, %v3928
    %v3941 = vadd.f32 %v3921, %v3928
    %v3942 = vadd.f32 %v3922, %v3928
    %v3943 = vadd.f32 %v3923, %v3928
    %v3944 = vadd.f32 %v3924, %v3928
    %v3945 = vadd.f32 %v3925, %v3928
    %v3946 = vmax.f32 %v3930, 0.0
    %v3947 = vmax.f32 %v3931, 0.0
    %v3948 = vmax.f32 %v3932, 0.0
    %v3949 = vmax.f32 %v3933, 0.0
    %v3950 = vmax.f32 %v3934, 0.0
    %v3951 = vmax.f32 %v3935, 0.0
    %v3952 = vmax.f32 %v3936, 0.0
    %v3953 = vmax.f32 %v3937, 0.0
    %v3954 = vmax.f32 %v3938, 0.0
    %v3955 = vmax.f32 %v3939, 0.0
    %v3956 = vmax.f32 %v3940, 0.0
    %v3957 = vmax.f32 %v3941, 0.0
    %v3958 = vmax.f32 %v3942, 0.0
    %v3959 = vmax.f32 %v3943, 0.0
    %v3960 = vmax.f32 %v3944, 0.0
    %v3961 = vmax.f32 %v3945, 0.0
    %v3962 = vld [vmem:[#allocation9] sm:$0xff]
    %v3963 = vld [vmem:[#allocation9 + $0x8] sm:$0xff]
    %v3964 = vld [vmem:[#allocation9 + $0x10] sm:$0xff]
    %v3965 = vld [vmem:[#allocation9 + $0x18] sm:$0xff]
    %v3966 = vld [vmem:[#allocation9 + $0x20] sm:$0xff]
    %v3967 = vld [vmem:[#allocation9 + $0x28] sm:$0xff]
    %v3968 = vld [vmem:[#allocation9 + $0x30] sm:$0xff]
    %v3969 = vld [vmem:[#allocation9 + $0x38] sm:$0xff]
    %v3970 = vld [vmem:[#allocation9 + $0x40] sm:$0xff]
    %v3971 = vld [vmem:[#allocation9 + $0x48] sm:$0xff]
    %v3972 = vld [vmem:[#allocation9 + $0x50] sm:$0xff]
    %v3973 = vld [vmem:[#allocation9 + $0x58] sm:$0xff]
    %v3974 = vld [vmem:[#allocation9 + $0x60] sm:$0xff]
    %v3975 = vld [vmem:[#allocation9 + $0x68] sm:$0xff]
    %v3976 = vld [vmem:[#allocation9 + $0x70] sm:$0xff]
    %v3977 = vld [vmem:[#allocation9 + $0x78] sm:$0xff]
    %v3978 = vld [vmem:[#allocation9 + $0x80] sm:$0xff]
    %v3979 = vld [vmem:[#allocation9 + $0x88] sm:$0xff]
    %v3980 = vld [vmem:[#allocation9 + $0x90] sm:$0xff]
    %v3981 = vld [vmem:[#allocation9 + $0x98] sm:$0xff]
    %v3982 = vld [vmem:[#allocation9 + $0xa0] sm:$0xf]
    %v3983 = vld [vmem:[#allocation9 + $0xa8] sm:$0xf]
    %vm3984 = vcmask 687104
    %v3986 = vsel %vm3984, %v3946, 0
    %v3989 = vsel %vm3984, %v3947, 0
    %v3992 = vsel %vm3984, %v3948, 0
    %v3995 = vsel %vm3984, %v3949, 0
    %v3998 = vsel %vm3984, %v3950, 0
    %v4001 = vsel %vm3984, %v3951, 0
    %v4004 = vsel %vm3984, %v3952, 0
    %v4007 = vsel %vm3984, %v3953, 0
    %v4010 = vsel %vm3984, %v3954, 0
    %v4013 = vsel %vm3984, %v3955, 0
    %v4016 = vsel %vm3984, %v3956, 0
    %v4019 = vsel %vm3984, %v3957, 0
    %v4022 = vsel %vm3984, %v3958, 0
    %v4025 = vsel %vm3984, %v3959, 0
    %v4028 = vsel %vm3984, %v3960, 0
    %v4031 = vsel %vm3984, %v3961, 0
    %v4034 = vsel %vm2485, %v3982, 0
    %v4037 = vsel %vm2485, %v3983, 0
    %4039 = vmatpush.msra.mxu0 0.0
    %4040 = vmatpush.msra.mxu0 0.0
    %4041 = vmatpush.msra.mxu0 0.0
    %4042 = vmatpush.msra.mxu0 0.0
    %4043 = vmatpush.msra.mxu0 0.0
    %4044 = vmatpush.msra.mxu0 %v4034
    %4045 = vmatpush.msra.mxu0 %v3980
    %4046 = vmatpush.msra.mxu0 %v3978
    %4047 = vmatpush.msra.mxu0 %v3976
    %4048 = vmatpush.msra.mxu0 %v3974
    %4049 = vmatpush.msra.mxu0 %v3972
    %4050 = vmatpush.msra.mxu0 %v3970
    %4051 = vmatpush.msra.mxu0 %v3968
    %4052 = vmatpush.msra.mxu0 %v3966
    %4053 = vmatpush.msra.mxu0 %v3964
    %4054 = vmatpush.msra.mxu0 %v3962
    %4055 = vmatmul.f32.gmra.mxu0 %v3986
    %v4056 = vpop.f32.mrf.mxu0
    %v4057 = vadd.f32 0.0, %v4056
    %4058 = vmatmul.f32.gmra.mxu0 %v3989
    %v4059 = vpop.f32.mrf.mxu0
    %v4060 = vadd.f32 0.0, %v4059
    %4061 = vmatmul.f32.gmra.mxu0 %v3992
    %v4062 = vpop.f32.mrf.mxu0
    %v4063 = vadd.f32 0.0, %v4062
    %4064 = vmatmul.f32.gmra.mxu0 %v3995
    %v4065 = vpop.f32.mrf.mxu0
    %v4066 = vadd.f32 0.0, %v4065
    %4067 = vmatmul.f32.gmra.mxu0 %v3998
    %v4068 = vpop.f32.mrf.mxu0
    %v4069 = vadd.f32 0.0, %v4068
    %4070 = vmatmul.f32.gmra.mxu0 %v4001
    %v4071 = vpop.f32.mrf.mxu0
    %v4072 = vadd.f32 0.0, %v4071
    %4073 = vmatmul.f32.gmra.mxu0 %v4004
    %v4074 = vpop.f32.mrf.mxu0
    %v4075 = vadd.f32 0.0, %v4074
    %4076 = vmatmul.f32.gmra.mxu0 %v4007
    %v4077 = vpop.f32.mrf.mxu0
    %v4078 = vadd.f32 0.0, %v4077
    %4079 = vmatmul.f32.gmra.mxu0 %v4010
    %v4080 = vpop.f32.mrf.mxu0
    %v4081 = vadd.f32 0.0, %v4080
    %4082 = vmatmul.f32.gmra.mxu0 %v4013
    %v4083 = vpop.f32.mrf.mxu0
    %v4084 = vadd.f32 0.0, %v4083
    %4085 = vmatmul.f32.gmra.mxu0 %v4016
    %v4086 = vpop.f32.mrf.mxu0
    %v4087 = vadd.f32 0.0, %v4086
    %4088 = vmatmul.f32.gmra.mxu0 %v4019
    %v4089 = vpop.f32.mrf.mxu0
    %v4090 = vadd.f32 0.0, %v4089
    %4091 = vmatmul.f32.gmra.mxu0 %v4022
    %v4092 = vpop.f32.mrf.mxu0
    %v4093 = vadd.f32 0.0, %v4092
    %4094 = vmatmul.f32.gmra.mxu0 %v4025
    %v4095 = vpop.f32.mrf.mxu0
    %v4096 = vadd.f32 0.0, %v4095
    %4097 = vmatmul.f32.gmra.mxu0 %v4028
    %v4098 = vpop.f32.mrf.mxu0
    %v4099 = vadd.f32 0.0, %v4098
    %4100 = vmatmul.f32.gmra.mxu0 %v4031
    %v4101 = vpop.f32.mrf.mxu0
    %v4102 = vadd.f32 0.0, %v4101
    %4103 = vdwg.mxu0
    %4104 = vmatpush.msra.mxu0 0.0
    %4105 = vmatpush.msra.mxu0 0.0
    %4106 = vmatpush.msra.mxu0 0.0
    %4107 = vmatpush.msra.mxu0 0.0
    %4108 = vmatpush.msra.mxu0 0.0
    %4109 = vmatpush.msra.mxu0 %v4037
    %4110 = vmatpush.msra.mxu0 %v3981
    %4111 = vmatpush.msra.mxu0 %v3979
    %4112 = vmatpush.msra.mxu0 %v3977
    %4113 = vmatpush.msra.mxu0 %v3975
    %4114 = vmatpush.msra.mxu0 %v3973
    %4115 = vmatpush.msra.mxu0 %v3971
    %4116 = vmatpush.msra.mxu0 %v3969
    %4117 = vmatpush.msra.mxu0 %v3967
    %4118 = vmatpush.msra.mxu0 %v3965
    %4119 = vmatpush.msra.mxu0 %v3963
    %4120 = vmatmul.f32.gmra.mxu0 %v3986
    %v4121 = vpop.f32.mrf.mxu0
    %v4122 = vadd.f32 0.0, %v4121
    %4123 = vmatmul.f32.gmra.mxu0 %v3989
    %v4124 = vpop.f32.mrf.mxu0
    %v4125 = vadd.f32 0.0, %v4124
    %4126 = vmatmul.f32.gmra.mxu0 %v3992
    %v4127 = vpop.f32.mrf.mxu0
    %v4128 = vadd.f32 0.0, %v4127
    %4129 = vmatmul.f32.gmra.mxu0 %v3995
    %v4130 = vpop.f32.mrf.mxu0
    %v4131 = vadd.f32 0.0, %v4130
    %4132 = vmatmul.f32.gmra.mxu0 %v3998
    %v4133 = vpop.f32.mrf.mxu0
    %v4134 = vadd.f32 0.0, %v4133
    %4135 = vmatmul.f32.gmra.mxu0 %v4001
    %v4136 = vpop.f32.mrf.mxu0
    %v4137 = vadd.f32 0.0, %v4136
    %4138 = vmatmul.f32.gmra.mxu0 %v4004
    %v4139 = vpop.f32.mrf.mxu0
    %v4140 = vadd.f32 0.0, %v4139
    %4141 = vmatmul.f32.gmra.mxu0 %v4007
    %v4142 = vpop.f32.mrf.mxu0
    %v4143 = vadd.f32 0.0, %v4142
    %4144 = vmatmul.f32.gmra.mxu0 %v4010
    %v4145 = vpop.f32.mrf.mxu0
    %v4146 = vadd.f32 0.0, %v4145
    %4147 = vmatmul.f32.gmra.mxu0 %v4013
    %v4148 = vpop.f32.mrf.mxu0
    %v4149 = vadd.f32 0.0, %v4148
    %4150 = vmatmul.f32.gmra.mxu0 %v4016
    %v4151 = vpop.f32.mrf.mxu0
    %v4152 = vadd.f32 0.0, %v4151
    %4153 = vmatmul.f32.gmra.mxu0 %v4019
    %v4154 = vpop.f32.mrf.mxu0
    %v4155 = vadd.f32 0.0, %v4154
    %4156 = vmatmul.f32.gmra.mxu0 %v4022
    %v4157 = vpop.f32.mrf.mxu0
    %v4158 = vadd.f32 0.0, %v4157
    %4159 = vmatmul.f32.gmra.mxu0 %v4025
    %v4160 = vpop.f32.mrf.mxu0
    %v4161 = vadd.f32 0.0, %v4160
    %4162 = vmatmul.f32.gmra.mxu0 %v4028
    %v4163 = vpop.f32.mrf.mxu0
    %v4164 = vadd.f32 0.0, %v4163
    %4165 = vmatmul.f32.gmra.mxu0 %v4031
    %v4166 = vpop.f32.mrf.mxu0
    %v4167 = vadd.f32 0.0, %v4166
    %4168 = vdwg.mxu0
    %s4169 = scalar_lea.vmem [#allocation9], 176
    %v4170 = vld [vmem:[%s4169] sm:$0xff]
    %v4171 = vld [vmem:[%s4169 + $0x8] sm:$0xff]
    %v4172 = vld [vmem:[%s4169 + $0x10] sm:$0xff]
    %v4173 = vld [vmem:[%s4169 + $0x18] sm:$0xff]
    %v4174 = vld [vmem:[%s4169 + $0x20] sm:$0xff]
    %v4175 = vld [vmem:[%s4169 + $0x28] sm:$0xff]
    %v4176 = vld [vmem:[%s4169 + $0x30] sm:$0xff]
    %v4177 = vld [vmem:[%s4169 + $0x38] sm:$0xff]
    %v4178 = vld [vmem:[%s4169 + $0x40] sm:$0xff]
    %v4179 = vld [vmem:[%s4169 + $0x48] sm:$0xff]
    %v4180 = vld [vmem:[%s4169 + $0x50] sm:$0xff]
    %v4181 = vld [vmem:[%s4169 + $0x58] sm:$0xff]
    %v4182 = vld [vmem:[%s4169 + $0x60] sm:$0xff]
    %v4183 = vld [vmem:[%s4169 + $0x68] sm:$0xff]
    %v4184 = vld [vmem:[%s4169 + $0x70] sm:$0xff]
    %v4185 = vld [vmem:[%s4169 + $0x78] sm:$0xff]
    %v4186 = vld [vmem:[%s4169 + $0x80] sm:$0xff]
    %v4187 = vld [vmem:[%s4169 + $0x88] sm:$0xff]
    %v4188 = vld [vmem:[%s4169 + $0x90] sm:$0xff]
    %v4189 = vld [vmem:[%s4169 + $0x98] sm:$0xff]
    %v4190 = vld [vmem:[%s4169 + $0xa0] sm:$0xf]
    %v4191 = vld [vmem:[%s4169 + $0xa8] sm:$0xf]
    %v4193 = vsel %vm2485, %v4190, 0
    %v4196 = vsel %vm2485, %v4191, 0
    %4198 = vmatpush.msra.mxu0 0.0
    %4199 = vmatpush.msra.mxu0 0.0
    %4200 = vmatpush.msra.mxu0 0.0
    %4201 = vmatpush.msra.mxu0 0.0
    %4202 = vmatpush.msra.mxu0 0.0
    %4203 = vmatpush.msra.mxu0 %v4193
    %4204 = vmatpush.msra.mxu0 %v4188
    %4205 = vmatpush.msra.mxu0 %v4186
    %4206 = vmatpush.msra.mxu0 %v4184
    %4207 = vmatpush.msra.mxu0 %v4182
    %4208 = vmatpush.msra.mxu0 %v4180
    %4209 = vmatpush.msra.mxu0 %v4178
    %4210 = vmatpush.msra.mxu0 %v4176
    %4211 = vmatpush.msra.mxu0 %v4174
    %4212 = vmatpush.msra.mxu0 %v4172
    %4213 = vmatpush.msra.mxu0 %v4170
    %4214 = vmatmul.f32.gmra.mxu0 %v3986
    %v4215 = vpop.f32.mrf.mxu0
    %v4216 = vadd.f32 0.0, %v4215
    %4217 = vmatmul.f32.gmra.mxu0 %v3989
    %v4218 = vpop.f32.mrf.mxu0
    %v4219 = vadd.f32 0.0, %v4218
    %4220 = vmatmul.f32.gmra.mxu0 %v3992
    %v4221 = vpop.f32.mrf.mxu0
    %v4222 = vadd.f32 0.0, %v4221
    %4223 = vmatmul.f32.gmra.mxu0 %v3995
    %v4224 = vpop.f32.mrf.mxu0
    %v4225 = vadd.f32 0.0, %v4224
    %4226 = vmatmul.f32.gmra.mxu0 %v3998
    %v4227 = vpop.f32.mrf.mxu0
    %v4228 = vadd.f32 0.0, %v4227
    %4229 = vmatmul.f32.gmra.mxu0 %v4001
    %v4230 = vpop.f32.mrf.mxu0
    %v4231 = vadd.f32 0.0, %v4230
    %4232 = vmatmul.f32.gmra.mxu0 %v4004
    %v4233 = vpop.f32.mrf.mxu0
    %v4234 = vadd.f32 0.0, %v4233
    %4235 = vmatmul.f32.gmra.mxu0 %v4007
    %v4236 = vpop.f32.mrf.mxu0
    %v4237 = vadd.f32 0.0, %v4236
    %4238 = vmatmul.f32.gmra.mxu0 %v4010
    %v4239 = vpop.f32.mrf.mxu0
    %v4240 = vadd.f32 0.0, %v4239
    %4241 = vmatmul.f32.gmra.mxu0 %v4013
    %v4242 = vpop.f32.mrf.mxu0
    %v4243 = vadd.f32 0.0, %v4242
    %4244 = vmatmul.f32.gmra.mxu0 %v4016
    %v4245 = vpop.f32.mrf.mxu0
    %v4246 = vadd.f32 0.0, %v4245
    %4247 = vmatmul.f32.gmra.mxu0 %v4019
    %v4248 = vpop.f32.mrf.mxu0
    %v4249 = vadd.f32 0.0, %v4248
    %4250 = vmatmul.f32.gmra.mxu0 %v4022
    %v4251 = vpop.f32.mrf.mxu0
    %v4252 = vadd.f32 0.0, %v4251
    %4253 = vmatmul.f32.gmra.mxu0 %v4025
    %v4254 = vpop.f32.mrf.mxu0
    %v4255 = vadd.f32 0.0, %v4254
    %4256 = vmatmul.f32.gmra.mxu0 %v4028
    %v4257 = vpop.f32.mrf.mxu0
    %v4258 = vadd.f32 0.0, %v4257
    %4259 = vmatmul.f32.gmra.mxu0 %v4031
    %v4260 = vpop.f32.mrf.mxu0
    %v4261 = vadd.f32 0.0, %v4260
    %4262 = vdwg.mxu0
    %4263 = vmatpush.msra.mxu0 0.0
    %4264 = vmatpush.msra.mxu0 0.0
    %4265 = vmatpush.msra.mxu0 0.0
    %4266 = vmatpush.msra.mxu0 0.0
    %4267 = vmatpush.msra.mxu0 0.0
    %4268 = vmatpush.msra.mxu0 %v4196
    %4269 = vmatpush.msra.mxu0 %v4189
    %4270 = vmatpush.msra.mxu0 %v4187
    %4271 = vmatpush.msra.mxu0 %v4185
    %4272 = vmatpush.msra.mxu0 %v4183
    %4273 = vmatpush.msra.mxu0 %v4181
    %4274 = vmatpush.msra.mxu0 %v4179
    %4275 = vmatpush.msra.mxu0 %v4177
    %4276 = vmatpush.msra.mxu0 %v4175
    %4277 = vmatpush.msra.mxu0 %v4173
    %4278 = vmatpush.msra.mxu0 %v4171
    %4279 = vmatmul.f32.gmra.mxu0 %v3986
    %v4280 = vpop.f32.mrf.mxu0
    %v4281 = vadd.f32 0.0, %v4280
    %4282 = vmatmul.f32.gmra.mxu0 %v3989
    %v4283 = vpop.f32.mrf.mxu0
    %v4284 = vadd.f32 0.0, %v4283
    %4285 = vmatmul.f32.gmra.mxu0 %v3992
    %v4286 = vpop.f32.mrf.mxu0
    %v4287 = vadd.f32 0.0, %v4286
    %4288 = vmatmul.f32.gmra.mxu0 %v3995
    %v4289 = vpop.f32.mrf.mxu0
    %v4290 = vadd.f32 0.0, %v4289
    %4291 = vmatmul.f32.gmra.mxu0 %v3998
    %v4292 = vpop.f32.mrf.mxu0
    %v4293 = vadd.f32 0.0, %v4292
    %4294 = vmatmul.f32.gmra.mxu0 %v4001
    %v4295 = vpop.f32.mrf.mxu0
    %v4296 = vadd.f32 0.0, %v4295
    %4297 = vmatmul.f32.gmra.mxu0 %v4004
    %v4298 = vpop.f32.mrf.mxu0
    %v4299 = vadd.f32 0.0, %v4298
    %4300 = vmatmul.f32.gmra.mxu0 %v4007
    %v4301 = vpop.f32.mrf.mxu0
    %v4302 = vadd.f32 0.0, %v4301
    %4303 = vmatmul.f32.gmra.mxu0 %v4010
    %v4304 = vpop.f32.mrf.mxu0
    %v4305 = vadd.f32 0.0, %v4304
    %4306 = vmatmul.f32.gmra.mxu0 %v4013
    %v4307 = vpop.f32.mrf.mxu0
    %v4308 = vadd.f32 0.0, %v4307
    %4309 = vmatmul.f32.gmra.mxu0 %v4016
    %v4310 = vpop.f32.mrf.mxu0
    %v4311 = vadd.f32 0.0, %v4310
    %4312 = vmatmul.f32.gmra.mxu0 %v4019
    %v4313 = vpop.f32.mrf.mxu0
    %v4314 = vadd.f32 0.0, %v4313
    %4315 = vmatmul.f32.gmra.mxu0 %v4022
    %v4316 = vpop.f32.mrf.mxu0
    %v4317 = vadd.f32 0.0, %v4316
    %4318 = vmatmul.f32.gmra.mxu0 %v4025
    %v4319 = vpop.f32.mrf.mxu0
    %v4320 = vadd.f32 0.0, %v4319
    %4321 = vmatmul.f32.gmra.mxu0 %v4028
    %v4322 = vpop.f32.mrf.mxu0
    %v4323 = vadd.f32 0.0, %v4322
    %4324 = vmatmul.f32.gmra.mxu0 %v4031
    %v4325 = vpop.f32.mrf.mxu0
    %v4326 = vadd.f32 0.0, %v4325
    %4327 = vdwg.mxu0
    %v4360 = vrot.slane %v4216, 1
    %v4361 = vrot.slane %v4219, 1
    %v4362 = vsel %vm865, %v4360, %v4361
    %v4363 = vrot.slane %v4281, 1
    %v4364 = vrot.slane %v4284, 1
    %v4365 = vsel %vm865, %v4363, %v4364
    %v4366 = vrot.slane %v4222, 1
    %v4367 = vrot.slane %v4225, 1
    %v4368 = vsel %vm865, %v4366, %v4367
    %v4369 = vrot.slane %v4287, 1
    %v4370 = vrot.slane %v4290, 1
    %v4371 = vsel %vm865, %v4369, %v4370
    %v4372 = vrot.slane %v4228, 1
    %v4373 = vrot.slane %v4231, 1
    %v4374 = vsel %vm865, %v4372, %v4373
    %v4375 = vrot.slane %v4293, 1
    %v4376 = vrot.slane %v4296, 1
    %v4377 = vsel %vm865, %v4375, %v4376
    %v4378 = vrot.slane %v4234, 1
    %v4379 = vrot.slane %v4237, 1
    %v4380 = vsel %vm865, %v4378, %v4379
    %v4381 = vrot.slane %v4299, 1
    %v4382 = vrot.slane %v4302, 1
    %v4383 = vsel %vm865, %v4381, %v4382
    %v4384 = vrot.slane %v4240, 1
    %v4385 = vrot.slane %v4243, 1
    %v4386 = vsel %vm865, %v4384, %v4385
    %v4387 = vrot.slane %v4305, 1
    %v4388 = vrot.slane %v4308, 1
    %v4389 = vsel %vm865, %v4387, %v4388
    %v4390 = vrot.slane %v4246, 1
    %v4391 = vrot.slane %v4249, 1
    %v4392 = vsel %vm865, %v4390, %v4391
    %v4393 = vrot.slane %v4311, 1
    %v4394 = vrot.slane %v4314, 1
    %v4395 = vsel %vm865, %v4393, %v4394
    %v4396 = vrot.slane %v4252, 1
    %v4397 = vrot.slane %v4255, 1
    %v4398 = vsel %vm865, %v4396, %v4397
    %v4399 = vrot.slane %v4317, 1
    %v4400 = vrot.slane %v4320, 1
    %v4401 = vsel %vm865, %v4399, %v4400
    %v4402 = vrot.slane %v4258, 1
    %v4403 = vrot.slane %v4261, 1
    %v4404 = vsel %vm865, %v4402, %v4403
    %v4405 = vrot.slane %v4323, 1
    %v4406 = vrot.slane %v4326, 1
    %v4407 = vsel %vm865, %v4405, %v4406
    %v4440 = vadd.f32 %v4057, %v4362
    %v4441 = vadd.f32 %v4122, %v4365
    %v4442 = vadd.f32 %v4060, %v4361
    %v4443 = vadd.f32 %v4125, %v4364
    %v4444 = vadd.f32 %v4063, %v4368
    %v4445 = vadd.f32 %v4128, %v4371
    %v4446 = vadd.f32 %v4066, %v4367
    %v4447 = vadd.f32 %v4131, %v4370
    %v4448 = vadd.f32 %v4069, %v4374
    %v4449 = vadd.f32 %v4134, %v4377
    %v4450 = vadd.f32 %v4072, %v4373
    %v4451 = vadd.f32 %v4137, %v4376
    %v4452 = vadd.f32 %v4075, %v4380
    %v4453 = vadd.f32 %v4140, %v4383
    %v4454 = vadd.f32 %v4078, %v4379
    %v4455 = vadd.f32 %v4143, %v4382
    %v4456 = vadd.f32 %v4081, %v4386
    %v4457 = vadd.f32 %v4146, %v4389
    %v4458 = vadd.f32 %v4084, %v4385
    %v4459 = vadd.f32 %v4149, %v4388
    %v4460 = vadd.f32 %v4087, %v4392
    %v4461 = vadd.f32 %v4152, %v4395
    %v4462 = vadd.f32 %v4090, %v4391
    %v4463 = vadd.f32 %v4155, %v4394
    %v4464 = vadd.f32 %v4093, %v4398
    %v4465 = vadd.f32 %v4158, %v4401
    %v4466 = vadd.f32 %v4096, %v4397
    %v4467 = vadd.f32 %v4161, %v4400
    %v4468 = vadd.f32 %v4099, %v4404
    %v4469 = vadd.f32 %v4164, %v4407
    %v4470 = vadd.f32 %v4102, %v4403
    %v4471 = vadd.f32 %v4167, %v4406
    %s4472 = scalar_lea.vmem [#allocation9], 352
    %v4473 = vld [vmem:[%s4472] sm:$0xff]
    %v4474 = vld [vmem:[%s4472 + $0x8] sm:$0xff]
    %v4475 = vld [vmem:[%s4472 + $0x10] sm:$0xff]
    %v4476 = vld [vmem:[%s4472 + $0x18] sm:$0xff]
    %v4477 = vld [vmem:[%s4472 + $0x20] sm:$0xff]
    %v4478 = vld [vmem:[%s4472 + $0x28] sm:$0xff]
    %v4479 = vld [vmem:[%s4472 + $0x30] sm:$0xff]
    %v4480 = vld [vmem:[%s4472 + $0x38] sm:$0xff]
    %v4481 = vld [vmem:[%s4472 + $0x40] sm:$0xff]
    %v4482 = vld [vmem:[%s4472 + $0x48] sm:$0xff]
    %v4483 = vld [vmem:[%s4472 + $0x50] sm:$0xff]
    %v4484 = vld [vmem:[%s4472 + $0x58] sm:$0xff]
    %v4485 = vld [vmem:[%s4472 + $0x60] sm:$0xff]
    %v4486 = vld [vmem:[%s4472 + $0x68] sm:$0xff]
    %v4487 = vld [vmem:[%s4472 + $0x70] sm:$0xff]
    %v4488 = vld [vmem:[%s4472 + $0x78] sm:$0xff]
    %v4489 = vld [vmem:[%s4472 + $0x80] sm:$0xff]
    %v4490 = vld [vmem:[%s4472 + $0x88] sm:$0xff]
    %v4491 = vld [vmem:[%s4472 + $0x90] sm:$0xff]
    %v4492 = vld [vmem:[%s4472 + $0x98] sm:$0xff]
    %v4493 = vld [vmem:[%s4472 + $0xa0] sm:$0xf]
    %v4494 = vld [vmem:[%s4472 + $0xa8] sm:$0xf]
    %v4496 = vsel %vm2485, %v4493, 0
    %v4499 = vsel %vm2485, %v4494, 0
    %4501 = vmatpush.msra.mxu0 0.0
    %4502 = vmatpush.msra.mxu0 0.0
    %4503 = vmatpush.msra.mxu0 0.0
    %4504 = vmatpush.msra.mxu0 0.0
    %4505 = vmatpush.msra.mxu0 0.0
    %4506 = vmatpush.msra.mxu0 %v4496
    %4507 = vmatpush.msra.mxu0 %v4491
    %4508 = vmatpush.msra.mxu0 %v4489
    %4509 = vmatpush.msra.mxu0 %v4487
    %4510 = vmatpush.msra.mxu0 %v4485
    %4511 = vmatpush.msra.mxu0 %v4483
    %4512 = vmatpush.msra.mxu0 %v4481
    %4513 = vmatpush.msra.mxu0 %v4479
    %4514 = vmatpush.msra.mxu0 %v4477
    %4515 = vmatpush.msra.mxu0 %v4475
    %4516 = vmatpush.msra.mxu0 %v4473
    %4517 = vmatmul.f32.gmra.mxu0 %v3986
    %v4518 = vpop.f32.mrf.mxu0
    %v4519 = vadd.f32 0.0, %v4518
    %4520 = vmatmul.f32.gmra.mxu0 %v3989
    %v4521 = vpop.f32.mrf.mxu0
    %v4522 = vadd.f32 0.0, %v4521
    %4523 = vmatmul.f32.gmra.mxu0 %v3992
    %v4524 = vpop.f32.mrf.mxu0
    %v4525 = vadd.f32 0.0, %v4524
    %4526 = vmatmul.f32.gmra.mxu0 %v3995
    %v4527 = vpop.f32.mrf.mxu0
    %v4528 = vadd.f32 0.0, %v4527
    %4529 = vmatmul.f32.gmra.mxu0 %v3998
    %v4530 = vpop.f32.mrf.mxu0
    %v4531 = vadd.f32 0.0, %v4530
    %4532 = vmatmul.f32.gmra.mxu0 %v4001
    %v4533 = vpop.f32.mrf.mxu0
    %v4534 = vadd.f32 0.0, %v4533
    %4535 = vmatmul.f32.gmra.mxu0 %v4004
    %v4536 = vpop.f32.mrf.mxu0
    %v4537 = vadd.f32 0.0, %v4536
    %4538 = vmatmul.f32.gmra.mxu0 %v4007
    %v4539 = vpop.f32.mrf.mxu0
    %v4540 = vadd.f32 0.0, %v4539
    %4541 = vmatmul.f32.gmra.mxu0 %v4010
    %v4542 = vpop.f32.mrf.mxu0
    %v4543 = vadd.f32 0.0, %v4542
    %4544 = vmatmul.f32.gmra.mxu0 %v4013
    %v4545 = vpop.f32.mrf.mxu0
    %v4546 = vadd.f32 0.0, %v4545
    %4547 = vmatmul.f32.gmra.mxu0 %v4016
    %v4548 = vpop.f32.mrf.mxu0
    %v4549 = vadd.f32 0.0, %v4548
    %4550 = vmatmul.f32.gmra.mxu0 %v4019
    %v4551 = vpop.f32.mrf.mxu0
    %v4552 = vadd.f32 0.0, %v4551
    %4553 = vmatmul.f32.gmra.mxu0 %v4022
    %v4554 = vpop.f32.mrf.mxu0
    %v4555 = vadd.f32 0.0, %v4554
    %4556 = vmatmul.f32.gmra.mxu0 %v4025
    %v4557 = vpop.f32.mrf.mxu0
    %v4558 = vadd.f32 0.0, %v4557
    %4559 = vmatmul.f32.gmra.mxu0 %v4028
    %v4560 = vpop.f32.mrf.mxu0
    %v4561 = vadd.f32 0.0, %v4560
    %4562 = vmatmul.f32.gmra.mxu0 %v4031
    %v4563 = vpop.f32.mrf.mxu0
    %v4564 = vadd.f32 0.0, %v4563
    %4565 = vdwg.mxu0
    %4566 = vmatpush.msra.mxu0 0.0
    %4567 = vmatpush.msra.mxu0 0.0
    %4568 = vmatpush.msra.mxu0 0.0
    %4569 = vmatpush.msra.mxu0 0.0
    %4570 = vmatpush.msra.mxu0 0.0
    %4571 = vmatpush.msra.mxu0 %v4499
    %4572 = vmatpush.msra.mxu0 %v4492
    %4573 = vmatpush.msra.mxu0 %v4490
    %4574 = vmatpush.msra.mxu0 %v4488
    %4575 = vmatpush.msra.mxu0 %v4486
    %4576 = vmatpush.msra.mxu0 %v4484
    %4577 = vmatpush.msra.mxu0 %v4482
    %4578 = vmatpush.msra.mxu0 %v4480
    %4579 = vmatpush.msra.mxu0 %v4478
    %4580 = vmatpush.msra.mxu0 %v4476
    %4581 = vmatpush.msra.mxu0 %v4474
    %4582 = vmatmul.f32.gmra.mxu0 %v3986
    %v4583 = vpop.f32.mrf.mxu0
    %v4584 = vadd.f32 0.0, %v4583
    %4585 = vmatmul.f32.gmra.mxu0 %v3989
    %v4586 = vpop.f32.mrf.mxu0
    %v4587 = vadd.f32 0.0, %v4586
    %4588 = vmatmul.f32.gmra.mxu0 %v3992
    %v4589 = vpop.f32.mrf.mxu0
    %v4590 = vadd.f32 0.0, %v4589
    %4591 = vmatmul.f32.gmra.mxu0 %v3995
    %v4592 = vpop.f32.mrf.mxu0
    %v4593 = vadd.f32 0.0, %v4592
    %4594 = vmatmul.f32.gmra.mxu0 %v3998
    %v4595 = vpop.f32.mrf.mxu0
    %v4596 = vadd.f32 0.0, %v4595
    %4597 = vmatmul.f32.gmra.mxu0 %v4001
    %v4598 = vpop.f32.mrf.mxu0
    %v4599 = vadd.f32 0.0, %v4598
    %4600 = vmatmul.f32.gmra.mxu0 %v4004
    %v4601 = vpop.f32.mrf.mxu0
    %v4602 = vadd.f32 0.0, %v4601
    %4603 = vmatmul.f32.gmra.mxu0 %v4007
    %v4604 = vpop.f32.mrf.mxu0
    %v4605 = vadd.f32 0.0, %v4604
    %4606 = vmatmul.f32.gmra.mxu0 %v4010
    %v4607 = vpop.f32.mrf.mxu0
    %v4608 = vadd.f32 0.0, %v4607
    %4609 = vmatmul.f32.gmra.mxu0 %v4013
    %v4610 = vpop.f32.mrf.mxu0
    %v4611 = vadd.f32 0.0, %v4610
    %4612 = vmatmul.f32.gmra.mxu0 %v4016
    %v4613 = vpop.f32.mrf.mxu0
    %v4614 = vadd.f32 0.0, %v4613
    %4615 = vmatmul.f32.gmra.mxu0 %v4019
    %v4616 = vpop.f32.mrf.mxu0
    %v4617 = vadd.f32 0.0, %v4616
    %4618 = vmatmul.f32.gmra.mxu0 %v4022
    %v4619 = vpop.f32.mrf.mxu0
    %v4620 = vadd.f32 0.0, %v4619
    %4621 = vmatmul.f32.gmra.mxu0 %v4025
    %v4622 = vpop.f32.mrf.mxu0
    %v4623 = vadd.f32 0.0, %v4622
    %4624 = vmatmul.f32.gmra.mxu0 %v4028
    %v4625 = vpop.f32.mrf.mxu0
    %v4626 = vadd.f32 0.0, %v4625
    %4627 = vmatmul.f32.gmra.mxu0 %v4031
    %v4628 = vpop.f32.mrf.mxu0
    %v4629 = vadd.f32 0.0, %v4628
    %4630 = vdwg.mxu0
    %v4663 = vrot.slane %v4519, 2
    %v4664 = vrot.slane %v4522, 2
    %v4665 = vsel %vm1405, %v4663, %v4664
    %v4666 = vrot.slane %v4584, 2
    %v4667 = vrot.slane %v4587, 2
    %v4668 = vsel %vm1405, %v4666, %v4667
    %v4669 = vrot.slane %v4525, 2
    %v4670 = vrot.slane %v4528, 2
    %v4671 = vsel %vm1405, %v4669, %v4670
    %v4672 = vrot.slane %v4590, 2
    %v4673 = vrot.slane %v4593, 2
    %v4674 = vsel %vm1405, %v4672, %v4673
    %v4675 = vrot.slane %v4531, 2
    %v4676 = vrot.slane %v4534, 2
    %v4677 = vsel %vm1405, %v4675, %v4676
    %v4678 = vrot.slane %v4596, 2
    %v4679 = vrot.slane %v4599, 2
    %v4680 = vsel %vm1405, %v4678, %v4679
    %v4681 = vrot.slane %v4537, 2
    %v4682 = vrot.slane %v4540, 2
    %v4683 = vsel %vm1405, %v4681, %v4682
    %v4684 = vrot.slane %v4602, 2
    %v4685 = vrot.slane %v4605, 2
    %v4686 = vsel %vm1405, %v4684, %v4685
    %v4687 = vrot.slane %v4543, 2
    %v4688 = vrot.slane %v4546, 2
    %v4689 = vsel %vm1405, %v4687, %v4688
    %v4690 = vrot.slane %v4608, 2
    %v4691 = vrot.slane %v4611, 2
    %v4692 = vsel %vm1405, %v4690, %v4691
    %v4693 = vrot.slane %v4549, 2
    %v4694 = vrot.slane %v4552, 2
    %v4695 = vsel %vm1405, %v4693, %v4694
    %v4696 = vrot.slane %v4614, 2
    %v4697 = vrot.slane %v4617, 2
    %v4698 = vsel %vm1405, %v4696, %v4697
    %v4699 = vrot.slane %v4555, 2
    %v4700 = vrot.slane %v4558, 2
    %v4701 = vsel %vm1405, %v4699, %v4700
    %v4702 = vrot.slane %v4620, 2
    %v4703 = vrot.slane %v4623, 2
    %v4704 = vsel %vm1405, %v4702, %v4703
    %v4705 = vrot.slane %v4561, 2
    %v4706 = vrot.slane %v4564, 2
    %v4707 = vsel %vm1405, %v4705, %v4706
    %v4708 = vrot.slane %v4626, 2
    %v4709 = vrot.slane %v4629, 2
    %v4710 = vsel %vm1405, %v4708, %v4709
    %v4743 = vadd.f32 %v4440, %v4665
    %v4744 = vadd.f32 %v4441, %v4668
    %v4745 = vadd.f32 %v4442, %v4664
    %v4746 = vadd.f32 %v4443, %v4667
    %v4747 = vadd.f32 %v4444, %v4671
    %v4748 = vadd.f32 %v4445, %v4674
    %v4749 = vadd.f32 %v4446, %v4670
    %v4750 = vadd.f32 %v4447, %v4673
    %v4751 = vadd.f32 %v4448, %v4677
    %v4752 = vadd.f32 %v4449, %v4680
    %v4753 = vadd.f32 %v4450, %v4676
    %v4754 = vadd.f32 %v4451, %v4679
    %v4755 = vadd.f32 %v4452, %v4683
    %v4756 = vadd.f32 %v4453, %v4686
    %v4757 = vadd.f32 %v4454, %v4682
    %v4758 = vadd.f32 %v4455, %v4685
    %v4759 = vadd.f32 %v4456, %v4689
    %v4760 = vadd.f32 %v4457, %v4692
    %v4761 = vadd.f32 %v4458, %v4688
    %v4762 = vadd.f32 %v4459, %v4691
    %v4763 = vadd.f32 %v4460, %v4695
    %v4764 = vadd.f32 %v4461, %v4698
    %v4765 = vadd.f32 %v4462, %v4694
    %v4766 = vadd.f32 %v4463, %v4697
    %v4767 = vadd.f32 %v4464, %v4701
    %v4768 = vadd.f32 %v4465, %v4704
    %v4769 = vadd.f32 %v4466, %v4700
    %v4770 = vadd.f32 %v4467, %v4703
    %v4771 = vadd.f32 %v4468, %v4707
    %v4772 = vadd.f32 %v4469, %v4710
    %v4773 = vadd.f32 %v4470, %v4706
    %v4774 = vadd.f32 %v4471, %v4709
    %v4775 = vld [vmem:[%s8] sm:$0xff]
    %v4776 = vld [vmem:[#allocation10] sm:$0xff]
    %vm4777 = vcmask 97280
    %v4779 = vsel %vm4777, %v4775, 0
    %v4782 = vsel %vm2485, %v4745, 0
    %v4785 = vsel %vm2485, %v4746, 0
    %4787 = vmatpush.msra.mxu0 0.0
    %4788 = vmatpush.msra.mxu0 0.0
    %4789 = vmatpush.msra.mxu0 0.0
    %4790 = vmatpush.msra.mxu0 0.0
    %4791 = vmatpush.msra.mxu0 0.0
    %4792 = vmatpush.msra.mxu0 0.0
    %4793 = vmatpush.msra.mxu0 0.0
    %4794 = vmatpush.msra.mxu0 0.0
    %4795 = vmatpush.msra.mxu0 0.0
    %4796 = vmatpush.msra.mxu0 0.0
    %4797 = vmatpush.msra.mxu0 0.0
    %4798 = vmatpush.msra.mxu0 0.0
    %4799 = vmatpush.msra.mxu0 0.0
    %4800 = vmatpush.msra.mxu0 0.0
    %4801 = vmatpush.msra.mxu0 %v4782
    %4802 = vmatpush.msra.mxu0 %v4743
    %4803 = vmatmul.f32.gmra.mxu0 %v4779
    %v4804 = vpop.f32.mrf.mxu0
    %v4805 = vadd.f32 0.0, %v4804
    %4806 = vdwg.mxu0
    %4807 = vmatpush.msra.mxu0 0.0
    %4808 = vmatpush.msra.mxu0 0.0
    %4809 = vmatpush.msra.mxu0 0.0
    %4810 = vmatpush.msra.mxu0 0.0
    %4811 = vmatpush.msra.mxu0 0.0
    %4812 = vmatpush.msra.mxu0 0.0
    %4813 = vmatpush.msra.mxu0 0.0
    %4814 = vmatpush.msra.mxu0 0.0
    %4815 = vmatpush.msra.mxu0 0.0
    %4816 = vmatpush.msra.mxu0 0.0
    %4817 = vmatpush.msra.mxu0 0.0
    %4818 = vmatpush.msra.mxu0 0.0
    %4819 = vmatpush.msra.mxu0 0.0
    %4820 = vmatpush.msra.mxu0 0.0
    %4821 = vmatpush.msra.mxu0 %v4785
    %4822 = vmatpush.msra.mxu0 %v4744
    %4823 = vmatmul.f32.gmra.mxu0 %v4779
    %v4824 = vpop.f32.mrf.mxu0
    %v4825 = vadd.f32 0.0, %v4824
    %4826 = vdwg.mxu0
    %v4828 = vsel %vm4777, %v4776, 0
    %4830 = vmatpush.msra.mxu0 0.0
    %4831 = vmatpush.msra.mxu0 0.0
    %4832 = vmatpush.msra.mxu0 0.0
    %4833 = vmatpush.msra.mxu0 0.0
    %4834 = vmatpush.msra.mxu0 0.0
    %4835 = vmatpush.msra.mxu0 0.0
    %4836 = vmatpush.msra.mxu0 0.0
    %4837 = vmatpush.msra.mxu0 0.0
    %4838 = vmatpush.msra.mxu0 0.0
    %4839 = vmatpush.msra.mxu0 0.0
    %4840 = vmatpush.msra.mxu0 0.0
    %4841 = vmatpush.msra.mxu0 0.0
    %4842 = vmatpush.msra.mxu0 0.0
    %4843 = vmatpush.msra.mxu0 0.0
    %4844 = vmatpush.msra.mxu0 %v4782
    %4845 = vmatpush.msra.mxu0 %v4743
    %4846 = vmatmul.f32.gmra.mxu0 %v4828
    %v4847 = vpop.f32.mrf.mxu0
    %v4848 = vadd.f32 0.0, %v4847
    %4849 = vdwg.mxu0
    %4850 = vmatpush.msra.mxu0 0.0
    %4851 = vmatpush.msra.mxu0 0.0
    %4852 = vmatpush.msra.mxu0 0.0
    %4853 = vmatpush.msra.mxu0 0.0
    %4854 = vmatpush.msra.mxu0 0.0
    %4855 = vmatpush.msra.mxu0 0.0
    %4856 = vmatpush.msra.mxu0 0.0
    %4857 = vmatpush.msra.mxu0 0.0
    %4858 = vmatpush.msra.mxu0 0.0
    %4859 = vmatpush.msra.mxu0 0.0
    %4860 = vmatpush.msra.mxu0 0.0
    %4861 = vmatpush.msra.mxu0 0.0
    %4862 = vmatpush.msra.mxu0 0.0
    %4863 = vmatpush.msra.mxu0 0.0
    %4864 = vmatpush.msra.mxu0 %v4785
    %4865 = vmatpush.msra.mxu0 %v4744
    %4866 = vmatmul.f32.gmra.mxu0 %v4828
    %v4867 = vpop.f32.mrf.mxu0
    %v4868 = vadd.f32 0.0, %v4867
    %4869 = vdwg.mxu0
    %v4870 = vmax.f32 %v4805, %v4848
    %v4871 = vmax.f32 %v4825, %v4868
    %v4873 = vsel %vm2485, %v4749, 0
    %v4876 = vsel %vm2485, %v4750, 0
    %4878 = vmatpush.msra.mxu0 0.0
    %4879 = vmatpush.msra.mxu0 0.0
    %4880 = vmatpush.msra.mxu0 0.0
    %4881 = vmatpush.msra.mxu0 0.0
    %4882 = vmatpush.msra.mxu0 0.0
    %4883 = vmatpush.msra.mxu0 0.0
    %4884 = vmatpush.msra.mxu0 0.0
    %4885 = vmatpush.msra.mxu0 0.0
    %4886 = vmatpush.msra.mxu0 0.0
    %4887 = vmatpush.msra.mxu0 0.0
    %4888 = vmatpush.msra.mxu0 0.0
    %4889 = vmatpush.msra.mxu0 0.0
    %4890 = vmatpush.msra.mxu0 0.0
    %4891 = vmatpush.msra.mxu0 0.0
    %4892 = vmatpush.msra.mxu0 %v4873
    %4893 = vmatpush.msra.mxu0 %v4747
    %4894 = vmatmul.f32.gmra.mxu0 %v4779
    %v4895 = vpop.f32.mrf.mxu0
    %v4896 = vadd.f32 0.0, %v4895
    %4897 = vdwg.mxu0
    %4898 = vmatpush.msra.mxu0 0.0
    %4899 = vmatpush.msra.mxu0 0.0
    %4900 = vmatpush.msra.mxu0 0.0
    %4901 = vmatpush.msra.mxu0 0.0
    %4902 = vmatpush.msra.mxu0 0.0
    %4903 = vmatpush.msra.mxu0 0.0
    %4904 = vmatpush.msra.mxu0 0.0
    %4905 = vmatpush.msra.mxu0 0.0
    %4906 = vmatpush.msra.mxu0 0.0
    %4907 = vmatpush.msra.mxu0 0.0
    %4908 = vmatpush.msra.mxu0 0.0
    %4909 = vmatpush.msra.mxu0 0.0
    %4910 = vmatpush.msra.mxu0 0.0
    %4911 = vmatpush.msra.mxu0 0.0
    %4912 = vmatpush.msra.mxu0 %v4876
    %4913 = vmatpush.msra.mxu0 %v4748
    %4914 = vmatmul.f32.gmra.mxu0 %v4779
    %v4915 = vpop.f32.mrf.mxu0
    %v4916 = vadd.f32 0.0, %v4915
    %4917 = vdwg.mxu0
    %4918 = vmatpush.msra.mxu0 0.0
    %4919 = vmatpush.msra.mxu0 0.0
    %4920 = vmatpush.msra.mxu0 0.0
    %4921 = vmatpush.msra.mxu0 0.0
    %4922 = vmatpush.msra.mxu0 0.0
    %4923 = vmatpush.msra.mxu0 0.0
    %4924 = vmatpush.msra.mxu0 0.0
    %4925 = vmatpush.msra.mxu0 0.0
    %4926 = vmatpush.msra.mxu0 0.0
    %4927 = vmatpush.msra.mxu0 0.0
    %4928 = vmatpush.msra.mxu0 0.0
    %4929 = vmatpush.msra.mxu0 0.0
    %4930 = vmatpush.msra.mxu0 0.0
    %4931 = vmatpush.msra.mxu0 0.0
    %4932 = vmatpush.msra.mxu0 %v4873
    %4933 = vmatpush.msra.mxu0 %v4747
    %4934 = vmatmul.f32.gmra.mxu0 %v4828
    %v4935 = vpop.f32.mrf.mxu0
    %v4936 = vadd.f32 0.0, %v4935
    %4937 = vdwg.mxu0
    %4938 = vmatpush.msra.mxu0 0.0
    %4939 = vmatpush.msra.mxu0 0.0
    %4940 = vmatpush.msra.mxu0 0.0
    %4941 = vmatpush.msra.mxu0 0.0
    %4942 = vmatpush.msra.mxu0 0.0
    %4943 = vmatpush.msra.mxu0 0.0
    %4944 = vmatpush.msra.mxu0 0.0
    %4945 = vmatpush.msra.mxu0 0.0
    %4946 = vmatpush.msra.mxu0 0.0
    %4947 = vmatpush.msra.mxu0 0.0
    %4948 = vmatpush.msra.mxu0 0.0
    %4949 = vmatpush.msra.mxu0 0.0
    %4950 = vmatpush.msra.mxu0 0.0
    %4951 = vmatpush.msra.mxu0 0.0
    %4952 = vmatpush.msra.mxu0 %v4876
    %4953 = vmatpush.msra.mxu0 %v4748
    %4954 = vmatmul.f32.gmra.mxu0 %v4828
    %v4955 = vpop.f32.mrf.mxu0
    %v4956 = vadd.f32 0.0, %v4955
    %4957 = vdwg.mxu0
    %v4958 = vmax.f32 %v4896, %v4936
    %v4959 = vmax.f32 %v4916, %v4956
    %v4961 = vsel %vm2485, %v4753, 0
    %v4964 = vsel %vm2485, %v4754, 0
    %4966 = vmatpush.msra.mxu0 0.0
    %4967 = vmatpush.msra.mxu0 0.0
    %4968 = vmatpush.msra.mxu0 0.0
    %4969 = vmatpush.msra.mxu0 0.0
    %4970 = vmatpush.msra.mxu0 0.0
    %4971 = vmatpush.msra.mxu0 0.0
    %4972 = vmatpush.msra.mxu0 0.0
    %4973 = vmatpush.msra.mxu0 0.0
    %4974 = vmatpush.msra.mxu0 0.0
    %4975 = vmatpush.msra.mxu0 0.0
    %4976 = vmatpush.msra.mxu0 0.0
    %4977 = vmatpush.msra.mxu0 0.0
    %4978 = vmatpush.msra.mxu0 0.0
    %4979 = vmatpush.msra.mxu0 0.0
    %4980 = vmatpush.msra.mxu0 %v4961
    %4981 = vmatpush.msra.mxu0 %v4751
    %4982 = vmatmul.f32.gmra.mxu0 %v4779
    %v4983 = vpop.f32.mrf.mxu0
    %v4984 = vadd.f32 0.0, %v4983
    %4985 = vdwg.mxu0
    %4986 = vmatpush.msra.mxu0 0.0
    %4987 = vmatpush.msra.mxu0 0.0
    %4988 = vmatpush.msra.mxu0 0.0
    %4989 = vmatpush.msra.mxu0 0.0
    %4990 = vmatpush.msra.mxu0 0.0
    %4991 = vmatpush.msra.mxu0 0.0
    %4992 = vmatpush.msra.mxu0 0.0
    %4993 = vmatpush.msra.mxu0 0.0
    %4994 = vmatpush.msra.mxu0 0.0
    %4995 = vmatpush.msra.mxu0 0.0
    %4996 = vmatpush.msra.mxu0 0.0
    %4997 = vmatpush.msra.mxu0 0.0
    %4998 = vmatpush.msra.mxu0 0.0
    %4999 = vmatpush.msra.mxu0 0.0
    %5000 = vmatpush.msra.mxu0 %v4964
    %5001 = vmatpush.msra.mxu0 %v4752
    %5002 = vmatmul.f32.gmra.mxu0 %v4779
    %v5003 = vpop.f32.mrf.mxu0
    %v5004 = vadd.f32 0.0, %v5003
    %5005 = vdwg.mxu0
    %5006 = vmatpush.msra.mxu0 0.0
    %5007 = vmatpush.msra.mxu0 0.0
    %5008 = vmatpush.msra.mxu0 0.0
    %5009 = vmatpush.msra.mxu0 0.0
    %5010 = vmatpush.msra.mxu0 0.0
    %5011 = vmatpush.msra.mxu0 0.0
    %5012 = vmatpush.msra.mxu0 0.0
    %5013 = vmatpush.msra.mxu0 0.0
    %5014 = vmatpush.msra.mxu0 0.0
    %5015 = vmatpush.msra.mxu0 0.0
    %5016 = vmatpush.msra.mxu0 0.0
    %5017 = vmatpush.msra.mxu0 0.0
    %5018 = vmatpush.msra.mxu0 0.0
    %5019 = vmatpush.msra.mxu0 0.0
    %5020 = vmatpush.msra.mxu0 %v4961
    %5021 = vmatpush.msra.mxu0 %v4751
    %5022 = vmatmul.f32.gmra.mxu0 %v4828
    %v5023 = vpop.f32.mrf.mxu0
    %v5024 = vadd.f32 0.0, %v5023
    %5025 = vdwg.mxu0
    %5026 = vmatpush.msra.mxu0 0.0
    %5027 = vmatpush.msra.mxu0 0.0
    %5028 = vmatpush.msra.mxu0 0.0
    %5029 = vmatpush.msra.mxu0 0.0
    %5030 = vmatpush.msra.mxu0 0.0
    %5031 = vmatpush.msra.mxu0 0.0
    %5032 = vmatpush.msra.mxu0 0.0
    %5033 = vmatpush.msra.mxu0 0.0
    %5034 = vmatpush.msra.mxu0 0.0
    %5035 = vmatpush.msra.mxu0 0.0
    %5036 = vmatpush.msra.mxu0 0.0
    %5037 = vmatpush.msra.mxu0 0.0
    %5038 = vmatpush.msra.mxu0 0.0
    %5039 = vmatpush.msra.mxu0 0.0
    %5040 = vmatpush.msra.mxu0 %v4964
    %5041 = vmatpush.msra.mxu0 %v4752
    %5042 = vmatmul.f32.gmra.mxu0 %v4828
    %v5043 = vpop.f32.mrf.mxu0
    %v5044 = vadd.f32 0.0, %v5043
    %5045 = vdwg.mxu0
    %v5046 = vmax.f32 %v4984, %v5024
    %v5047 = vmax.f32 %v5004, %v5044
    %v5049 = vsel %vm2485, %v4757, 0
    %v5052 = vsel %vm2485, %v4758, 0
    %5054 = vmatpush.msra.mxu0 0.0
    %5055 = vmatpush.msra.mxu0 0.0
    %5056 = vmatpush.msra.mxu0 0.0
    %5057 = vmatpush.msra.mxu0 0.0
    %5058 = vmatpush.msra.mxu0 0.0
    %5059 = vmatpush.msra.mxu0 0.0
    %5060 = vmatpush.msra.mxu0 0.0
    %5061 = vmatpush.msra.mxu0 0.0
    %5062 = vmatpush.msra.mxu0 0.0
    %5063 = vmatpush.msra.mxu0 0.0
    %5064 = vmatpush.msra.mxu0 0.0
    %5065 = vmatpush.msra.mxu0 0.0
    %5066 = vmatpush.msra.mxu0 0.0
    %5067 = vmatpush.msra.mxu0 0.0
    %5068 = vmatpush.msra.mxu0 %v5049
    %5069 = vmatpush.msra.mxu0 %v4755
    %5070 = vmatmul.f32.gmra.mxu0 %v4779
    %v5071 = vpop.f32.mrf.mxu0
    %v5072 = vadd.f32 0.0, %v5071
    %5073 = vdwg.mxu0
    %5074 = vmatpush.msra.mxu0 0.0
    %5075 = vmatpush.msra.mxu0 0.0
    %5076 = vmatpush.msra.mxu0 0.0
    %5077 = vmatpush.msra.mxu0 0.0
    %5078 = vmatpush.msra.mxu0 0.0
    %5079 = vmatpush.msra.mxu0 0.0
    %5080 = vmatpush.msra.mxu0 0.0
    %5081 = vmatpush.msra.mxu0 0.0
    %5082 = vmatpush.msra.mxu0 0.0
    %5083 = vmatpush.msra.mxu0 0.0
    %5084 = vmatpush.msra.mxu0 0.0
    %5085 = vmatpush.msra.mxu0 0.0
    %5086 = vmatpush.msra.mxu0 0.0
    %5087 = vmatpush.msra.mxu0 0.0
    %5088 = vmatpush.msra.mxu0 %v5052
    %5089 = vmatpush.msra.mxu0 %v4756
    %5090 = vmatmul.f32.gmra.mxu0 %v4779
    %v5091 = vpop.f32.mrf.mxu0
    %v5092 = vadd.f32 0.0, %v5091
    %5093 = vdwg.mxu0
    %5094 = vmatpush.msra.mxu0 0.0
    %5095 = vmatpush.msra.mxu0 0.0
    %5096 = vmatpush.msra.mxu0 0.0
    %5097 = vmatpush.msra.mxu0 0.0
    %5098 = vmatpush.msra.mxu0 0.0
    %5099 = vmatpush.msra.mxu0 0.0
    %5100 = vmatpush.msra.mxu0 0.0
    %5101 = vmatpush.msra.mxu0 0.0
    %5102 = vmatpush.msra.mxu0 0.0
    %5103 = vmatpush.msra.mxu0 0.0
    %5104 = vmatpush.msra.mxu0 0.0
    %5105 = vmatpush.msra.mxu0 0.0
    %5106 = vmatpush.msra.mxu0 0.0
    %5107 = vmatpush.msra.mxu0 0.0
    %5108 = vmatpush.msra.mxu0 %v5049
    %5109 = vmatpush.msra.mxu0 %v4755
    %5110 = vmatmul.f32.gmra.mxu0 %v4828
    %v5111 = vpop.f32.mrf.mxu0
    %v5112 = vadd.f32 0.0, %v5111
    %5113 = vdwg.mxu0
    %5114 = vmatpush.msra.mxu0 0.0
    %5115 = vmatpush.msra.mxu0 0.0
    %5116 = vmatpush.msra.mxu0 0.0
    %5117 = vmatpush.msra.mxu0 0.0
    %5118 = vmatpush.msra.mxu0 0.0
    %5119 = vmatpush.msra.mxu0 0.0
    %5120 = vmatpush.msra.mxu0 0.0
    %5121 = vmatpush.msra.mxu0 0.0
    %5122 = vmatpush.msra.mxu0 0.0
    %5123 = vmatpush.msra.mxu0 0.0
    %5124 = vmatpush.msra.mxu0 0.0
    %5125 = vmatpush.msra.mxu0 0.0
    %5126 = vmatpush.msra.mxu0 0.0
    %5127 = vmatpush.msra.mxu0 0.0
    %5128 = vmatpush.msra.mxu0 %v5052
    %5129 = vmatpush.msra.mxu0 %v4756
    %5130 = vmatmul.f32.gmra.mxu0 %v4828
    %v5131 = vpop.f32.mrf.mxu0
    %v5132 = vadd.f32 0.0, %v5131
    %5133 = vdwg.mxu0
    %v5134 = vmax.f32 %v5072, %v5112
    %v5135 = vmax.f32 %v5092, %v5132
    %v5137 = vsel %vm2485, %v4761, 0
    %v5140 = vsel %vm2485, %v4762, 0
    %5142 = vmatpush.msra.mxu0 0.0
    %5143 = vmatpush.msra.mxu0 0.0
    %5144 = vmatpush.msra.mxu0 0.0
    %5145 = vmatpush.msra.mxu0 0.0
    %5146 = vmatpush.msra.mxu0 0.0
    %5147 = vmatpush.msra.mxu0 0.0
    %5148 = vmatpush.msra.mxu0 0.0
    %5149 = vmatpush.msra.mxu0 0.0
    %5150 = vmatpush.msra.mxu0 0.0
    %5151 = vmatpush.msra.mxu0 0.0
    %5152 = vmatpush.msra.mxu0 0.0
    %5153 = vmatpush.msra.mxu0 0.0
    %5154 = vmatpush.msra.mxu0 0.0
    %5155 = vmatpush.msra.mxu0 0.0
    %5156 = vmatpush.msra.mxu0 %v5137
    %5157 = vmatpush.msra.mxu0 %v4759
    %5158 = vmatmul.f32.gmra.mxu0 %v4779
    %v5159 = vpop.f32.mrf.mxu0
    %v5160 = vadd.f32 0.0, %v5159
    %5161 = vdwg.mxu0
    %5162 = vmatpush.msra.mxu0 0.0
    %5163 = vmatpush.msra.mxu0 0.0
    %5164 = vmatpush.msra.mxu0 0.0
    %5165 = vmatpush.msra.mxu0 0.0
    %5166 = vmatpush.msra.mxu0 0.0
    %5167 = vmatpush.msra.mxu0 0.0
    %5168 = vmatpush.msra.mxu0 0.0
    %5169 = vmatpush.msra.mxu0 0.0
    %5170 = vmatpush.msra.mxu0 0.0
    %5171 = vmatpush.msra.mxu0 0.0
    %5172 = vmatpush.msra.mxu0 0.0
    %5173 = vmatpush.msra.mxu0 0.0
    %5174 = vmatpush.msra.mxu0 0.0
    %5175 = vmatpush.msra.mxu0 0.0
    %5176 = vmatpush.msra.mxu0 %v5140
    %5177 = vmatpush.msra.mxu0 %v4760
    %5178 = vmatmul.f32.gmra.mxu0 %v4779
    %v5179 = vpop.f32.mrf.mxu0
    %v5180 = vadd.f32 0.0, %v5179
    %5181 = vdwg.mxu0
    %5182 = vmatpush.msra.mxu0 0.0
    %5183 = vmatpush.msra.mxu0 0.0
    %5184 = vmatpush.msra.mxu0 0.0
    %5185 = vmatpush.msra.mxu0 0.0
    %5186 = vmatpush.msra.mxu0 0.0
    %5187 = vmatpush.msra.mxu0 0.0
    %5188 = vmatpush.msra.mxu0 0.0
    %5189 = vmatpush.msra.mxu0 0.0
    %5190 = vmatpush.msra.mxu0 0.0
    %5191 = vmatpush.msra.mxu0 0.0
    %5192 = vmatpush.msra.mxu0 0.0
    %5193 = vmatpush.msra.mxu0 0.0
    %5194 = vmatpush.msra.mxu0 0.0
    %5195 = vmatpush.msra.mxu0 0.0
    %5196 = vmatpush.msra.mxu0 %v5137
    %5197 = vmatpush.msra.mxu0 %v4759
    %5198 = vmatmul.f32.gmra.mxu0 %v4828
    %v5199 = vpop.f32.mrf.mxu0
    %v5200 = vadd.f32 0.0, %v5199
    %5201 = vdwg.mxu0
    %5202 = vmatpush.msra.mxu0 0.0
    %5203 = vmatpush.msra.mxu0 0.0
    %5204 = vmatpush.msra.mxu0 0.0
    %5205 = vmatpush.msra.mxu0 0.0
    %5206 = vmatpush.msra.mxu0 0.0
    %5207 = vmatpush.msra.mxu0 0.0
    %5208 = vmatpush.msra.mxu0 0.0
    %5209 = vmatpush.msra.mxu0 0.0
    %5210 = vmatpush.msra.mxu0 0.0
    %5211 = vmatpush.msra.mxu0 0.0
    %5212 = vmatpush.msra.mxu0 0.0
    %5213 = vmatpush.msra.mxu0 0.0
    %5214 = vmatpush.msra.mxu0 0.0
    %5215 = vmatpush.msra.mxu0 0.0
    %5216 = vmatpush.msra.mxu0 %v5140
    %5217 = vmatpush.msra.mxu0 %v4760
    %5218 = vmatmul.f32.gmra.mxu0 %v4828
    %v5219 = vpop.f32.mrf.mxu0
    %v5220 = vadd.f32 0.0, %v5219
    %5221 = vdwg.mxu0
    %v5222 = vmax.f32 %v5160, %v5200
    %v5223 = vmax.f32 %v5180, %v5220
    %v5225 = vsel %vm2485, %v4765, 0
    %v5228 = vsel %vm2485, %v4766, 0
    %5230 = vmatpush.msra.mxu0 0.0
    %5231 = vmatpush.msra.mxu0 0.0
    %5232 = vmatpush.msra.mxu0 0.0
    %5233 = vmatpush.msra.mxu0 0.0
    %5234 = vmatpush.msra.mxu0 0.0
    %5235 = vmatpush.msra.mxu0 0.0
    %5236 = vmatpush.msra.mxu0 0.0
    %5237 = vmatpush.msra.mxu0 0.0
    %5238 = vmatpush.msra.mxu0 0.0
    %5239 = vmatpush.msra.mxu0 0.0
    %5240 = vmatpush.msra.mxu0 0.0
    %5241 = vmatpush.msra.mxu0 0.0
    %5242 = vmatpush.msra.mxu0 0.0
    %5243 = vmatpush.msra.mxu0 0.0
    %5244 = vmatpush.msra.mxu0 %v5225
    %5245 = vmatpush.msra.mxu0 %v4763
    %5246 = vmatmul.f32.gmra.mxu0 %v4779
    %v5247 = vpop.f32.mrf.mxu0
    %v5248 = vadd.f32 0.0, %v5247
    %5249 = vdwg.mxu0
    %5250 = vmatpush.msra.mxu0 0.0
    %5251 = vmatpush.msra.mxu0 0.0
    %5252 = vmatpush.msra.mxu0 0.0
    %5253 = vmatpush.msra.mxu0 0.0
    %5254 = vmatpush.msra.mxu0 0.0
    %5255 = vmatpush.msra.mxu0 0.0
    %5256 = vmatpush.msra.mxu0 0.0
    %5257 = vmatpush.msra.mxu0 0.0
    %5258 = vmatpush.msra.mxu0 0.0
    %5259 = vmatpush.msra.mxu0 0.0
    %5260 = vmatpush.msra.mxu0 0.0
    %5261 = vmatpush.msra.mxu0 0.0
    %5262 = vmatpush.msra.mxu0 0.0
    %5263 = vmatpush.msra.mxu0 0.0
    %5264 = vmatpush.msra.mxu0 %v5228
    %5265 = vmatpush.msra.mxu0 %v4764
    %5266 = vmatmul.f32.gmra.mxu0 %v4779
    %v5267 = vpop.f32.mrf.mxu0
    %v5268 = vadd.f32 0.0, %v5267
    %5269 = vdwg.mxu0
    %5270 = vmatpush.msra.mxu0 0.0
    %5271 = vmatpush.msra.mxu0 0.0
    %5272 = vmatpush.msra.mxu0 0.0
    %5273 = vmatpush.msra.mxu0 0.0
    %5274 = vmatpush.msra.mxu0 0.0
    %5275 = vmatpush.msra.mxu0 0.0
    %5276 = vmatpush.msra.mxu0 0.0
    %5277 = vmatpush.msra.mxu0 0.0
    %5278 = vmatpush.msra.mxu0 0.0
    %5279 = vmatpush.msra.mxu0 0.0
    %5280 = vmatpush.msra.mxu0 0.0
    %5281 = vmatpush.msra.mxu0 0.0
    %5282 = vmatpush.msra.mxu0 0.0
    %5283 = vmatpush.msra.mxu0 0.0
    %5284 = vmatpush.msra.mxu0 %v5225
    %5285 = vmatpush.msra.mxu0 %v4763
    %5286 = vmatmul.f32.gmra.mxu0 %v4828
    %v5287 = vpop.f32.mrf.mxu0
    %v5288 = vadd.f32 0.0, %v5287
    %5289 = vdwg.mxu0
    %5290 = vmatpush.msra.mxu0 0.0
    %5291 = vmatpush.msra.mxu0 0.0
    %5292 = vmatpush.msra.mxu0 0.0
    %5293 = vmatpush.msra.mxu0 0.0
    %5294 = vmatpush.msra.mxu0 0.0
    %5295 = vmatpush.msra.mxu0 0.0
    %5296 = vmatpush.msra.mxu0 0.0
    %5297 = vmatpush.msra.mxu0 0.0
    %5298 = vmatpush.msra.mxu0 0.0
    %5299 = vmatpush.msra.mxu0 0.0
    %5300 = vmatpush.msra.mxu0 0.0
    %5301 = vmatpush.msra.mxu0 0.0
    %5302 = vmatpush.msra.mxu0 0.0
    %5303 = vmatpush.msra.mxu0 0.0
    %5304 = vmatpush.msra.mxu0 %v5228
    %5305 = vmatpush.msra.mxu0 %v4764
    %5306 = vmatmul.f32.gmra.mxu0 %v4828
    %v5307 = vpop.f32.mrf.mxu0
    %v5308 = vadd.f32 0.0, %v5307
    %5309 = vdwg.mxu0
    %v5310 = vmax.f32 %v5248, %v5288
    %v5311 = vmax.f32 %v5268, %v5308
    %v5313 = vsel %vm2485, %v4769, 0
    %v5316 = vsel %vm2485, %v4770, 0
    %5318 = vmatpush.msra.mxu0 0.0
    %5319 = vmatpush.msra.mxu0 0.0
    %5320 = vmatpush.msra.mxu0 0.0
    %5321 = vmatpush.msra.mxu0 0.0
    %5322 = vmatpush.msra.mxu0 0.0
    %5323 = vmatpush.msra.mxu0 0.0
    %5324 = vmatpush.msra.mxu0 0.0
    %5325 = vmatpush.msra.mxu0 0.0
    %5326 = vmatpush.msra.mxu0 0.0
    %5327 = vmatpush.msra.mxu0 0.0
    %5328 = vmatpush.msra.mxu0 0.0
    %5329 = vmatpush.msra.mxu0 0.0
    %5330 = vmatpush.msra.mxu0 0.0
    %5331 = vmatpush.msra.mxu0 0.0
    %5332 = vmatpush.msra.mxu0 %v5313
    %5333 = vmatpush.msra.mxu0 %v4767
    %5334 = vmatmul.f32.gmra.mxu0 %v4779
    %v5335 = vpop.f32.mrf.mxu0
    %v5336 = vadd.f32 0.0, %v5335
    %5337 = vdwg.mxu0
    %5338 = vmatpush.msra.mxu0 0.0
    %5339 = vmatpush.msra.mxu0 0.0
    %5340 = vmatpush.msra.mxu0 0.0
    %5341 = vmatpush.msra.mxu0 0.0
    %5342 = vmatpush.msra.mxu0 0.0
    %5343 = vmatpush.msra.mxu0 0.0
    %5344 = vmatpush.msra.mxu0 0.0
    %5345 = vmatpush.msra.mxu0 0.0
    %5346 = vmatpush.msra.mxu0 0.0
    %5347 = vmatpush.msra.mxu0 0.0
    %5348 = vmatpush.msra.mxu0 0.0
    %5349 = vmatpush.msra.mxu0 0.0
    %5350 = vmatpush.msra.mxu0 0.0
    %5351 = vmatpush.msra.mxu0 0.0
    %5352 = vmatpush.msra.mxu0 %v5316
    %5353 = vmatpush.msra.mxu0 %v4768
    %5354 = vmatmul.f32.gmra.mxu0 %v4779
    %v5355 = vpop.f32.mrf.mxu0
    %v5356 = vadd.f32 0.0, %v5355
    %5357 = vdwg.mxu0
    %5358 = vmatpush.msra.mxu0 0.0
    %5359 = vmatpush.msra.mxu0 0.0
    %5360 = vmatpush.msra.mxu0 0.0
    %5361 = vmatpush.msra.mxu0 0.0
    %5362 = vmatpush.msra.mxu0 0.0
    %5363 = vmatpush.msra.mxu0 0.0
    %5364 = vmatpush.msra.mxu0 0.0
    %5365 = vmatpush.msra.mxu0 0.0
    %5366 = vmatpush.msra.mxu0 0.0
    %5367 = vmatpush.msra.mxu0 0.0
    %5368 = vmatpush.msra.mxu0 0.0
    %5369 = vmatpush.msra.mxu0 0.0
    %5370 = vmatpush.msra.mxu0 0.0
    %5371 = vmatpush.msra.mxu0 0.0
    %5372 = vmatpush.msra.mxu0 %v5313
    %5373 = vmatpush.msra.mxu0 %v4767
    %5374 = vmatmul.f32.gmra.mxu0 %v4828
    %v5375 = vpop.f32.mrf.mxu0
    %v5376 = vadd.f32 0.0, %v5375
    %5377 = vdwg.mxu0
    %5378 = vmatpush.msra.mxu0 0.0
    %5379 = vmatpush.msra.mxu0 0.0
    %5380 = vmatpush.msra.mxu0 0.0
    %5381 = vmatpush.msra.mxu0 0.0
    %5382 = vmatpush.msra.mxu0 0.0
    %5383 = vmatpush.msra.mxu0 0.0
    %5384 = vmatpush.msra.mxu0 0.0
    %5385 = vmatpush.msra.mxu0 0.0
    %5386 = vmatpush.msra.mxu0 0.0
    %5387 = vmatpush.msra.mxu0 0.0
    %5388 = vmatpush.msra.mxu0 0.0
    %5389 = vmatpush.msra.mxu0 0.0
    %5390 = vmatpush.msra.mxu0 0.0
    %5391 = vmatpush.msra.mxu0 0.0
    %5392 = vmatpush.msra.mxu0 %v5316
    %5393 = vmatpush.msra.mxu0 %v4768
    %5394 = vmatmul.f32.gmra.mxu0 %v4828
    %v5395 = vpop.f32.mrf.mxu0
    %v5396 = vadd.f32 0.0, %v5395
    %5397 = vdwg.mxu0
    %v5398 = vmax.f32 %v5336, %v5376
    %v5399 = vmax.f32 %v5356, %v5396
    %v5401 = vsel %vm2485, %v4773, 0
    %v5404 = vsel %vm2485, %v4774, 0
    %5406 = vmatpush.msra.mxu0 0.0
    %5407 = vmatpush.msra.mxu0 0.0
    %5408 = vmatpush.msra.mxu0 0.0
    %5409 = vmatpush.msra.mxu0 0.0
    %5410 = vmatpush.msra.mxu0 0.0
    %5411 = vmatpush.msra.mxu0 0.0
    %5412 = vmatpush.msra.mxu0 0.0
    %5413 = vmatpush.msra.mxu0 0.0
    %5414 = vmatpush.msra.mxu0 0.0
    %5415 = vmatpush.msra.mxu0 0.0
    %5416 = vmatpush.msra.mxu0 0.0
    %5417 = vmatpush.msra.mxu0 0.0
    %5418 = vmatpush.msra.mxu0 0.0
    %5419 = vmatpush.msra.mxu0 0.0
    %5420 = vmatpush.msra.mxu0 %v5401
    %5421 = vmatpush.msra.mxu0 %v4771
    %5422 = vmatmul.f32.gmra.mxu0 %v4779
    %v5423 = vpop.f32.mrf.mxu0
    %v5424 = vadd.f32 0.0, %v5423
    %5425 = vdwg.mxu0
    %5426 = vmatpush.msra.mxu0 0.0
    %5427 = vmatpush.msra.mxu0 0.0
    %5428 = vmatpush.msra.mxu0 0.0
    %5429 = vmatpush.msra.mxu0 0.0
    %5430 = vmatpush.msra.mxu0 0.0
    %5431 = vmatpush.msra.mxu0 0.0
    %5432 = vmatpush.msra.mxu0 0.0
    %5433 = vmatpush.msra.mxu0 0.0
    %5434 = vmatpush.msra.mxu0 0.0
    %5435 = vmatpush.msra.mxu0 0.0
    %5436 = vmatpush.msra.mxu0 0.0
    %5437 = vmatpush.msra.mxu0 0.0
    %5438 = vmatpush.msra.mxu0 0.0
    %5439 = vmatpush.msra.mxu0 0.0
    %5440 = vmatpush.msra.mxu0 %v5404
    %5441 = vmatpush.msra.mxu0 %v4772
    %5442 = vmatmul.f32.gmra.mxu0 %v4779
    %v5443 = vpop.f32.mrf.mxu0
    %v5444 = vadd.f32 0.0, %v5443
    %5445 = vdwg.mxu0
    %5446 = vmatpush.msra.mxu0 0.0
    %5447 = vmatpush.msra.mxu0 0.0
    %5448 = vmatpush.msra.mxu0 0.0
    %5449 = vmatpush.msra.mxu0 0.0
    %5450 = vmatpush.msra.mxu0 0.0
    %5451 = vmatpush.msra.mxu0 0.0
    %5452 = vmatpush.msra.mxu0 0.0
    %5453 = vmatpush.msra.mxu0 0.0
    %5454 = vmatpush.msra.mxu0 0.0
    %5455 = vmatpush.msra.mxu0 0.0
    %5456 = vmatpush.msra.mxu0 0.0
    %5457 = vmatpush.msra.mxu0 0.0
    %5458 = vmatpush.msra.mxu0 0.0
    %5459 = vmatpush.msra.mxu0 0.0
    %5460 = vmatpush.msra.mxu0 %v5401
    %5461 = vmatpush.msra.mxu0 %v4771
    %5462 = vmatmul.f32.gmra.mxu0 %v4828
    %v5463 = vpop.f32.mrf.mxu0
    %v5464 = vadd.f32 0.0, %v5463
    %5465 = vdwg.mxu0
    %5466 = vmatpush.msra.mxu0 0.0
    %5467 = vmatpush.msra.mxu0 0.0
    %5468 = vmatpush.msra.mxu0 0.0
    %5469 = vmatpush.msra.mxu0 0.0
    %5470 = vmatpush.msra.mxu0 0.0
    %5471 = vmatpush.msra.mxu0 0.0
    %5472 = vmatpush.msra.mxu0 0.0
    %5473 = vmatpush.msra.mxu0 0.0
    %5474 = vmatpush.msra.mxu0 0.0
    %5475 = vmatpush.msra.mxu0 0.0
    %5476 = vmatpush.msra.mxu0 0.0
    %5477 = vmatpush.msra.mxu0 0.0
    %5478 = vmatpush.msra.mxu0 0.0
    %5479 = vmatpush.msra.mxu0 0.0
    %5480 = vmatpush.msra.mxu0 %v5404
    %5481 = vmatpush.msra.mxu0 %v4772
    %5482 = vmatmul.f32.gmra.mxu0 %v4828
    %v5483 = vpop.f32.mrf.mxu0
    %v5484 = vadd.f32 0.0, %v5483
    %5485 = vdwg.mxu0
    %v5486 = vmax.f32 %v5424, %v5464
    %v5487 = vmax.f32 %v5444, %v5484
    %v5488 = vld [vmem:[#allocation12] sm:$0xff]
    %v5489 = vld [vmem:[#allocation12 + $0x8] sm:$0xff]
    %v5490 = vld [vmem:[#allocation12 + $0x10] sm:$0xff]
    %v5491 = vld [vmem:[#allocation12 + $0x18] sm:$0xff]
    %v5492 = vld [vmem:[#allocation12 + $0x20] sm:$0xff]
    %v5493 = vld [vmem:[#allocation12 + $0x28] sm:$0xff]
    %v5494 = vld [vmem:[#allocation12 + $0x30] sm:$0xff]
    %v5495 = vld [vmem:[#allocation12 + $0x38] sm:$0xff]
    %v5496 = vld [vmem:[#allocation12 + $0x40] sm:$0xff]
    %v5497 = vld [vmem:[#allocation12 + $0x48] sm:$0xff]
    %v5498 = vld [vmem:[#allocation12 + $0x50] sm:$0xff]
    %v5499 = vld [vmem:[#allocation12 + $0x58] sm:$0xff]
    %v5500 = vld [vmem:[#allocation12 + $0x60] sm:$0xff]
    %v5501 = vld [vmem:[#allocation12 + $0x68] sm:$0xff]
    %v5502 = vld [vmem:[#allocation12 + $0x70] sm:$0xff]
    %v5503 = vld [vmem:[#allocation12 + $0x78] sm:$0xff]
    %v5504 = vld [vmem:[#allocation12 + $0x80] sm:$0xff]
    %v5505 = vld [vmem:[#allocation12 + $0x88] sm:$0xff]
    %v5506 = vld [vmem:[#allocation12 + $0x90] sm:$0xff]
    %v5507 = vld [vmem:[#allocation12 + $0x98] sm:$0xff]
    %v5508 = vld [vmem:[#allocation12 + $0xa0] sm:$0xff]
    %v5509 = vld [vmem:[#allocation12 + $0xa8] sm:$0xff]
    %v5510 = vld [vmem:[#allocation12 + $0xb0] sm:$0xff]
    %v5511 = vld [vmem:[#allocation12 + $0xb8] sm:$0xff]
    %vm5512 = vcmask 523264
    %v5514 = vsel %vm5512, %v4871, 0
    %v5517 = vsel %vm5512, %v4959, 0
    %v5520 = vsel %vm5512, %v5047, 0
    %v5523 = vsel %vm5512, %v5135, 0
    %v5526 = vsel %vm5512, %v5223, 0
    %v5529 = vsel %vm5512, %v5311, 0
    %v5532 = vsel %vm5512, %v5399, 0
    %v5535 = vsel %vm5512, %v5487, 0
    %5537 = vmatpush.msra.mxu0 %v5503
    %5538 = vmatpush.msra.mxu0 %v5502
    %5539 = vmatpush.msra.mxu0 %v5501
    %5540 = vmatpush.msra.mxu0 %v5500
    %5541 = vmatpush.msra.mxu0 %v5499
    %5542 = vmatpush.msra.mxu0 %v5498
    %5543 = vmatpush.msra.mxu0 %v5497
    %5544 = vmatpush.msra.mxu0 %v5496
    %5545 = vmatpush.msra.mxu0 %v5495
    %5546 = vmatpush.msra.mxu0 %v5494
    %5547 = vmatpush.msra.mxu0 %v5493
    %5548 = vmatpush.msra.mxu0 %v5492
    %5549 = vmatpush.msra.mxu0 %v5491
    %5550 = vmatpush.msra.mxu0 %v5490
    %5551 = vmatpush.msra.mxu0 %v5489
    %5552 = vmatpush.msra.mxu0 %v5488
    %5553 = vmatmul.f32.gmra.mxu0 %v4870
    %v5554 = vpop.f32.mrf.mxu0
    %v5555 = vadd.f32 0.0, %v5554
    %5556 = vmatmul.f32.gmra.mxu0 %v4958
    %v5557 = vpop.f32.mrf.mxu0
    %v5558 = vadd.f32 0.0, %v5557
    %5559 = vmatmul.f32.gmra.mxu0 %v5046
    %v5560 = vpop.f32.mrf.mxu0
    %v5561 = vadd.f32 0.0, %v5560
    %5562 = vmatmul.f32.gmra.mxu0 %v5134
    %v5563 = vpop.f32.mrf.mxu0
    %v5564 = vadd.f32 0.0, %v5563
    %5565 = vmatmul.f32.gmra.mxu0 %v5222
    %v5566 = vpop.f32.mrf.mxu0
    %v5567 = vadd.f32 0.0, %v5566
    %5568 = vmatmul.f32.gmra.mxu0 %v5310
    %v5569 = vpop.f32.mrf.mxu0
    %v5570 = vadd.f32 0.0, %v5569
    %5571 = vmatmul.f32.gmra.mxu0 %v5398
    %v5572 = vpop.f32.mrf.mxu0
    %v5573 = vadd.f32 0.0, %v5572
    %5574 = vmatmul.f32.gmra.mxu0 %v5486
    %v5575 = vpop.f32.mrf.mxu0
    %v5576 = vadd.f32 0.0, %v5575
    %5577 = vdwg.mxu0
    %5578 = vmatpush.msra.mxu0 0.0
    %5579 = vmatpush.msra.mxu0 0.0
    %5580 = vmatpush.msra.mxu0 0.0
    %5581 = vmatpush.msra.mxu0 0.0
    %5582 = vmatpush.msra.mxu0 0.0
    %5583 = vmatpush.msra.mxu0 0.0
    %5584 = vmatpush.msra.mxu0 0.0
    %5585 = vmatpush.msra.mxu0 0.0
    %5586 = vmatpush.msra.mxu0 %v5511
    %5587 = vmatpush.msra.mxu0 %v5510
    %5588 = vmatpush.msra.mxu0 %v5509
    %5589 = vmatpush.msra.mxu0 %v5508
    %5590 = vmatpush.msra.mxu0 %v5507
    %5591 = vmatpush.msra.mxu0 %v5506
    %5592 = vmatpush.msra.mxu0 %v5505
    %5593 = vmatpush.msra.mxu0 %v5504
    %5594 = vmatmul.f32.gmra.mxu0 %v5514
    %v5595 = vpop.f32.mrf.mxu0
    %v5596 = vadd.f32 %v5555, %v5595
    %5597 = vmatmul.f32.gmra.mxu0 %v5517
    %v5598 = vpop.f32.mrf.mxu0
    %v5599 = vadd.f32 %v5558, %v5598
    %5600 = vmatmul.f32.gmra.mxu0 %v5520
    %v5601 = vpop.f32.mrf.mxu0
    %v5602 = vadd.f32 %v5561, %v5601
    %5603 = vmatmul.f32.gmra.mxu0 %v5523
    %v5604 = vpop.f32.mrf.mxu0
    %v5605 = vadd.f32 %v5564, %v5604
    %5606 = vmatmul.f32.gmra.mxu0 %v5526
    %v5607 = vpop.f32.mrf.mxu0
    %v5608 = vadd.f32 %v5567, %v5607
    %5609 = vmatmul.f32.gmra.mxu0 %v5529
    %v5610 = vpop.f32.mrf.mxu0
    %v5611 = vadd.f32 %v5570, %v5610
    %5612 = vmatmul.f32.gmra.mxu0 %v5532
    %v5613 = vpop.f32.mrf.mxu0
    %v5614 = vadd.f32 %v5573, %v5613
    %5615 = vmatmul.f32.gmra.mxu0 %v5535
    %v5616 = vpop.f32.mrf.mxu0
    %v5617 = vadd.f32 %v5576, %v5616
    %5618 = vdwg.mxu0
    %v5619 = vld [vmem:[#allocation13] sm:$0xff]
    %v5620 = vld [vmem:[#allocation13 + $0x8] sm:$0xff]
    %v5621 = vld [vmem:[#allocation13 + $0x10] sm:$0xff]
    %v5622 = vld [vmem:[#allocation13 + $0x18] sm:$0xff]
    %v5623 = vld [vmem:[#allocation13 + $0x20] sm:$0xff]
    %v5624 = vld [vmem:[#allocation13 + $0x28] sm:$0xff]
    %v5625 = vld [vmem:[#allocation13 + $0x30] sm:$0xff]
    %v5626 = vld [vmem:[#allocation13 + $0x38] sm:$0xff]
    %v5627 = vld [vmem:[#allocation13 + $0x40] sm:$0xff]
    %v5628 = vld [vmem:[#allocation13 + $0x48] sm:$0xff]
    %v5629 = vld [vmem:[#allocation13 + $0x50] sm:$0xff]
    %v5630 = vld [vmem:[#allocation13 + $0x58] sm:$0xff]
    %v5631 = vld [vmem:[#allocation13 + $0x60] sm:$0xff]
    %v5632 = vld [vmem:[#allocation13 + $0x68] sm:$0xff]
    %v5633 = vld [vmem:[#allocation13 + $0x70] sm:$0xff]
    %v5634 = vld [vmem:[#allocation13 + $0x78] sm:$0xff]
    %v5635 = vld [vmem:[#allocation13 + $0x80] sm:$0xff]
    %v5636 = vld [vmem:[#allocation13 + $0x88] sm:$0xff]
    %v5637 = vld [vmem:[#allocation13 + $0x90] sm:$0xff]
    %v5638 = vld [vmem:[#allocation13 + $0x98] sm:$0xff]
    %v5639 = vld [vmem:[#allocation13 + $0xa0] sm:$0xff]
    %v5640 = vld [vmem:[#allocation13 + $0xa8] sm:$0xff]
    %v5641 = vld [vmem:[#allocation13 + $0xb0] sm:$0xff]
    %v5642 = vld [vmem:[#allocation13 + $0xb8] sm:$0xff]
    %5643 = vmatpush.msra.mxu0 %v5634
    %5644 = vmatpush.msra.mxu0 %v5633
    %5645 = vmatpush.msra.mxu0 %v5632
    %5646 = vmatpush.msra.mxu0 %v5631
    %5647 = vmatpush.msra.mxu0 %v5630
    %5648 = vmatpush.msra.mxu0 %v5629
    %5649 = vmatpush.msra.mxu0 %v5628
    %5650 = vmatpush.msra.mxu0 %v5627
    %5651 = vmatpush.msra.mxu0 %v5626
    %5652 = vmatpush.msra.mxu0 %v5625
    %5653 = vmatpush.msra.mxu0 %v5624
    %5654 = vmatpush.msra.mxu0 %v5623
    %5655 = vmatpush.msra.mxu0 %v5622
    %5656 = vmatpush.msra.mxu0 %v5621
    %5657 = vmatpush.msra.mxu0 %v5620
    %5658 = vmatpush.msra.mxu0 %v5619
    %5659 = vmatmul.f32.gmra.mxu0 %v4870
    %v5660 = vpop.f32.mrf.mxu0
    %v5661 = vadd.f32 0.0, %v5660
    %5662 = vmatmul.f32.gmra.mxu0 %v4958
    %v5663 = vpop.f32.mrf.mxu0
    %v5664 = vadd.f32 0.0, %v5663
    %5665 = vmatmul.f32.gmra.mxu0 %v5046
    %v5666 = vpop.f32.mrf.mxu0
    %v5667 = vadd.f32 0.0, %v5666
    %5668 = vmatmul.f32.gmra.mxu0 %v5134
    %v5669 = vpop.f32.mrf.mxu0
    %v5670 = vadd.f32 0.0, %v5669
    %5671 = vmatmul.f32.gmra.mxu0 %v5222
    %v5672 = vpop.f32.mrf.mxu0
    %v5673 = vadd.f32 0.0, %v5672
    %5674 = vmatmul.f32.gmra.mxu0 %v5310
    %v5675 = vpop.f32.mrf.mxu0
    %v5676 = vadd.f32 0.0, %v5675
    %5677 = vmatmul.f32.gmra.mxu0 %v5398
    %v5678 = vpop.f32.mrf.mxu0
    %v5679 = vadd.f32 0.0, %v5678
    %5680 = vmatmul.f32.gmra.mxu0 %v5486
    %v5681 = vpop.f32.mrf.mxu0
    %v5682 = vadd.f32 0.0, %v5681
    %5683 = vdwg.mxu0
    %5684 = vmatpush.msra.mxu0 0.0
    %5685 = vmatpush.msra.mxu0 0.0
    %5686 = vmatpush.msra.mxu0 0.0
    %5687 = vmatpush.msra.mxu0 0.0
    %5688 = vmatpush.msra.mxu0 0.0
    %5689 = vmatpush.msra.mxu0 0.0
    %5690 = vmatpush.msra.mxu0 0.0
    %5691 = vmatpush.msra.mxu0 0.0
    %5692 = vmatpush.msra.mxu0 %v5642
    %5693 = vmatpush.msra.mxu0 %v5641
    %5694 = vmatpush.msra.mxu0 %v5640
    %5695 = vmatpush.msra.mxu0 %v5639
    %5696 = vmatpush.msra.mxu0 %v5638
    %5697 = vmatpush.msra.mxu0 %v5637
    %5698 = vmatpush.msra.mxu0 %v5636
    %5699 = vmatpush.msra.mxu0 %v5635
    %5700 = vmatmul.f32.gmra.mxu0 %v5514
    %v5701 = vpop.f32.mrf.mxu0
    %v5702 = vadd.f32 %v5661, %v5701
    %5703 = vmatmul.f32.gmra.mxu0 %v5517
    %v5704 = vpop.f32.mrf.mxu0
    %v5705 = vadd.f32 %v5664, %v5704
    %5706 = vmatmul.f32.gmra.mxu0 %v5520
    %v5707 = vpop.f32.mrf.mxu0
    %v5708 = vadd.f32 %v5667, %v5707
    %5709 = vmatmul.f32.gmra.mxu0 %v5523
    %v5710 = vpop.f32.mrf.mxu0
    %v5711 = vadd.f32 %v5670, %v5710
    %5712 = vmatmul.f32.gmra.mxu0 %v5526
    %v5713 = vpop.f32.mrf.mxu0
    %v5714 = vadd.f32 %v5673, %v5713
    %5715 = vmatmul.f32.gmra.mxu0 %v5529
    %v5716 = vpop.f32.mrf.mxu0
    %v5717 = vadd.f32 %v5676, %v5716
    %5718 = vmatmul.f32.gmra.mxu0 %v5532
    %v5719 = vpop.f32.mrf.mxu0
    %v5720 = vadd.f32 %v5679, %v5719
    %5721 = vmatmul.f32.gmra.mxu0 %v5535
    %v5722 = vpop.f32.mrf.mxu0
    %v5723 = vadd.f32 %v5682, %v5722
    %5724 = vdwg.mxu0
    %v5725 = vmax.f32 %v5596, %v5702
    %v5726 = vmax.f32 %v5599, %v5705
    %v5727 = vmax.f32 %v5602, %v5708
    %v5728 = vmax.f32 %v5605, %v5711
    %v5729 = vmax.f32 %v5608, %v5714
    %v5730 = vmax.f32 %v5611, %v5717
    %v5731 = vmax.f32 %v5614, %v5720
    %v5732 = vmax.f32 %v5617, %v5723
    %v5733 = vld [vmem:[%s12] sm:$0x1]
    %v5735 = vperm.slane %v5733, 0
    %v5737 = vadd.f32 %v5725, %v5735
    %v5738 = vadd.f32 %v5726, %v5735
    %v5739 = vadd.f32 %v5727, %v5735
    %v5740 = vadd.f32 %v5728, %v5735
    %v5741 = vadd.f32 %v5729, %v5735
    %v5742 = vadd.f32 %v5730, %v5735
    %v5743 = vadd.f32 %v5731, %v5735
    %v5744 = vadd.f32 %v5732, %v5735
    %v5745 = vmax.f32 %v5737, 0.0
    %v5746 = vmax.f32 %v5738, 0.0
    %v5747 = vmax.f32 %v5739, 0.0
    %v5748 = vmax.f32 %v5740, 0.0
    %v5749 = vmax.f32 %v5741, 0.0
    %v5750 = vmax.f32 %v5742, 0.0
    %v5751 = vmax.f32 %v5743, 0.0
    %v5752 = vmax.f32 %v5744, 0.0
    %v5753 = vld [vmem:[%s13] sm:$0xff]
    %v5755 = vsel %vm5512, %v5753, 0
    %5757 = vmatpush.msra.mxu0 0.0
    %5758 = vmatpush.msra.mxu0 0.0
    %5759 = vmatpush.msra.mxu0 0.0
    %5760 = vmatpush.msra.mxu0 0.0
    %5761 = vmatpush.msra.mxu0 0.0
    %5762 = vmatpush.msra.mxu0 0.0
    %5763 = vmatpush.msra.mxu0 0.0
    %5764 = vmatpush.msra.mxu0 0.0
    %5765 = vmatpush.msra.mxu0 %v5752
    %5766 = vmatpush.msra.mxu0 %v5751
    %5767 = vmatpush.msra.mxu0 %v5750
    %5768 = vmatpush.msra.mxu0 %v5749
    %5769 = vmatpush.msra.mxu0 %v5748
    %5770 = vmatpush.msra.mxu0 %v5747
    %5771 = vmatpush.msra.mxu0 %v5746
    %5772 = vmatpush.msra.mxu0 %v5745
    %5773 = vmatmul.f32.gmra.mxu0 %v5755
    %v5774 = vpop.f32.mrf.mxu0
    %v5775 = vadd.f32 0.0, %v5774
    %5776 = vdwg.mxu0
    %v5777 = vld [vmem:[#allocation15] sm:$0xff]
    %v5778 = vld [vmem:[#allocation15 + $0x8] sm:$0xff]
    %v5779 = vld [vmem:[#allocation15 + $0x10] sm:$0xff]
    %v5780 = vld [vmem:[#allocation15 + $0x18] sm:$0xff]
    %v5781 = vld [vmem:[#allocation15 + $0x20] sm:$0xff]
    %v5782 = vld [vmem:[#allocation15 + $0x28] sm:$0xff]
    %v5783 = vld [vmem:[#allocation15 + $0x30] sm:$0xff]
    %v5784 = vld [vmem:[#allocation15 + $0x38] sm:$0xff]
    %v5785 = vld [vmem:[#allocation15 + $0x40] sm:$0xff]
    %v5786 = vld [vmem:[#allocation15 + $0x48] sm:$0xff]
    %v5787 = vld [vmem:[#allocation15 + $0x50] sm:$0xff]
    %v5788 = vld [vmem:[#allocation15 + $0x58] sm:$0xff]
    %s5789 = scalar_lea.vmem %s13, 8
    %v5790 = vld [vmem:[%s5789] sm:$0xff]
    %v5792 = vsel %vm5512, %v5790, 0
    %5794 = vmatpush.msra.mxu0 0.0
    %5795 = vmatpush.msra.mxu0 0.0
    %5796 = vmatpush.msra.mxu0 0.0
    %5797 = vmatpush.msra.mxu0 0.0
    %5798 = vmatpush.msra.mxu0 0.0
    %5799 = vmatpush.msra.mxu0 0.0
    %5800 = vmatpush.msra.mxu0 0.0
    %5801 = vmatpush.msra.mxu0 0.0
    %5802 = vmatpush.msra.mxu0 %v5752
    %5803 = vmatpush.msra.mxu0 %v5751
    %5804 = vmatpush.msra.mxu0 %v5750
    %5805 = vmatpush.msra.mxu0 %v5749
    %5806 = vmatpush.msra.mxu0 %v5748
    %5807 = vmatpush.msra.mxu0 %v5747
    %5808 = vmatpush.msra.mxu0 %v5746
    %5809 = vmatpush.msra.mxu0 %v5745
    %5810 = vmatmul.f32.gmra.mxu0 %v5792
    %v5811 = vpop.f32.mrf.mxu0
    %v5812 = vadd.f32 0.0, %v5811
    %5813 = vdwg.mxu0
    %s5814 = scalar_lea.vmem [#allocation15], 96
    %v5815 = vld [vmem:[%s5814] sm:$0xff]
    %v5816 = vld [vmem:[%s5814 + $0x8] sm:$0xff]
    %v5817 = vld [vmem:[%s5814 + $0x10] sm:$0xff]
    %v5818 = vld [vmem:[%s5814 + $0x18] sm:$0xff]
    %v5819 = vld [vmem:[%s5814 + $0x20] sm:$0xff]
    %v5820 = vld [vmem:[%s5814 + $0x28] sm:$0xff]
    %v5821 = vld [vmem:[%s5814 + $0x30] sm:$0xff]
    %v5822 = vld [vmem:[%s5814 + $0x38] sm:$0xff]
    %v5823 = vld [vmem:[%s5814 + $0x40] sm:$0xff]
    %v5824 = vld [vmem:[%s5814 + $0x48] sm:$0xff]
    %v5825 = vld [vmem:[%s5814 + $0x50] sm:$0xff]
    %v5826 = vld [vmem:[%s5814 + $0x58] sm:$0xff]
    %vm5827 = vcmask 785408
    %v5829 = vsel %vm5827, %v5812, 0
    %5831 = vmatpush.msra.mxu0 0.0
    %5832 = vmatpush.msra.mxu0 0.0
    %5833 = vmatpush.msra.mxu0 0.0
    %5834 = vmatpush.msra.mxu0 0.0
    %5835 = vmatpush.msra.mxu0 %v5826
    %5836 = vmatpush.msra.mxu0 %v5825
    %5837 = vmatpush.msra.mxu0 %v5824
    %5838 = vmatpush.msra.mxu0 %v5823
    %5839 = vmatpush.msra.mxu0 %v5822
    %5840 = vmatpush.msra.mxu0 %v5821
    %5841 = vmatpush.msra.mxu0 %v5820
    %5842 = vmatpush.msra.mxu0 %v5819
    %5843 = vmatpush.msra.mxu0 %v5818
    %5844 = vmatpush.msra.mxu0 %v5817
    %5845 = vmatpush.msra.mxu0 %v5816
    %5846 = vmatpush.msra.mxu0 %v5815
    %5847 = vmatmul.f32.gmra.mxu0 %v5829
    %v5848 = vpop.f32.mrf.mxu0
    %v5849 = vadd.f32 0.0, %v5848
    %5850 = vdwg.mxu0
    %v5852 = vsel %vm5827, %v5775, 0
    %5854 = vmatpush.msra.mxu0 0.0
    %5855 = vmatpush.msra.mxu0 0.0
    %5856 = vmatpush.msra.mxu0 0.0
    %5857 = vmatpush.msra.mxu0 0.0
    %5858 = vmatpush.msra.mxu0 %v5788
    %5859 = vmatpush.msra.mxu0 %v5787
    %5860 = vmatpush.msra.mxu0 %v5786
    %5861 = vmatpush.msra.mxu0 %v5785
    %5862 = vmatpush.msra.mxu0 %v5784
    %5863 = vmatpush.msra.mxu0 %v5783
    %5864 = vmatpush.msra.mxu0 %v5782
    %5865 = vmatpush.msra.mxu0 %v5781
    %5866 = vmatpush.msra.mxu0 %v5780
    %5867 = vmatpush.msra.mxu0 %v5779
    %5868 = vmatpush.msra.mxu0 %v5778
    %5869 = vmatpush.msra.mxu0 %v5777
    %5870 = vmatmul.f32.gmra.mxu0 %v5852
    %v5871 = vpop.f32.mrf.mxu0
    %v5872 = vadd.f32 %v5849, %v5871
    %5873 = vdwg.mxu0
    %s5874 = scalar_lea.vmem %s13, 16
    %v5875 = vld [vmem:[%s5874] sm:$0xff]
    %v5877 = vsel %vm5512, %v5875, 0
    %5879 = vmatpush.msra.mxu0 0.0
    %5880 = vmatpush.msra.mxu0 0.0
    %5881 = vmatpush.msra.mxu0 0.0
    %5882 = vmatpush.msra.mxu0 0.0
    %5883 = vmatpush.msra.mxu0 0.0
    %5884 = vmatpush.msra.mxu0 0.0
    %5885 = vmatpush.msra.mxu0 0.0
    %5886 = vmatpush.msra.mxu0 0.0
    %5887 = vmatpush.msra.mxu0 %v5752
    %5888 = vmatpush.msra.mxu0 %v5751
    %5889 = vmatpush.msra.mxu0 %v5750
    %5890 = vmatpush.msra.mxu0 %v5749
    %5891 = vmatpush.msra.mxu0 %v5748
    %5892 = vmatpush.msra.mxu0 %v5747
    %5893 = vmatpush.msra.mxu0 %v5746
    %5894 = vmatpush.msra.mxu0 %v5745
    %5895 = vmatmul.f32.gmra.mxu0 %v5877
    %v5896 = vpop.f32.mrf.mxu0
    %v5897 = vadd.f32 0.0, %v5896
    %5898 = vdwg.mxu0
    %s5899 = scalar_lea.vmem [#allocation15], 192
    %v5900 = vld [vmem:[%s5899] sm:$0xff]
    %v5901 = vld [vmem:[%s5899 + $0x8] sm:$0xff]
    %v5902 = vld [vmem:[%s5899 + $0x10] sm:$0xff]
    %v5903 = vld [vmem:[%s5899 + $0x18] sm:$0xff]
    %v5904 = vld [vmem:[%s5899 + $0x20] sm:$0xff]
    %v5905 = vld [vmem:[%s5899 + $0x28] sm:$0xff]
    %v5906 = vld [vmem:[%s5899 + $0x30] sm:$0xff]
    %v5907 = vld [vmem:[%s5899 + $0x38] sm:$0xff]
    %v5908 = vld [vmem:[%s5899 + $0x40] sm:$0xff]
    %v5909 = vld [vmem:[%s5899 + $0x48] sm:$0xff]
    %v5910 = vld [vmem:[%s5899 + $0x50] sm:$0xff]
    %v5911 = vld [vmem:[%s5899 + $0x58] sm:$0xff]
    %v5913 = vsel %vm5827, %v5897, 0
    %5915 = vmatpush.msra.mxu0 0.0
    %5916 = vmatpush.msra.mxu0 0.0
    %5917 = vmatpush.msra.mxu0 0.0
    %5918 = vmatpush.msra.mxu0 0.0
    %5919 = vmatpush.msra.mxu0 %v5911
    %5920 = vmatpush.msra.mxu0 %v5910
    %5921 = vmatpush.msra.mxu0 %v5909
    %5922 = vmatpush.msra.mxu0 %v5908
    %5923 = vmatpush.msra.mxu0 %v5907
    %5924 = vmatpush.msra.mxu0 %v5906
    %5925 = vmatpush.msra.mxu0 %v5905
    %5926 = vmatpush.msra.mxu0 %v5904
    %5927 = vmatpush.msra.mxu0 %v5903
    %5928 = vmatpush.msra.mxu0 %v5902
    %5929 = vmatpush.msra.mxu0 %v5901
    %5930 = vmatpush.msra.mxu0 %v5900
    %5931 = vmatmul.f32.gmra.mxu0 %v5913
    %v5932 = vpop.f32.mrf.mxu0
    %v5933 = vadd.f32 0.0, %v5932
    %5934 = vdwg.mxu0
    %v5935 = vadd.f32 %v5872, %v5933
    %s5936 = scalar_lea.vmem %s13, 24
    %v5937 = vld [vmem:[%s5936] sm:$0xff]
    %v5939 = vsel %vm5512, %v5937, 0
    %5941 = vmatpush.msra.mxu0 0.0
    %5942 = vmatpush.msra.mxu0 0.0
    %5943 = vmatpush.msra.mxu0 0.0
    %5944 = vmatpush.msra.mxu0 0.0
    %5945 = vmatpush.msra.mxu0 0.0
    %5946 = vmatpush.msra.mxu0 0.0
    %5947 = vmatpush.msra.mxu0 0.0
    %5948 = vmatpush.msra.mxu0 0.0
    %5949 = vmatpush.msra.mxu0 %v5752
    %5950 = vmatpush.msra.mxu0 %v5751
    %5951 = vmatpush.msra.mxu0 %v5750
    %5952 = vmatpush.msra.mxu0 %v5749
    %5953 = vmatpush.msra.mxu0 %v5748
    %5954 = vmatpush.msra.mxu0 %v5747
    %5955 = vmatpush.msra.mxu0 %v5746
    %5956 = vmatpush.msra.mxu0 %v5745
    %5957 = vmatmul.f32.gmra.mxu0 %v5939
    %v5958 = vpop.f32.mrf.mxu0
    %v5959 = vadd.f32 0.0, %v5958
    %5960 = vdwg.mxu0
    %s5961 = scalar_lea.vmem [#allocation15], 288
    %v5962 = vld [vmem:[%s5961] sm:$0xff]
    %v5963 = vld [vmem:[%s5961 + $0x8] sm:$0xff]
    %v5964 = vld [vmem:[%s5961 + $0x10] sm:$0xff]
    %v5965 = vld [vmem:[%s5961 + $0x18] sm:$0xff]
    %v5966 = vld [vmem:[%s5961 + $0x20] sm:$0xff]
    %v5967 = vld [vmem:[%s5961 + $0x28] sm:$0xff]
    %v5968 = vld [vmem:[%s5961 + $0x30] sm:$0xff]
    %v5969 = vld [vmem:[%s5961 + $0x38] sm:$0xff]
    %v5970 = vld [vmem:[%s5961 + $0x40] sm:$0xff]
    %v5971 = vld [vmem:[%s5961 + $0x48] sm:$0xff]
    %v5972 = vld [vmem:[%s5961 + $0x50] sm:$0xff]
    %v5973 = vld [vmem:[%s5961 + $0x58] sm:$0xff]
    %v5975 = vsel %vm5827, %v5959, 0
    %5977 = vmatpush.msra.mxu0 0.0
    %5978 = vmatpush.msra.mxu0 0.0
    %5979 = vmatpush.msra.mxu0 0.0
    %5980 = vmatpush.msra.mxu0 0.0
    %5981 = vmatpush.msra.mxu0 %v5973
    %5982 = vmatpush.msra.mxu0 %v5972
    %5983 = vmatpush.msra.mxu0 %v5971
    %5984 = vmatpush.msra.mxu0 %v5970
    %5985 = vmatpush.msra.mxu0 %v5969
    %5986 = vmatpush.msra.mxu0 %v5968
    %5987 = vmatpush.msra.mxu0 %v5967
    %5988 = vmatpush.msra.mxu0 %v5966
    %5989 = vmatpush.msra.mxu0 %v5965
    %5990 = vmatpush.msra.mxu0 %v5964
    %5991 = vmatpush.msra.mxu0 %v5963
    %5992 = vmatpush.msra.mxu0 %v5962
    %5993 = vmatmul.f32.gmra.mxu0 %v5975
    %v5994 = vpop.f32.mrf.mxu0
    %v5995 = vadd.f32 0.0, %v5994
    %5996 = vdwg.mxu0
    %v5997 = vadd.f32 %v5935, %v5995
    %s5998 = scalar_lea.vmem %s13, 32
    %v5999 = vld [vmem:[%s5998] sm:$0xff]
    %v6001 = vsel %vm5512, %v5999, 0
    %6003 = vmatpush.msra.mxu0 0.0
    %6004 = vmatpush.msra.mxu0 0.0
    %6005 = vmatpush.msra.mxu0 0.0
    %6006 = vmatpush.msra.mxu0 0.0
    %6007 = vmatpush.msra.mxu0 0.0
    %6008 = vmatpush.msra.mxu0 0.0
    %6009 = vmatpush.msra.mxu0 0.0
    %6010 = vmatpush.msra.mxu0 0.0
    %6011 = vmatpush.msra.mxu0 %v5752
    %6012 = vmatpush.msra.mxu0 %v5751
    %6013 = vmatpush.msra.mxu0 %v5750
    %6014 = vmatpush.msra.mxu0 %v5749
    %6015 = vmatpush.msra.mxu0 %v5748
    %6016 = vmatpush.msra.mxu0 %v5747
    %6017 = vmatpush.msra.mxu0 %v5746
    %6018 = vmatpush.msra.mxu0 %v5745
    %6019 = vmatmul.f32.gmra.mxu0 %v6001
    %v6020 = vpop.f32.mrf.mxu0
    %v6021 = vadd.f32 0.0, %v6020
    %6022 = vdwg.mxu0
    %s6023 = scalar_lea.vmem [#allocation15], 384
    %v6024 = vld [vmem:[%s6023] sm:$0xff]
    %v6025 = vld [vmem:[%s6023 + $0x8] sm:$0xff]
    %v6026 = vld [vmem:[%s6023 + $0x10] sm:$0xff]
    %v6027 = vld [vmem:[%s6023 + $0x18] sm:$0xff]
    %v6028 = vld [vmem:[%s6023 + $0x20] sm:$0xff]
    %v6029 = vld [vmem:[%s6023 + $0x28] sm:$0xff]
    %v6030 = vld [vmem:[%s6023 + $0x30] sm:$0xff]
    %v6031 = vld [vmem:[%s6023 + $0x38] sm:$0xff]
    %v6032 = vld [vmem:[%s6023 + $0x40] sm:$0xff]
    %v6033 = vld [vmem:[%s6023 + $0x48] sm:$0xff]
    %v6034 = vld [vmem:[%s6023 + $0x50] sm:$0xff]
    %v6035 = vld [vmem:[%s6023 + $0x58] sm:$0xff]
    %v6037 = vsel %vm5827, %v6021, 0
    %6039 = vmatpush.msra.mxu0 0.0
    %6040 = vmatpush.msra.mxu0 0.0
    %6041 = vmatpush.msra.mxu0 0.0
    %6042 = vmatpush.msra.mxu0 0.0
    %6043 = vmatpush.msra.mxu0 %v6035
    %6044 = vmatpush.msra.mxu0 %v6034
    %6045 = vmatpush.msra.mxu0 %v6033
    %6046 = vmatpush.msra.mxu0 %v6032
    %6047 = vmatpush.msra.mxu0 %v6031
    %6048 = vmatpush.msra.mxu0 %v6030
    %6049 = vmatpush.msra.mxu0 %v6029
    %6050 = vmatpush.msra.mxu0 %v6028
    %6051 = vmatpush.msra.mxu0 %v6027
    %6052 = vmatpush.msra.mxu0 %v6026
    %6053 = vmatpush.msra.mxu0 %v6025
    %6054 = vmatpush.msra.mxu0 %v6024
    %6055 = vmatmul.f32.gmra.mxu0 %v6037
    %v6056 = vpop.f32.mrf.mxu0
    %v6057 = vadd.f32 0.0, %v6056
    %6058 = vdwg.mxu0
    %v6059 = vadd.f32 %v5997, %v6057
    %s6060 = scalar_lea.vmem %s13, 40
    %v6061 = vld [vmem:[%s6060] sm:$0xff]
    %v6063 = vsel %vm5512, %v6061, 0
    %6065 = vmatpush.msra.mxu0 0.0
    %6066 = vmatpush.msra.mxu0 0.0
    %6067 = vmatpush.msra.mxu0 0.0
    %6068 = vmatpush.msra.mxu0 0.0
    %6069 = vmatpush.msra.mxu0 0.0
    %6070 = vmatpush.msra.mxu0 0.0
    %6071 = vmatpush.msra.mxu0 0.0
    %6072 = vmatpush.msra.mxu0 0.0
    %6073 = vmatpush.msra.mxu0 %v5752
    %6074 = vmatpush.msra.mxu0 %v5751
    %6075 = vmatpush.msra.mxu0 %v5750
    %6076 = vmatpush.msra.mxu0 %v5749
    %6077 = vmatpush.msra.mxu0 %v5748
    %6078 = vmatpush.msra.mxu0 %v5747
    %6079 = vmatpush.msra.mxu0 %v5746
    %6080 = vmatpush.msra.mxu0 %v5745
    %6081 = vmatmul.f32.gmra.mxu0 %v6063
    %v6082 = vpop.f32.mrf.mxu0
    %v6083 = vadd.f32 0.0, %v6082
    %6084 = vdwg.mxu0
    %s6085 = scalar_lea.vmem [#allocation15], 480
    %v6086 = vld [vmem:[%s6085] sm:$0xff]
    %v6087 = vld [vmem:[%s6085 + $0x8] sm:$0xff]
    %v6088 = vld [vmem:[%s6085 + $0x10] sm:$0xff]
    %v6089 = vld [vmem:[%s6085 + $0x18] sm:$0xff]
    %v6090 = vld [vmem:[%s6085 + $0x20] sm:$0xff]
    %v6091 = vld [vmem:[%s6085 + $0x28] sm:$0xff]
    %v6092 = vld [vmem:[%s6085 + $0x30] sm:$0xff]
    %v6093 = vld [vmem:[%s6085 + $0x38] sm:$0xff]
    %v6094 = vld [vmem:[%s6085 + $0x40] sm:$0xff]
    %v6095 = vld [vmem:[%s6085 + $0x48] sm:$0xff]
    %v6096 = vld [vmem:[%s6085 + $0x50] sm:$0xff]
    %v6097 = vld [vmem:[%s6085 + $0x58] sm:$0xff]
    %v6099 = vsel %vm5827, %v6083, 0
    %6101 = vmatpush.msra.mxu0 0.0
    %6102 = vmatpush.msra.mxu0 0.0
    %6103 = vmatpush.msra.mxu0 0.0
    %6104 = vmatpush.msra.mxu0 0.0
    %6105 = vmatpush.msra.mxu0 %v6097
    %6106 = vmatpush.msra.mxu0 %v6096
    %6107 = vmatpush.msra.mxu0 %v6095
    %6108 = vmatpush.msra.mxu0 %v6094
    %6109 = vmatpush.msra.mxu0 %v6093
    %6110 = vmatpush.msra.mxu0 %v6092
    %6111 = vmatpush.msra.mxu0 %v6091
    %6112 = vmatpush.msra.mxu0 %v6090
    %6113 = vmatpush.msra.mxu0 %v6089
    %6114 = vmatpush.msra.mxu0 %v6088
    %6115 = vmatpush.msra.mxu0 %v6087
    %6116 = vmatpush.msra.mxu0 %v6086
    %6117 = vmatmul.f32.gmra.mxu0 %v6099
    %v6118 = vpop.f32.mrf.mxu0
    %v6119 = vadd.f32 0.0, %v6118
    %6120 = vdwg.mxu0
    %v6121 = vadd.f32 %v6059, %v6119
    %v6122 = vld [vmem:[%s15] sm:$0x1]
    %v6124 = vperm.slane %v6122, 0
    %v6126 = vadd.f32 %v6121, %v6124
    %v6127 = vmax.f32 %v6126, 0.0
    %v6128 = vld [vmem:[%s16] sm:$0xff]
    %v6129 = vld [vmem:[%s16 + $0x8] sm:$0xff]
    %v6130 = vld [vmem:[%s16 + $0x10] sm:$0xff]
    %v6131 = vld [vmem:[%s16 + $0x18] sm:$0xff]
    %v6132 = vld [vmem:[%s16 + $0x20] sm:$0xff]
    %v6133 = vld [vmem:[%s16 + $0x28] sm:$0xff]
    %v6134 = vld [vmem:[%s16 + $0x30] sm:$0xff]
    %v6135 = vld [vmem:[%s16 + $0x38] sm:$0xff]
    %v6136 = vld [vmem:[%s16 + $0x40] sm:$0xff]
    %v6137 = vld [vmem:[%s16 + $0x48] sm:$0xff]
    %v6138 = vld [vmem:[%s16 + $0x50] sm:$0xff]
    %v6139 = vld [vmem:[%s16 + $0x58] sm:$0xff]
    %v6140 = vld [vmem:[%s16 + $0x60] sm:$0xff]
    %v6141 = vld [vmem:[%s16 + $0x68] sm:$0xff]
    %v6142 = vld [vmem:[%s16 + $0x70] sm:$0xff]
    %v6143 = vld [vmem:[%s17] sm:$0x1]
    %v6145 = vperm.slane %v6143, 0
    %vm6147 = vcmask 982016
    %v6149 = vsel %vm6147, %v6127, 0
    %6151 = vmatpush.msra.mxu0 0.0
    %6152 = vmatpush.msra.mxu0 %v6142
    %6153 = vmatpush.msra.mxu0 %v6141
    %6154 = vmatpush.msra.mxu0 %v6140
    %6155 = vmatpush.msra.mxu0 %v6139
    %6156 = vmatpush.msra.mxu0 %v6138
    %6157 = vmatpush.msra.mxu0 %v6137
    %6158 = vmatpush.msra.mxu0 %v6136
    %6159 = vmatpush.msra.mxu0 %v6135
    %6160 = vmatpush.msra.mxu0 %v6134
    %6161 = vmatpush.msra.mxu0 %v6133
    %6162 = vmatpush.msra.mxu0 %v6132
    %6163 = vmatpush.msra.mxu0 %v6131
    %6164 = vmatpush.msra.mxu0 %v6130
    %6165 = vmatpush.msra.mxu0 %v6129
    %6166 = vmatpush.msra.mxu0 %v6128
    %6167 = vmatmul.f32.gmra.mxu0 %v6149
    %v6168 = vpop.f32.mrf.mxu0
    %v6169 = vadd.f32 %v6145, %v6168
    %6170 = vdwg.mxu0
    %v6171 = vmax.f32 %v6169, 0.0
    %v6172 = vld [vmem:[%s18] sm:$0xff]
    %v6173 = vld [vmem:[%s18 + $0x8] sm:$0xff]
    %v6174 = vld [vmem:[%s18 + $0x10] sm:$0xff]
    %v6175 = vld [vmem:[%s18 + $0x18] sm:$0xff]
    %v6176 = vld [vmem:[%s18 + $0x20] sm:$0xff]
    %v6177 = vld [vmem:[%s18 + $0x28] sm:$0xff]
    %v6178 = vld [vmem:[%s18 + $0x30] sm:$0xff]
    %v6179 = vld [vmem:[%s18 + $0x38] sm:$0xff]
    %v6180 = vld [vmem:[%s18 + $0x40] sm:$0xff]
    %v6181 = vld [vmem:[%s18 + $0x48] sm:$0xff]
    %v6182 = vld [vmem:[%s18 + $0x50] sm:$0xf]
    %v6183 = vld [vmem:[%s19] sm:$0x1]
    %v6185 = vperm.slane %v6183, 0
    %v6188 = vsel %vm3984, %v6171, 0
    %v6191 = vsel %vm2485, %v6182, 0
    %6193 = vmatpush.msra.mxu0 0.0
    %6194 = vmatpush.msra.mxu0 0.0
    %6195 = vmatpush.msra.mxu0 0.0
    %6196 = vmatpush.msra.mxu0 0.0
    %6197 = vmatpush.msra.mxu0 0.0
    %6198 = vmatpush.msra.mxu0 %v6191
    %6199 = vmatpush.msra.mxu0 %v6181
    %6200 = vmatpush.msra.mxu0 %v6180
    %6201 = vmatpush.msra.mxu0 %v6179
    %6202 = vmatpush.msra.mxu0 %v6178
    %6203 = vmatpush.msra.mxu0 %v6177
    %6204 = vmatpush.msra.mxu0 %v6176
    %6205 = vmatpush.msra.mxu0 %v6175
    %6206 = vmatpush.msra.mxu0 %v6174
    %6207 = vmatpush.msra.mxu0 %v6173
    %6208 = vmatpush.msra.mxu0 %v6172
    %6209 = vmatmul.f32.gmra.mxu0 %v6188
    %v6210 = vpop.f32.mrf.mxu0
    %v6211 = vadd.f32 %v6185, %v6210
    %6212 = vdwg.mxu0
    %6213 = vst [vmem:[%s20] sm:$0xff] %v6211
    // Predicated region
    $region118: #{lenet_forward.1} parent=1 // pred_check
      _
    $region119: #{lenet_forward.1} parent=1 // pred_check_branch
      %6215 = sbr.rel (0) target = $region121
    $region120: #{lenet_forward.1} parent=1 // pred_region
      _
    $region121: #{lenet_forward.1} parent=1 // pred_fallthru
      _
    // Predicated region
    $region122: #{lenet_forward.1} parent=1 // pred_check
      _
    $region123: #{lenet_forward.1} parent=1 // pred_check_branch
      %6217 = sbr.rel (0) target = $region125
    $region124: #{lenet_forward.1} parent=1 // pred_region
      _
    $region125: #{lenet_forward.1} parent=1 // pred_fallthru
      _
    %6218 = vsyncpa [#allocation3], 1
    %6219 = vsyncpa [#allocation5], 1
    %6220 = vsyncpa [#allocation8], 1
    %6221 = vsyncpa [#allocation11], 1
    %6222 = vsyncpa [#allocation14], 1

</llo_original>
